<compile_context>
chip_gen: v5e
topology: v5e:2x2
jax: 0.10.0
libtpu: 0.0.40
codegen_flags: <defaults>
</compile_context>

<pallas_src>
import jax
import jax.numpy as jnp
from jax import lax
from jax.experimental import pallas as pl
from jax.experimental.pallas import tpu as pltpu

C1P = 16           # conv1 out-channels padded 10 -> 16 (per-tap block of conv2 K)
K1 = 32            # conv1 im2col contraction width (25 taps -> 32)
C2P = 128          # conv2 out-channels padded 20 -> 128 (lane-dense GEMM output)
K2 = 25 * C1P      # conv2 im2col contraction width (400, all columns written)
F1C = 32           # channels kept per pooled pixel for the fc1 flatten (20 -> 32)
KF1 = 16 * F1C     # fc1 contraction width (512, 320 real)
FP = 128           # fc1 / fc2 output width padded to a full 128-lane register
RPI = 192          # conv1 GEMM rows per image per parity (12 h1 * 16 padded w1)


# ----------------------------------------------------------------------------
# Fused kernel: whole batch in one invocation, everything resident in VMEM.
# ----------------------------------------------------------------------------
def _fused_cnn_kernel(xp_ref, w1_ref, b1_ref, w2_ref, b2_ref,
                      wf1_ref, bf1_ref, wf2_ref, bf2_ref,
                      out_ref, p1f_scr, p1_scr, lhs2_scr, f_scr):
    f32 = jnp.float32
    NB = out_ref.shape[0]

    # ---- conv1 (5x5, Cin=1) on the MXU: 4 GEMMs, one per pool-1 parity -----
    # Host im2col already grouped rows by (parity, image, h1, padded w1), so
    # pool1 is just an elementwise max over the four parity GEMM outputs.
    w1 = w1_ref[...]
    p1f_scr[...] = jnp.dot(xp_ref[0], w1, preferred_element_type=f32)
    for q in range(1, 4):
        p1f_scr[...] = jnp.maximum(
            p1f_scr[...],
            jnp.dot(xp_ref[q], w1, preferred_element_type=f32))
    # bias + ReLU (commutes with the max: per-channel bias, monotone ReLU)
    p1 = jnp.maximum(p1f_scr[...] + b1_ref[...], 0.0)        # (NB*192, C1P)
    # Tile-aligned split (192 = 12 * 16, sublane groups of 16): no relayout.
    p1_scr[...] = p1.reshape(NB, 12, 16, C1P)

    # ---- conv2 (5x5, 10->20): build the full im2col LHS once, ONE GEMM -----
    for i in range(5):
        for j in range(5):
            t = i * 5 + j
            lhs2_scr[:, :, :, t * C1P:(t + 1) * C1P] = \
                p1_scr[:, i:i + 8, j:j + 8, :]
    lhs2 = lhs2_scr[...].reshape(NB * 64, K2)                 # (NB*64, 400)
    acc2 = jnp.dot(lhs2, w2_ref[...], preferred_element_type=f32)
    acc2 = jnp.maximum(acc2 + b2_ref[...], 0.0)               # (NB*64, C2P)

    # ---- 2x2 max pool (pool2) + flatten into torch (c, h, w) order ---------
    # Pooled pixel p = h2*4 + w2 maxes conv2 pixels (2h2+{0,1}, 2w2+{0,1});
    # the result lands lane-dense at f_scr[:, p*32 : p*32+32].
    a = acc2.reshape(NB, 8, 8, C2P)
    for p in range(16):
        h2, w2 = p // 4, p % 4
        m = jnp.maximum(
            jnp.maximum(a[:, 2 * h2, 2 * w2, :F1C],
                        a[:, 2 * h2, 2 * w2 + 1, :F1C]),
            jnp.maximum(a[:, 2 * h2 + 1, 2 * w2, :F1C],
                        a[:, 2 * h2 + 1, 2 * w2 + 1, :F1C]))
        f_scr[:, p * F1C:(p + 1) * F1C] = m                   # (NB, F1C)

    # ---- fc1 + ReLU + fc2: one GEMM each ------------------------------------
    f1 = jnp.maximum(
        jnp.dot(f_scr[...], wf1_ref[...], preferred_element_type=f32)
        + bf1_ref[...], 0.0)                                  # (NB, FP)
    out_ref[...] = (jnp.dot(f1, wf2_ref[...], preferred_element_type=f32)
                    + bf2_ref[...])                           # (NB, FP)


# ----------------------------------------------------------------------------
# Host-side layout plumbing (one-time XLA glue).
# ----------------------------------------------------------------------------
def _build_conv1_patches(x):
    """x: (N,1,28,28) -> (4, N*192, 32) conv1 im2col, grouped by pool parity."""
    N = x.shape[0]
    img = x[:, 0]                                             # (N, 28, 28)
    taps = jnp.stack([img[:, i:i + 24, j:j + 24]
                      for i in range(5) for j in range(5)], axis=-1)  # (N,24,24,25)
    planes = []
    for dh in (0, 1):
        for dw in (0, 1):
            pq = taps[:, dh::2, dw::2, :]                     # (N,12,12,25)
            pq = jnp.pad(pq, ((0, 0), (0, 0), (0, 4), (0, 0)))  # w1: 12 -> 16
            planes.append(pq.reshape(N, RPI, 25))
    xp = jnp.stack(planes, axis=0).reshape(4, N * RPI, 25)
    return jnp.pad(xp, ((0, 0), (0, 0), (0, K1 - 25)))        # taps 25 -> 32


def simple_cnn_forward(params, x):
    """Fused Pallas forward of SimpleCNN.  x: (N, 1, 28, 28) float32."""
    N = x.shape[0]
    f32 = jnp.float32
    x = x.astype(f32)

    xp = _build_conv1_patches(x)                              # (4, N*192, 32)

    # conv1 weights: (K1, C1P), row t = i*5 + j.
    w1p = jnp.zeros((K1, C1P), f32).at[:25, :10].set(
        params["conv1_w"].reshape(10, 25).T.astype(f32))
    b1p = jnp.zeros((1, C1P), f32).at[0, :10].set(params["conv1_b"].astype(f32))

    # conv2 weights reshaped to the single-GEMM RHS: row = t*16 + cin.
    w2f = jnp.zeros((25, C1P, C2P), f32).at[:, :10, :20].set(
        params["conv2_w"].transpose(2, 3, 1, 0).reshape(25, 10, 20).astype(f32)
    ).reshape(K2, C2P)
    b2p = jnp.zeros((1, C2P), f32).at[0, :20].set(params["conv2_b"].astype(f32))

    # fc1 weights reordered to our (p, c) flatten: row = p*32 + c, where
    # torch's flatten index is c*16 + p  (c = channel, p = h2*4 + w2).
    wf1f = jnp.zeros((16, F1C, FP), f32).at[:, :20, :50].set(
        params["fc1_w"].reshape(50, 20, 16).transpose(2, 1, 0).astype(f32)
    ).reshape(KF1, FP)
    bf1p = jnp.zeros((1, FP), f32).at[0, :50].set(params["fc1_b"].astype(f32))

    wf2p = jnp.zeros((FP, FP), f32).at[:50, :10].set(params["fc2_w"].T.astype(f32))
    bf2p = jnp.zeros((1, FP), f32).at[0, :10].set(params["fc2_b"].astype(f32))

    R = N * RPI
    out = pl.pallas_call(
        _fused_cnn_kernel,
        out_shape=jax.ShapeDtypeStruct((N, FP), f32),
        grid=(1,),
        in_specs=[
            pl.BlockSpec((4, R, K1), lambda n: (0, 0, 0)),
            pl.BlockSpec((K1, C1P), lambda n: (0, 0)),
            pl.BlockSpec((1, C1P), lambda n: (0, 0)),
            pl.BlockSpec((K2, C2P), lambda n: (0, 0)),
            pl.BlockSpec((1, C2P), lambda n: (0, 0)),
            pl.BlockSpec((KF1, FP), lambda n: (0, 0)),
            pl.BlockSpec((1, FP), lambda n: (0, 0)),
            pl.BlockSpec((FP, FP), lambda n: (0, 0)),
            pl.BlockSpec((1, FP), lambda n: (0, 0)),
        ],
        out_specs=pl.BlockSpec((N, FP), lambda n: (0, 0)),
        scratch_shapes=[
            pltpu.VMEM((R, C1P), f32),            # conv1 GEMM / parity-max acc
            pltpu.VMEM((N, 12, 16, C1P), f32),    # pooled conv1 activation
            pltpu.VMEM((N, 8, 8, K2), f32),       # conv2 im2col LHS (one GEMM)
            pltpu.VMEM((N, KF1), f32),            # flattened fc1 input
        ],
        compiler_params=pltpu.CompilerParams(
            dimension_semantics=("arbitrary",)),
    )(xp, w1p, b1p, w2f, b2p, wf1f, bf1p, wf2p, bf2p)

    # Real logits are lanes 0..9; slice back only at the very end.
    return out[:, :10]


# ----------------------------------------------------------------------------
# Pure-JAX reference (ground truth for the PyTorch module semantics).
# ----------------------------------------------------------------------------
def reference_forward(params, x):
    def conv(x, w, b):
        y = lax.conv_general_dilated(
            x, w, window_strides=(1, 1), padding="VALID",
            dimension_numbers=("NCHW", "OIHW", "NCHW"))
        return y + b[None, :, None, None]

    def pool(x):
        return lax.reduce_window(x, -jnp.inf, lax.max,
                                 (1, 1, 2, 2), (1, 1, 2, 2), "VALID")

    x = pool(jax.nn.relu(conv(x, params["conv1_w"], params["conv1_b"])))
    x = pool(jax.nn.relu(conv(x, params["conv2_w"], params["conv2_b"])))
    x = x.reshape(-1, 320)
    x = jax.nn.relu(x @ params["fc1_w"].T + params["fc1_b"])
    x = x @ params["fc2_w"].T + params["fc2_b"]
    return x


# ----------------------------------------------------------------------------
# Deterministic parameter init (PyTorch-default-style uniform bounds)
# ----------------------------------------------------------------------------
def init_params(key):
    def uniform(key, shape, fan_in):
        bound = 1.0 / jnp.sqrt(jnp.float32(fan_in))
        return jax.random.uniform(key, shape, jnp.float32, -bound, bound)

    ks = jax.random.split(key, 8)
    return {
        "conv1_w": uniform(ks[0], (10, 1, 5, 5), 1 * 5 * 5),
        "conv1_b": uniform(ks[1], (10,), 1 * 5 * 5),
        "conv2_w": uniform(ks[2], (20, 10, 5, 5), 10 * 5 * 5),
        "conv2_b": uniform(ks[3], (20,), 10 * 5 * 5),
        "fc1_w": uniform(ks[4], (50, 320), 320),
        "fc1_b": uniform(ks[5], (50,), 320),
        "fc2_w": uniform(ks[6], (10, 50), 50),
        "fc2_b": uniform(ks[7], (10,), 50),
    }


if __name__ == "__main__":
    key = jax.random.PRNGKey(0)
    pkey, xkey = jax.random.split(key)
    params = init_params(pkey)
    # MNIST-sized input is required for the 320-dim flatten: (N, 1, 28, 28).
    x = jax.random.normal(xkey, (2, 1, 28, 28), dtype=jnp.float32)

    fwd = jax.jit(simple_cnn_forward)
    out = jax.block_until_ready(fwd(params, x))

    ref = reference_forward(params, x)
    assert out.shape == (2, 10) and out.dtype == jnp.float32
    # Tolerance leaves headroom for TPU matmul precision differences between
    # the Pallas MXU path and the XLA reference convolutions.
    assert jnp.allclose(out, ref, rtol=2e-3, atol=2e-3), "mismatch vs reference"

    print("KERNEL_OK")
</pallas_src>

<mosaic_0001>
module attributes {stable_mosaic.version = 11 : i64} {
  func.func @_fused_cnn_kernel(%arg0: i32, %arg1: memref<4x384x32xf32, #tpu.memory_space<vmem>>, %arg2: memref<32x16xf32, #tpu.memory_space<vmem>>, %arg3: memref<1x16xf32, #tpu.memory_space<vmem>>, %arg4: memref<400x128xf32, #tpu.memory_space<vmem>>, %arg5: memref<1x128xf32, #tpu.memory_space<vmem>>, %arg6: memref<512x128xf32, #tpu.memory_space<vmem>>, %arg7: memref<1x128xf32, #tpu.memory_space<vmem>>, %arg8: memref<128x128xf32, #tpu.memory_space<vmem>>, %arg9: memref<1x128xf32, #tpu.memory_space<vmem>>, %arg10: memref<2x128xf32, #tpu.memory_space<vmem>>, %arg11: memref<384x16xf32, #tpu.memory_space<vmem>>, %arg12: memref<2x12x16x16xf32, #tpu.memory_space<vmem>>, %arg13: memref<2x8x8x400xf32, #tpu.memory_space<vmem>>, %arg14: memref<2x512xf32, #tpu.memory_space<vmem>>) attributes {dimension_semantics = [#tpu.dimension_semantics<arbitrary>], iteration_bounds = array<i64: 1>, scalar_prefetch = 0 : i64, scratch_operands = 4 : i64, tpu.core_type = #tpu.core_type<tc>, window_params = [{pipeline_mode = #tpu.pipeline_mode<synchronous>, transform_indices = @transform_0, window_bounds = array<i64: 4, 384, 32>}, {pipeline_mode = #tpu.pipeline_mode<synchronous>, transform_indices = @transform_1, window_bounds = array<i64: 32, 16>}, {pipeline_mode = #tpu.pipeline_mode<synchronous>, transform_indices = @transform_2, window_bounds = array<i64: 1, 16>}, {pipeline_mode = #tpu.pipeline_mode<synchronous>, transform_indices = @transform_3, window_bounds = array<i64: 400, 128>}, {pipeline_mode = #tpu.pipeline_mode<synchronous>, transform_indices = @transform_4, window_bounds = array<i64: 1, 128>}, {pipeline_mode = #tpu.pipeline_mode<synchronous>, transform_indices = @transform_5, window_bounds = array<i64: 512, 128>}, {pipeline_mode = #tpu.pipeline_mode<synchronous>, transform_indices = @transform_6, window_bounds = array<i64: 1, 128>}, {pipeline_mode = #tpu.pipeline_mode<synchronous>, transform_indices = @transform_7, window_bounds = array<i64: 128, 128>}, {pipeline_mode = #tpu.pipeline_mode<synchronous>, transform_indices = @transform_8, window_bounds = array<i64: 1, 128>}, {pipeline_mode = #tpu.pipeline_mode<synchronous>, transform_indices = @transform_9, window_bounds = array<i64: 2, 128>}]} {
    %c0 = arith.constant 0 : index
    %c0_0 = arith.constant 0 : index
    %0 = vector.load %arg2[%c0, %c0_0] : memref<32x16xf32, #tpu.memory_space<vmem>>, vector<32x16xf32>
    %c0_1 = arith.constant 0 : index
    %c0_2 = arith.constant 0 : index
    %c0_3 = arith.constant 0 : index
    %1 = vector.load %arg1[%c0_1, %c0_2, %c0_3] : memref<4x384x32xf32, #tpu.memory_space<vmem>>, vector<1x384x32xf32>
    %2 = vector.shape_cast %1 : vector<1x384x32xf32> to vector<384x32xf32>
    %cst = arith.constant dense<0.000000e+00> : vector<384x16xf32>
    %3 = tpu.matmul %2, %0, %cst {dimension_numbers = #tpu.dot_dimension_numbers<[1], [0], [0], [1], [0, 0, 1, 1], [], []>} : vector<384x32xf32>, vector<32x16xf32>, vector<384x16xf32> -> vector<384x16xf32>
    %c0_4 = arith.constant 0 : index
    %c0_5 = arith.constant 0 : index
    %4 = vector.load %arg11[%c0_4, %c0_5] : memref<384x16xf32, #tpu.memory_space<vmem>>, vector<384x16xf32>
    tpu.vector_store %arg11[%c0_4, %c0_5], %3 {strides = array<i32>} : memref<384x16xf32, #tpu.memory_space<vmem>>, vector<384x16xf32>,
    %c0_6 = arith.constant 0 : index
    %c0_7 = arith.constant 0 : index
    %5 = vector.load %arg11[%c0_6, %c0_7] : memref<384x16xf32, #tpu.memory_space<vmem>>, vector<384x16xf32>
    %c1 = arith.constant 1 : index
    %c0_8 = arith.constant 0 : index
    %c0_9 = arith.constant 0 : index
    %6 = vector.load %arg1[%c1, %c0_8, %c0_9] : memref<4x384x32xf32, #tpu.memory_space<vmem>>, vector<1x384x32xf32>
    %7 = vector.shape_cast %6 : vector<1x384x32xf32> to vector<384x32xf32>
    %cst_10 = arith.constant dense<0.000000e+00> : vector<384x16xf32>
    %8 = tpu.matmul %7, %0, %cst_10 {dimension_numbers = #tpu.dot_dimension_numbers<[1], [0], [0], [1], [0, 0, 1, 1], [], []>} : vector<384x32xf32>, vector<32x16xf32>, vector<384x16xf32> -> vector<384x16xf32>
    %9 = arith.maximumf %5, %8 : vector<384x16xf32>
    %c0_11 = arith.constant 0 : index
    %c0_12 = arith.constant 0 : index
    %10 = vector.load %arg11[%c0_11, %c0_12] : memref<384x16xf32, #tpu.memory_space<vmem>>, vector<384x16xf32>
    tpu.vector_store %arg11[%c0_11, %c0_12], %9 {strides = array<i32>} : memref<384x16xf32, #tpu.memory_space<vmem>>, vector<384x16xf32>,
    %c0_13 = arith.constant 0 : index
    %c0_14 = arith.constant 0 : index
    %11 = vector.load %arg11[%c0_13, %c0_14] : memref<384x16xf32, #tpu.memory_space<vmem>>, vector<384x16xf32>
    %c2 = arith.constant 2 : index
    %c0_15 = arith.constant 0 : index
    %c0_16 = arith.constant 0 : index
    %12 = vector.load %arg1[%c2, %c0_15, %c0_16] : memref<4x384x32xf32, #tpu.memory_space<vmem>>, vector<1x384x32xf32>
    %13 = vector.shape_cast %12 : vector<1x384x32xf32> to vector<384x32xf32>
    %cst_17 = arith.constant dense<0.000000e+00> : vector<384x16xf32>
    %14 = tpu.matmul %13, %0, %cst_17 {dimension_numbers = #tpu.dot_dimension_numbers<[1], [0], [0], [1], [0, 0, 1, 1], [], []>} : vector<384x32xf32>, vector<32x16xf32>, vector<384x16xf32> -> vector<384x16xf32>
    %15 = arith.maximumf %11, %14 : vector<384x16xf32>
    %c0_18 = arith.constant 0 : index
    %c0_19 = arith.constant 0 : index
    %16 = vector.load %arg11[%c0_18, %c0_19] : memref<384x16xf32, #tpu.memory_space<vmem>>, vector<384x16xf32>
    tpu.vector_store %arg11[%c0_18, %c0_19], %15 {strides = array<i32>} : memref<384x16xf32, #tpu.memory_space<vmem>>, vector<384x16xf32>,
    %c0_20 = arith.constant 0 : index
    %c0_21 = arith.constant 0 : index
    %17 = vector.load %arg11[%c0_20, %c0_21] : memref<384x16xf32, #tpu.memory_space<vmem>>, vector<384x16xf32>
    %c3 = arith.constant 3 : index
    %c0_22 = arith.constant 0 : index
    %c0_23 = arith.constant 0 : index
    %18 = vector.load %arg1[%c3, %c0_22, %c0_23] : memref<4x384x32xf32, #tpu.memory_space<vmem>>, vector<1x384x32xf32>
    %19 = vector.shape_cast %18 : vector<1x384x32xf32> to vector<384x32xf32>
    %cst_24 = arith.constant dense<0.000000e+00> : vector<384x16xf32>
    %20 = tpu.matmul %19, %0, %cst_24 {dimension_numbers = #tpu.dot_dimension_numbers<[1], [0], [0], [1], [0, 0, 1, 1], [], []>} : vector<384x32xf32>, vector<32x16xf32>, vector<384x16xf32> -> vector<384x16xf32>
    %21 = arith.maximumf %17, %20 : vector<384x16xf32>
    %c0_25 = arith.constant 0 : index
    %c0_26 = arith.constant 0 : index
    %22 = vector.load %arg11[%c0_25, %c0_26] : memref<384x16xf32, #tpu.memory_space<vmem>>, vector<384x16xf32>
    tpu.vector_store %arg11[%c0_25, %c0_26], %21 {strides = array<i32>} : memref<384x16xf32, #tpu.memory_space<vmem>>, vector<384x16xf32>,
    %c0_27 = arith.constant 0 : index
    %c0_28 = arith.constant 0 : index
    %23 = vector.load %arg11[%c0_27, %c0_28] : memref<384x16xf32, #tpu.memory_space<vmem>>, vector<384x16xf32>
    %c0_29 = arith.constant 0 : index
    %c0_30 = arith.constant 0 : index
    %24 = vector.load %arg3[%c0_29, %c0_30] : memref<1x16xf32, #tpu.memory_space<vmem>>, vector<1x16xf32>
    %25 = vector.broadcast %24 : vector<1x16xf32> to vector<384x16xf32>
    %26 = arith.addf %23, %25 : vector<384x16xf32>
    %cst_31 = arith.constant 0.000000e+00 : f32
    %27 = vector.broadcast %cst_31 : f32 to vector<384x16xf32>
    %28 = arith.maximumf %26, %27 : vector<384x16xf32>
    %29 = vector.shape_cast %28 : vector<384x16xf32> to vector<2x12x16x16xf32>
    %c0_32 = arith.constant 0 : index
    %c0_33 = arith.constant 0 : index
    %c0_34 = arith.constant 0 : index
    %c0_35 = arith.constant 0 : index
    %30 = vector.load %arg12[%c0_32, %c0_33, %c0_34, %c0_35] : memref<2x12x16x16xf32, #tpu.memory_space<vmem>>, vector<2x12x16x16xf32>
    tpu.vector_store %arg12[%c0_32, %c0_33, %c0_34, %c0_35], %29 {strides = array<i32>} : memref<2x12x16x16xf32, #tpu.memory_space<vmem>>, vector<2x12x16x16xf32>,
    %c0_36 = arith.constant 0 : index
    %c0_37 = arith.constant 0 : index
    %c0_38 = arith.constant 0 : index
    %c0_39 = arith.constant 0 : index
    %31 = vector.load %arg12[%c0_36, %c0_37, %c0_38, %c0_39] : memref<2x12x16x16xf32, #tpu.memory_space<vmem>>, vector<2x8x8x16xf32>
    %c0_40 = arith.constant 0 : index
    %c0_41 = arith.constant 0 : index
    %c0_42 = arith.constant 0 : index
    %c0_43 = arith.constant 0 : index
    %32 = vector.load %arg13[%c0_40, %c0_41, %c0_42, %c0_43] : memref<2x8x8x400xf32, #tpu.memory_space<vmem>>, vector<2x8x8x16xf32>
    tpu.vector_store %arg13[%c0_40, %c0_41, %c0_42, %c0_43], %31 {strides = array<i32>} : memref<2x8x8x400xf32, #tpu.memory_space<vmem>>, vector<2x8x8x16xf32>,
    %c0_44 = arith.constant 0 : index
    %c0_45 = arith.constant 0 : index
    %c1_46 = arith.constant 1 : index
    %c0_47 = arith.constant 0 : index
    %33 = vector.load %arg12[%c0_44, %c0_45, %c1_46, %c0_47] : memref<2x12x16x16xf32, #tpu.memory_space<vmem>>, vector<2x8x8x16xf32>
    %c0_48 = arith.constant 0 : index
    %c0_49 = arith.constant 0 : index
    %c0_50 = arith.constant 0 : index
    %c16 = arith.constant 16 : index
    %34 = vector.load %arg13[%c0_48, %c0_49, %c0_50, %c16] : memref<2x8x8x400xf32, #tpu.memory_space<vmem>>, vector<2x8x8x16xf32>
    tpu.vector_store %arg13[%c0_48, %c0_49, %c0_50, %c16], %33 {strides = array<i32>} : memref<2x8x8x400xf32, #tpu.memory_space<vmem>>, vector<2x8x8x16xf32>,
    %c0_51 = arith.constant 0 : index
    %c0_52 = arith.constant 0 : index
    %c2_53 = arith.constant 2 : index
    %c0_54 = arith.constant 0 : index
    %35 = vector.load %arg12[%c0_51, %c0_52, %c2_53, %c0_54] : memref<2x12x16x16xf32, #tpu.memory_space<vmem>>, vector<2x8x8x16xf32>
    %c0_55 = arith.constant 0 : index
    %c0_56 = arith.constant 0 : index
    %c0_57 = arith.constant 0 : index
    %c32 = arith.constant 32 : index
    %36 = vector.load %arg13[%c0_55, %c0_56, %c0_57, %c32] : memref<2x8x8x400xf32, #tpu.memory_space<vmem>>, vector<2x8x8x16xf32>
    tpu.vector_store %arg13[%c0_55, %c0_56, %c0_57, %c32], %35 {strides = array<i32>} : memref<2x8x8x400xf32, #tpu.memory_space<vmem>>, vector<2x8x8x16xf32>,
    %c0_58 = arith.constant 0 : index
    %c0_59 = arith.constant 0 : index
    %c3_60 = arith.constant 3 : index
    %c0_61 = arith.constant 0 : index
    %37 = vector.load %arg12[%c0_58, %c0_59, %c3_60, %c0_61] : memref<2x12x16x16xf32, #tpu.memory_space<vmem>>, vector<2x8x8x16xf32>
    %c0_62 = arith.constant 0 : index
    %c0_63 = arith.constant 0 : index
    %c0_64 = arith.constant 0 : index
    %c48 = arith.constant 48 : index
    %38 = vector.load %arg13[%c0_62, %c0_63, %c0_64, %c48] : memref<2x8x8x400xf32, #tpu.memory_space<vmem>>, vector<2x8x8x16xf32>
    tpu.vector_store %arg13[%c0_62, %c0_63, %c0_64, %c48], %37 {strides = array<i32>} : memref<2x8x8x400xf32, #tpu.memory_space<vmem>>, vector<2x8x8x16xf32>,
    %c0_65 = arith.constant 0 : index
    %c0_66 = arith.constant 0 : index
    %c4 = arith.constant 4 : index
    %c0_67 = arith.constant 0 : index
    %39 = vector.load %arg12[%c0_65, %c0_66, %c4, %c0_67] : memref<2x12x16x16xf32, #tpu.memory_space<vmem>>, vector<2x8x8x16xf32>
    %c0_68 = arith.constant 0 : index
    %c0_69 = arith.constant 0 : index
    %c0_70 = arith.constant 0 : index
    %c64 = arith.constant 64 : index
    %40 = vector.load %arg13[%c0_68, %c0_69, %c0_70, %c64] : memref<2x8x8x400xf32, #tpu.memory_space<vmem>>, vector<2x8x8x16xf32>
    tpu.vector_store %arg13[%c0_68, %c0_69, %c0_70, %c64], %39 {strides = array<i32>} : memref<2x8x8x400xf32, #tpu.memory_space<vmem>>, vector<2x8x8x16xf32>,
    %c0_71 = arith.constant 0 : index
    %c1_72 = arith.constant 1 : index
    %c0_73 = arith.constant 0 : index
    %c0_74 = arith.constant 0 : index
    %41 = vector.load %arg12[%c0_71, %c1_72, %c0_73, %c0_74] : memref<2x12x16x16xf32, #tpu.memory_space<vmem>>, vector<2x8x8x16xf32>
    %c0_75 = arith.constant 0 : index
    %c0_76 = arith.constant 0 : index
    %c0_77 = arith.constant 0 : index
    %c80 = arith.constant 80 : index
    %42 = vector.load %arg13[%c0_75, %c0_76, %c0_77, %c80] : memref<2x8x8x400xf32, #tpu.memory_space<vmem>>, vector<2x8x8x16xf32>
    tpu.vector_store %arg13[%c0_75, %c0_76, %c0_77, %c80], %41 {strides = array<i32>} : memref<2x8x8x400xf32, #tpu.memory_space<vmem>>, vector<2x8x8x16xf32>,
    %c0_78 = arith.constant 0 : index
    %c1_79 = arith.constant 1 : index
    %c1_80 = arith.constant 1 : index
    %c0_81 = arith.constant 0 : index
    %43 = vector.load %arg12[%c0_78, %c1_79, %c1_80, %c0_81] : memref<2x12x16x16xf32, #tpu.memory_space<vmem>>, vector<2x8x8x16xf32>
    %c0_82 = arith.constant 0 : index
    %c0_83 = arith.constant 0 : index
    %c0_84 = arith.constant 0 : index
    %c96 = arith.constant 96 : index
    %44 = vector.load %arg13[%c0_82, %c0_83, %c0_84, %c96] : memref<2x8x8x400xf32, #tpu.memory_space<vmem>>, vector<2x8x8x16xf32>
    tpu.vector_store %arg13[%c0_82, %c0_83, %c0_84, %c96], %43 {strides = array<i32>} : memref<2x8x8x400xf32, #tpu.memory_space<vmem>>, vector<2x8x8x16xf32>,
    %c0_85 = arith.constant 0 : index
    %c1_86 = arith.constant 1 : index
    %c2_87 = arith.constant 2 : index
    %c0_88 = arith.constant 0 : index
    %45 = vector.load %arg12[%c0_85, %c1_86, %c2_87, %c0_88] : memref<2x12x16x16xf32, #tpu.memory_space<vmem>>, vector<2x8x8x16xf32>
    %c0_89 = arith.constant 0 : index
    %c0_90 = arith.constant 0 : index
    %c0_91 = arith.constant 0 : index
    %c112 = arith.constant 112 : index
    %46 = vector.load %arg13[%c0_89, %c0_90, %c0_91, %c112] : memref<2x8x8x400xf32, #tpu.memory_space<vmem>>, vector<2x8x8x16xf32>
    tpu.vector_store %arg13[%c0_89, %c0_90, %c0_91, %c112], %45 {strides = array<i32>} : memref<2x8x8x400xf32, #tpu.memory_space<vmem>>, vector<2x8x8x16xf32>,
    %c0_92 = arith.constant 0 : index
    %c1_93 = arith.constant 1 : index
    %c3_94 = arith.constant 3 : index
    %c0_95 = arith.constant 0 : index
    %47 = vector.load %arg12[%c0_92, %c1_93, %c3_94, %c0_95] : memref<2x12x16x16xf32, #tpu.memory_space<vmem>>, vector<2x8x8x16xf32>
    %c0_96 = arith.constant 0 : index
    %c0_97 = arith.constant 0 : index
    %c0_98 = arith.constant 0 : index
    %c128 = arith.constant 128 : index
    %48 = vector.load %arg13[%c0_96, %c0_97, %c0_98, %c128] : memref<2x8x8x400xf32, #tpu.memory_space<vmem>>, vector<2x8x8x16xf32>
    tpu.vector_store %arg13[%c0_96, %c0_97, %c0_98, %c128], %47 {strides = array<i32>} : memref<2x8x8x400xf32, #tpu.memory_space<vmem>>, vector<2x8x8x16xf32>,
    %c0_99 = arith.constant 0 : index
    %c1_100 = arith.constant 1 : index
    %c4_101 = arith.constant 4 : index
    %c0_102 = arith.constant 0 : index
    %49 = vector.load %arg12[%c0_99, %c1_100, %c4_101, %c0_102] : memref<2x12x16x16xf32, #tpu.memory_space<vmem>>, vector<2x8x8x16xf32>
    %c0_103 = arith.constant 0 : index
    %c0_104 = arith.constant 0 : index
    %c0_105 = arith.constant 0 : index
    %c144 = arith.constant 144 : index
    %50 = vector.load %arg13[%c0_103, %c0_104, %c0_105, %c144] : memref<2x8x8x400xf32, #tpu.memory_space<vmem>>, vector<2x8x8x16xf32>
    tpu.vector_store %arg13[%c0_103, %c0_104, %c0_105, %c144], %49 {strides = array<i32>} : memref<2x8x8x400xf32, #tpu.memory_space<vmem>>, vector<2x8x8x16xf32>,
    %c0_106 = arith.constant 0 : index
    %c2_107 = arith.constant 2 : index
    %c0_108 = arith.constant 0 : index
    %c0_109 = arith.constant 0 : index
    %51 = vector.load %arg12[%c0_106, %c2_107, %c0_108, %c0_109] : memref<2x12x16x16xf32, #tpu.memory_space<vmem>>, vector<2x8x8x16xf32>
    %c0_110 = arith.constant 0 : index
    %c0_111 = arith.constant 0 : index
    %c0_112 = arith.constant 0 : index
    %c160 = arith.constant 160 : index
    %52 = vector.load %arg13[%c0_110, %c0_111, %c0_112, %c160] : memref<2x8x8x400xf32, #tpu.memory_space<vmem>>, vector<2x8x8x16xf32>
    tpu.vector_store %arg13[%c0_110, %c0_111, %c0_112, %c160], %51 {strides = array<i32>} : memref<2x8x8x400xf32, #tpu.memory_space<vmem>>, vector<2x8x8x16xf32>,
    %c0_113 = arith.constant 0 : index
    %c2_114 = arith.constant 2 : index
    %c1_115 = arith.constant 1 : index
    %c0_116 = arith.constant 0 : index
    %53 = vector.load %arg12[%c0_113, %c2_114, %c1_115, %c0_116] : memref<2x12x16x16xf32, #tpu.memory_space<vmem>>, vector<2x8x8x16xf32>
    %c0_117 = arith.constant 0 : index
    %c0_118 = arith.constant 0 : index
    %c0_119 = arith.constant 0 : index
    %c176 = arith.constant 176 : index
    %54 = vector.load %arg13[%c0_117, %c0_118, %c0_119, %c176] : memref<2x8x8x400xf32, #tpu.memory_space<vmem>>, vector<2x8x8x16xf32>
    tpu.vector_store %arg13[%c0_117, %c0_118, %c0_119, %c176], %53 {strides = array<i32>} : memref<2x8x8x400xf32, #tpu.memory_space<vmem>>, vector<2x8x8x16xf32>,
    %c0_120 = arith.constant 0 : index
    %c2_121 = arith.constant 2 : index
    %c2_122 = arith.constant 2 : index
    %c0_123 = arith.constant 0 : index
    %55 = vector.load %arg12[%c0_120, %c2_121, %c2_122, %c0_123] : memref<2x12x16x16xf32, #tpu.memory_space<vmem>>, vector<2x8x8x16xf32>
    %c0_124 = arith.constant 0 : index
    %c0_125 = arith.constant 0 : index
    %c0_126 = arith.constant 0 : index
    %c192 = arith.constant 192 : index
    %56 = vector.load %arg13[%c0_124, %c0_125, %c0_126, %c192] : memref<2x8x8x400xf32, #tpu.memory_space<vmem>>, vector<2x8x8x16xf32>
    tpu.vector_store %arg13[%c0_124, %c0_125, %c0_126, %c192], %55 {strides = array<i32>} : memref<2x8x8x400xf32, #tpu.memory_space<vmem>>, vector<2x8x8x16xf32>,
    %c0_127 = arith.constant 0 : index
    %c2_128 = arith.constant 2 : index
    %c3_129 = arith.constant 3 : index
    %c0_130 = arith.constant 0 : index
    %57 = vector.load %arg12[%c0_127, %c2_128, %c3_129, %c0_130] : memref<2x12x16x16xf32, #tpu.memory_space<vmem>>, vector<2x8x8x16xf32>
    %c0_131 = arith.constant 0 : index
    %c0_132 = arith.constant 0 : index
    %c0_133 = arith.constant 0 : index
    %c208 = arith.constant 208 : index
    %58 = vector.load %arg13[%c0_131, %c0_132, %c0_133, %c208] : memref<2x8x8x400xf32, #tpu.memory_space<vmem>>, vector<2x8x8x16xf32>
    tpu.vector_store %arg13[%c0_131, %c0_132, %c0_133, %c208], %57 {strides = array<i32>} : memref<2x8x8x400xf32, #tpu.memory_space<vmem>>, vector<2x8x8x16xf32>,
    %c0_134 = arith.constant 0 : index
    %c2_135 = arith.constant 2 : index
    %c4_136 = arith.constant 4 : index
    %c0_137 = arith.constant 0 : index
    %59 = vector.load %arg12[%c0_134, %c2_135, %c4_136, %c0_137] : memref<2x12x16x16xf32, #tpu.memory_space<vmem>>, vector<2x8x8x16xf32>
    %c0_138 = arith.constant 0 : index
    %c0_139 = arith.constant 0 : index
    %c0_140 = arith.constant 0 : index
    %c224 = arith.constant 224 : index
    %60 = vector.load %arg13[%c0_138, %c0_139, %c0_140, %c224] : memref<2x8x8x400xf32, #tpu.memory_space<vmem>>, vector<2x8x8x16xf32>
    tpu.vector_store %arg13[%c0_138, %c0_139, %c0_140, %c224], %59 {strides = array<i32>} : memref<2x8x8x400xf32, #tpu.memory_space<vmem>>, vector<2x8x8x16xf32>,
    %c0_141 = arith.constant 0 : index
    %c3_142 = arith.constant 3 : index
    %c0_143 = arith.constant 0 : index
    %c0_144 = arith.constant 0 : index
    %61 = vector.load %arg12[%c0_141, %c3_142, %c0_143, %c0_144] : memref<2x12x16x16xf32, #tpu.memory_space<vmem>>, vector<2x8x8x16xf32>
    %c0_145 = arith.constant 0 : index
    %c0_146 = arith.constant 0 : index
    %c0_147 = arith.constant 0 : index
    %c240 = arith.constant 240 : index
    %62 = vector.load %arg13[%c0_145, %c0_146, %c0_147, %c240] : memref<2x8x8x400xf32, #tpu.memory_space<vmem>>, vector<2x8x8x16xf32>
    tpu.vector_store %arg13[%c0_145, %c0_146, %c0_147, %c240], %61 {strides = array<i32>} : memref<2x8x8x400xf32, #tpu.memory_space<vmem>>, vector<2x8x8x16xf32>,
    %c0_148 = arith.constant 0 : index
    %c3_149 = arith.constant 3 : index
    %c1_150 = arith.constant 1 : index
    %c0_151 = arith.constant 0 : index
    %63 = vector.load %arg12[%c0_148, %c3_149, %c1_150, %c0_151] : memref<2x12x16x16xf32, #tpu.memory_space<vmem>>, vector<2x8x8x16xf32>
    %c0_152 = arith.constant 0 : index
    %c0_153 = arith.constant 0 : index
    %c0_154 = arith.constant 0 : index
    %c256 = arith.constant 256 : index
    %64 = vector.load %arg13[%c0_152, %c0_153, %c0_154, %c256] : memref<2x8x8x400xf32, #tpu.memory_space<vmem>>, vector<2x8x8x16xf32>
    tpu.vector_store %arg13[%c0_152, %c0_153, %c0_154, %c256], %63 {strides = array<i32>} : memref<2x8x8x400xf32, #tpu.memory_space<vmem>>, vector<2x8x8x16xf32>,
    %c0_155 = arith.constant 0 : index
    %c3_156 = arith.constant 3 : index
    %c2_157 = arith.constant 2 : index
    %c0_158 = arith.constant 0 : index
    %65 = vector.load %arg12[%c0_155, %c3_156, %c2_157, %c0_158] : memref<2x12x16x16xf32, #tpu.memory_space<vmem>>, vector<2x8x8x16xf32>
    %c0_159 = arith.constant 0 : index
    %c0_160 = arith.constant 0 : index
    %c0_161 = arith.constant 0 : index
    %c272 = arith.constant 272 : index
    %66 = vector.load %arg13[%c0_159, %c0_160, %c0_161, %c272] : memref<2x8x8x400xf32, #tpu.memory_space<vmem>>, vector<2x8x8x16xf32>
    tpu.vector_store %arg13[%c0_159, %c0_160, %c0_161, %c272], %65 {strides = array<i32>} : memref<2x8x8x400xf32, #tpu.memory_space<vmem>>, vector<2x8x8x16xf32>,
    %c0_162 = arith.constant 0 : index
    %c3_163 = arith.constant 3 : index
    %c3_164 = arith.constant 3 : index
    %c0_165 = arith.constant 0 : index
    %67 = vector.load %arg12[%c0_162, %c3_163, %c3_164, %c0_165] : memref<2x12x16x16xf32, #tpu.memory_space<vmem>>, vector<2x8x8x16xf32>
    %c0_166 = arith.constant 0 : index
    %c0_167 = arith.constant 0 : index
    %c0_168 = arith.constant 0 : index
    %c288 = arith.constant 288 : index
    %68 = vector.load %arg13[%c0_166, %c0_167, %c0_168, %c288] : memref<2x8x8x400xf32, #tpu.memory_space<vmem>>, vector<2x8x8x16xf32>
    tpu.vector_store %arg13[%c0_166, %c0_167, %c0_168, %c288], %67 {strides = array<i32>} : memref<2x8x8x400xf32, #tpu.memory_space<vmem>>, vector<2x8x8x16xf32>,
    %c0_169 = arith.constant 0 : index
    %c3_170 = arith.constant 3 : index
    %c4_171 = arith.constant 4 : index
    %c0_172 = arith.constant 0 : index
    %69 = vector.load %arg12[%c0_169, %c3_170, %c4_171, %c0_172] : memref<2x12x16x16xf32, #tpu.memory_space<vmem>>, vector<2x8x8x16xf32>
    %c0_173 = arith.constant 0 : index
    %c0_174 = arith.constant 0 : index
    %c0_175 = arith.constant 0 : index
    %c304 = arith.constant 304 : index
    %70 = vector.load %arg13[%c0_173, %c0_174, %c0_175, %c304] : memref<2x8x8x400xf32, #tpu.memory_space<vmem>>, vector<2x8x8x16xf32>
    tpu.vector_store %arg13[%c0_173, %c0_174, %c0_175, %c304], %69 {strides = array<i32>} : memref<2x8x8x400xf32, #tpu.memory_space<vmem>>, vector<2x8x8x16xf32>,
    %c0_176 = arith.constant 0 : index
    %c4_177 = arith.constant 4 : index
    %c0_178 = arith.constant 0 : index
    %c0_179 = arith.constant 0 : index
    %71 = vector.load %arg12[%c0_176, %c4_177, %c0_178, %c0_179] : memref<2x12x16x16xf32, #tpu.memory_space<vmem>>, vector<2x8x8x16xf32>
    %c0_180 = arith.constant 0 : index
    %c0_181 = arith.constant 0 : index
    %c0_182 = arith.constant 0 : index
    %c320 = arith.constant 320 : index
    %72 = vector.load %arg13[%c0_180, %c0_181, %c0_182, %c320] : memref<2x8x8x400xf32, #tpu.memory_space<vmem>>, vector<2x8x8x16xf32>
    tpu.vector_store %arg13[%c0_180, %c0_181, %c0_182, %c320], %71 {strides = array<i32>} : memref<2x8x8x400xf32, #tpu.memory_space<vmem>>, vector<2x8x8x16xf32>,
    %c0_183 = arith.constant 0 : index
    %c4_184 = arith.constant 4 : index
    %c1_185 = arith.constant 1 : index
    %c0_186 = arith.constant 0 : index
    %73 = vector.load %arg12[%c0_183, %c4_184, %c1_185, %c0_186] : memref<2x12x16x16xf32, #tpu.memory_space<vmem>>, vector<2x8x8x16xf32>
    %c0_187 = arith.constant 0 : index
    %c0_188 = arith.constant 0 : index
    %c0_189 = arith.constant 0 : index
    %c336 = arith.constant 336 : index
    %74 = vector.load %arg13[%c0_187, %c0_188, %c0_189, %c336] : memref<2x8x8x400xf32, #tpu.memory_space<vmem>>, vector<2x8x8x16xf32>
    tpu.vector_store %arg13[%c0_187, %c0_188, %c0_189, %c336], %73 {strides = array<i32>} : memref<2x8x8x400xf32, #tpu.memory_space<vmem>>, vector<2x8x8x16xf32>,
    %c0_190 = arith.constant 0 : index
    %c4_191 = arith.constant 4 : index
    %c2_192 = arith.constant 2 : index
    %c0_193 = arith.constant 0 : index
    %75 = vector.load %arg12[%c0_190, %c4_191, %c2_192, %c0_193] : memref<2x12x16x16xf32, #tpu.memory_space<vmem>>, vector<2x8x8x16xf32>
    %c0_194 = arith.constant 0 : index
    %c0_195 = arith.constant 0 : index
    %c0_196 = arith.constant 0 : index
    %c352 = arith.constant 352 : index
    %76 = vector.load %arg13[%c0_194, %c0_195, %c0_196, %c352] : memref<2x8x8x400xf32, #tpu.memory_space<vmem>>, vector<2x8x8x16xf32>
    tpu.vector_store %arg13[%c0_194, %c0_195, %c0_196, %c352], %75 {strides = array<i32>} : memref<2x8x8x400xf32, #tpu.memory_space<vmem>>, vector<2x8x8x16xf32>,
    %c0_197 = arith.constant 0 : index
    %c4_198 = arith.constant 4 : index
    %c3_199 = arith.constant 3 : index
    %c0_200 = arith.constant 0 : index
    %77 = vector.load %arg12[%c0_197, %c4_198, %c3_199, %c0_200] : memref<2x12x16x16xf32, #tpu.memory_space<vmem>>, vector<2x8x8x16xf32>
    %c0_201 = arith.constant 0 : index
    %c0_202 = arith.constant 0 : index
    %c0_203 = arith.constant 0 : index
    %c368 = arith.constant 368 : index
    %78 = vector.load %arg13[%c0_201, %c0_202, %c0_203, %c368] : memref<2x8x8x400xf32, #tpu.memory_space<vmem>>, vector<2x8x8x16xf32>
    tpu.vector_store %arg13[%c0_201, %c0_202, %c0_203, %c368], %77 {strides = array<i32>} : memref<2x8x8x400xf32, #tpu.memory_space<vmem>>, vector<2x8x8x16xf32>,
    %c0_204 = arith.constant 0 : index
    %c4_205 = arith.constant 4 : index
    %c4_206 = arith.constant 4 : index
    %c0_207 = arith.constant 0 : index
    %79 = vector.load %arg12[%c0_204, %c4_205, %c4_206, %c0_207] : memref<2x12x16x16xf32, #tpu.memory_space<vmem>>, vector<2x8x8x16xf32>
    %c0_208 = arith.constant 0 : index
    %c0_209 = arith.constant 0 : index
    %c0_210 = arith.constant 0 : index
    %c384 = arith.constant 384 : index
    %80 = vector.load %arg13[%c0_208, %c0_209, %c0_210, %c384] : memref<2x8x8x400xf32, #tpu.memory_space<vmem>>, vector<2x8x8x16xf32>
    tpu.vector_store %arg13[%c0_208, %c0_209, %c0_210, %c384], %79 {strides = array<i32>} : memref<2x8x8x400xf32, #tpu.memory_space<vmem>>, vector<2x8x8x16xf32>,
    %c0_211 = arith.constant 0 : index
    %c0_212 = arith.constant 0 : index
    %c0_213 = arith.constant 0 : index
    %c0_214 = arith.constant 0 : index
    %81 = vector.load %arg13[%c0_211, %c0_212, %c0_213, %c0_214] : memref<2x8x8x400xf32, #tpu.memory_space<vmem>>, vector<2x8x8x400xf32>
    %82 = vector.shape_cast %81 : vector<2x8x8x400xf32> to vector<128x400xf32>
    %c0_215 = arith.constant 0 : index
    %c0_216 = arith.constant 0 : index
    %83 = vector.load %arg4[%c0_215, %c0_216] : memref<400x128xf32, #tpu.memory_space<vmem>>, vector<400x128xf32>
    %cst_217 = arith.constant dense<0.000000e+00> : vector<128x128xf32>
    %84 = tpu.matmul %82, %83, %cst_217 {dimension_numbers = #tpu.dot_dimension_numbers<[1], [0], [0], [1], [0, 0, 1, 1], [], []>} : vector<128x400xf32>, vector<400x128xf32>, vector<128x128xf32> -> vector<128x128xf32>
    %c0_218 = arith.constant 0 : index
    %c0_219 = arith.constant 0 : index
    %85 = vector.load %arg5[%c0_218, %c0_219] : memref<1x128xf32, #tpu.memory_space<vmem>>, vector<1x128xf32>
    %86 = vector.broadcast %85 : vector<1x128xf32> to vector<128x128xf32>
    %87 = arith.addf %84, %86 : vector<128x128xf32>
    %cst_220 = arith.constant 0.000000e+00 : f32
    %88 = vector.broadcast %cst_220 : f32 to vector<128x128xf32>
    %89 = arith.maximumf %87, %88 : vector<128x128xf32>
    %90 = vector.shape_cast %89 : vector<128x128xf32> to vector<2x8x8x128xf32>
    %91 = vector.extract_strided_slice %90 {offsets = [0, 0, 0, 0], sizes = [2, 1, 1, 32], strides = [1, 1, 1, 1]} : vector<2x8x8x128xf32> to vector<2x1x1x32xf32>
    %92 = vector.shape_cast %91 : vector<2x1x1x32xf32> to vector<2x32xf32>
    %93 = vector.extract_strided_slice %90 {offsets = [0, 0, 1, 0], sizes = [2, 1, 1, 32], strides = [1, 1, 1, 1]} : vector<2x8x8x128xf32> to vector<2x1x1x32xf32>
    %94 = vector.shape_cast %93 : vector<2x1x1x32xf32> to vector<2x32xf32>
    %95 = arith.maximumf %92, %94 : vector<2x32xf32>
    %96 = vector.extract_strided_slice %90 {offsets = [0, 1, 0, 0], sizes = [2, 1, 1, 32], strides = [1, 1, 1, 1]} : vector<2x8x8x128xf32> to vector<2x1x1x32xf32>
    %97 = vector.shape_cast %96 : vector<2x1x1x32xf32> to vector<2x32xf32>
    %98 = vector.extract_strided_slice %90 {offsets = [0, 1, 1, 0], sizes = [2, 1, 1, 32], strides = [1, 1, 1, 1]} : vector<2x8x8x128xf32> to vector<2x1x1x32xf32>
    %99 = vector.shape_cast %98 : vector<2x1x1x32xf32> to vector<2x32xf32>
    %100 = arith.maximumf %97, %99 : vector<2x32xf32>
    %101 = arith.maximumf %95, %100 : vector<2x32xf32>
    %c0_221 = arith.constant 0 : index
    %c0_222 = arith.constant 0 : index
    %102 = vector.load %arg14[%c0_221, %c0_222] : memref<2x512xf32, #tpu.memory_space<vmem>>, vector<2x32xf32>
    tpu.vector_store %arg14[%c0_221, %c0_222], %101 {strides = array<i32>} : memref<2x512xf32, #tpu.memory_space<vmem>>, vector<2x32xf32>,
    %103 = vector.extract_strided_slice %90 {offsets = [0, 0, 2, 0], sizes = [2, 1, 1, 32], strides = [1, 1, 1, 1]} : vector<2x8x8x128xf32> to vector<2x1x1x32xf32>
    %104 = vector.shape_cast %103 : vector<2x1x1x32xf32> to vector<2x32xf32>
    %105 = vector.extract_strided_slice %90 {offsets = [0, 0, 3, 0], sizes = [2, 1, 1, 32], strides = [1, 1, 1, 1]} : vector<2x8x8x128xf32> to vector<2x1x1x32xf32>
    %106 = vector.shape_cast %105 : vector<2x1x1x32xf32> to vector<2x32xf32>
    %107 = arith.maximumf %104, %106 : vector<2x32xf32>
    %108 = vector.extract_strided_slice %90 {offsets = [0, 1, 2, 0], sizes = [2, 1, 1, 32], strides = [1, 1, 1, 1]} : vector<2x8x8x128xf32> to vector<2x1x1x32xf32>
    %109 = vector.shape_cast %108 : vector<2x1x1x32xf32> to vector<2x32xf32>
    %110 = vector.extract_strided_slice %90 {offsets = [0, 1, 3, 0], sizes = [2, 1, 1, 32], strides = [1, 1, 1, 1]} : vector<2x8x8x128xf32> to vector<2x1x1x32xf32>
    %111 = vector.shape_cast %110 : vector<2x1x1x32xf32> to vector<2x32xf32>
    %112 = arith.maximumf %109, %111 : vector<2x32xf32>
    %113 = arith.maximumf %107, %112 : vector<2x32xf32>
    %c0_223 = arith.constant 0 : index
    %c32_224 = arith.constant 32 : index
    %114 = vector.load %arg14[%c0_223, %c32_224] : memref<2x512xf32, #tpu.memory_space<vmem>>, vector<2x32xf32>
    tpu.vector_store %arg14[%c0_223, %c32_224], %113 {strides = array<i32>} : memref<2x512xf32, #tpu.memory_space<vmem>>, vector<2x32xf32>,
    %115 = vector.extract_strided_slice %90 {offsets = [0, 0, 4, 0], sizes = [2, 1, 1, 32], strides = [1, 1, 1, 1]} : vector<2x8x8x128xf32> to vector<2x1x1x32xf32>
    %116 = vector.shape_cast %115 : vector<2x1x1x32xf32> to vector<2x32xf32>
    %117 = vector.extract_strided_slice %90 {offsets = [0, 0, 5, 0], sizes = [2, 1, 1, 32], strides = [1, 1, 1, 1]} : vector<2x8x8x128xf32> to vector<2x1x1x32xf32>
    %118 = vector.shape_cast %117 : vector<2x1x1x32xf32> to vector<2x32xf32>
    %119 = arith.maximumf %116, %118 : vector<2x32xf32>
    %120 = vector.extract_strided_slice %90 {offsets = [0, 1, 4, 0], sizes = [2, 1, 1, 32], strides = [1, 1, 1, 1]} : vector<2x8x8x128xf32> to vector<2x1x1x32xf32>
    %121 = vector.shape_cast %120 : vector<2x1x1x32xf32> to vector<2x32xf32>
    %122 = vector.extract_strided_slice %90 {offsets = [0, 1, 5, 0], sizes = [2, 1, 1, 32], strides = [1, 1, 1, 1]} : vector<2x8x8x128xf32> to vector<2x1x1x32xf32>
    %123 = vector.shape_cast %122 : vector<2x1x1x32xf32> to vector<2x32xf32>
    %124 = arith.maximumf %121, %123 : vector<2x32xf32>
    %125 = arith.maximumf %119, %124 : vector<2x32xf32>
    %c0_225 = arith.constant 0 : index
    %c64_226 = arith.constant 64 : index
    %126 = vector.load %arg14[%c0_225, %c64_226] : memref<2x512xf32, #tpu.memory_space<vmem>>, vector<2x32xf32>
    tpu.vector_store %arg14[%c0_225, %c64_226], %125 {strides = array<i32>} : memref<2x512xf32, #tpu.memory_space<vmem>>, vector<2x32xf32>,
    %127 = vector.extract_strided_slice %90 {offsets = [0, 0, 6, 0], sizes = [2, 1, 1, 32], strides = [1, 1, 1, 1]} : vector<2x8x8x128xf32> to vector<2x1x1x32xf32>
    %128 = vector.shape_cast %127 : vector<2x1x1x32xf32> to vector<2x32xf32>
    %129 = vector.extract_strided_slice %90 {offsets = [0, 0, 7, 0], sizes = [2, 1, 1, 32], strides = [1, 1, 1, 1]} : vector<2x8x8x128xf32> to vector<2x1x1x32xf32>
    %130 = vector.shape_cast %129 : vector<2x1x1x32xf32> to vector<2x32xf32>
    %131 = arith.maximumf %128, %130 : vector<2x32xf32>
    %132 = vector.extract_strided_slice %90 {offsets = [0, 1, 6, 0], sizes = [2, 1, 1, 32], strides = [1, 1, 1, 1]} : vector<2x8x8x128xf32> to vector<2x1x1x32xf32>
    %133 = vector.shape_cast %132 : vector<2x1x1x32xf32> to vector<2x32xf32>
    %134 = vector.extract_strided_slice %90 {offsets = [0, 1, 7, 0], sizes = [2, 1, 1, 32], strides = [1, 1, 1, 1]} : vector<2x8x8x128xf32> to vector<2x1x1x32xf32>
    %135 = vector.shape_cast %134 : vector<2x1x1x32xf32> to vector<2x32xf32>
    %136 = arith.maximumf %133, %135 : vector<2x32xf32>
    %137 = arith.maximumf %131, %136 : vector<2x32xf32>
    %c0_227 = arith.constant 0 : index
    %c96_228 = arith.constant 96 : index
    %138 = vector.load %arg14[%c0_227, %c96_228] : memref<2x512xf32, #tpu.memory_space<vmem>>, vector<2x32xf32>
    tpu.vector_store %arg14[%c0_227, %c96_228], %137 {strides = array<i32>} : memref<2x512xf32, #tpu.memory_space<vmem>>, vector<2x32xf32>,
    %139 = vector.extract_strided_slice %90 {offsets = [0, 2, 0, 0], sizes = [2, 1, 1, 32], strides = [1, 1, 1, 1]} : vector<2x8x8x128xf32> to vector<2x1x1x32xf32>
    %140 = vector.shape_cast %139 : vector<2x1x1x32xf32> to vector<2x32xf32>
    %141 = vector.extract_strided_slice %90 {offsets = [0, 2, 1, 0], sizes = [2, 1, 1, 32], strides = [1, 1, 1, 1]} : vector<2x8x8x128xf32> to vector<2x1x1x32xf32>
    %142 = vector.shape_cast %141 : vector<2x1x1x32xf32> to vector<2x32xf32>
    %143 = arith.maximumf %140, %142 : vector<2x32xf32>
    %144 = vector.extract_strided_slice %90 {offsets = [0, 3, 0, 0], sizes = [2, 1, 1, 32], strides = [1, 1, 1, 1]} : vector<2x8x8x128xf32> to vector<2x1x1x32xf32>
    %145 = vector.shape_cast %144 : vector<2x1x1x32xf32> to vector<2x32xf32>
    %146 = vector.extract_strided_slice %90 {offsets = [0, 3, 1, 0], sizes = [2, 1, 1, 32], strides = [1, 1, 1, 1]} : vector<2x8x8x128xf32> to vector<2x1x1x32xf32>
    %147 = vector.shape_cast %146 : vector<2x1x1x32xf32> to vector<2x32xf32>
    %148 = arith.maximumf %145, %147 : vector<2x32xf32>
    %149 = arith.maximumf %143, %148 : vector<2x32xf32>
    %c0_229 = arith.constant 0 : index
    %c128_230 = arith.constant 128 : index
    %150 = vector.load %arg14[%c0_229, %c128_230] : memref<2x512xf32, #tpu.memory_space<vmem>>, vector<2x32xf32>
    tpu.vector_store %arg14[%c0_229, %c128_230], %149 {strides = array<i32>} : memref<2x512xf32, #tpu.memory_space<vmem>>, vector<2x32xf32>,
    %151 = vector.extract_strided_slice %90 {offsets = [0, 2, 2, 0], sizes = [2, 1, 1, 32], strides = [1, 1, 1, 1]} : vector<2x8x8x128xf32> to vector<2x1x1x32xf32>
    %152 = vector.shape_cast %151 : vector<2x1x1x32xf32> to vector<2x32xf32>
    %153 = vector.extract_strided_slice %90 {offsets = [0, 2, 3, 0], sizes = [2, 1, 1, 32], strides = [1, 1, 1, 1]} : vector<2x8x8x128xf32> to vector<2x1x1x32xf32>
    %154 = vector.shape_cast %153 : vector<2x1x1x32xf32> to vector<2x32xf32>
    %155 = arith.maximumf %152, %154 : vector<2x32xf32>
    %156 = vector.extract_strided_slice %90 {offsets = [0, 3, 2, 0], sizes = [2, 1, 1, 32], strides = [1, 1, 1, 1]} : vector<2x8x8x128xf32> to vector<2x1x1x32xf32>
    %157 = vector.shape_cast %156 : vector<2x1x1x32xf32> to vector<2x32xf32>
    %158 = vector.extract_strided_slice %90 {offsets = [0, 3, 3, 0], sizes = [2, 1, 1, 32], strides = [1, 1, 1, 1]} : vector<2x8x8x128xf32> to vector<2x1x1x32xf32>
    %159 = vector.shape_cast %158 : vector<2x1x1x32xf32> to vector<2x32xf32>
    %160 = arith.maximumf %157, %159 : vector<2x32xf32>
    %161 = arith.maximumf %155, %160 : vector<2x32xf32>
    %c0_231 = arith.constant 0 : index
    %c160_232 = arith.constant 160 : index
    %162 = vector.load %arg14[%c0_231, %c160_232] : memref<2x512xf32, #tpu.memory_space<vmem>>, vector<2x32xf32>
    tpu.vector_store %arg14[%c0_231, %c160_232], %161 {strides = array<i32>} : memref<2x512xf32, #tpu.memory_space<vmem>>, vector<2x32xf32>,
    %163 = vector.extract_strided_slice %90 {offsets = [0, 2, 4, 0], sizes = [2, 1, 1, 32], strides = [1, 1, 1, 1]} : vector<2x8x8x128xf32> to vector<2x1x1x32xf32>
    %164 = vector.shape_cast %163 : vector<2x1x1x32xf32> to vector<2x32xf32>
    %165 = vector.extract_strided_slice %90 {offsets = [0, 2, 5, 0], sizes = [2, 1, 1, 32], strides = [1, 1, 1, 1]} : vector<2x8x8x128xf32> to vector<2x1x1x32xf32>
    %166 = vector.shape_cast %165 : vector<2x1x1x32xf32> to vector<2x32xf32>
    %167 = arith.maximumf %164, %166 : vector<2x32xf32>
    %168 = vector.extract_strided_slice %90 {offsets = [0, 3, 4, 0], sizes = [2, 1, 1, 32], strides = [1, 1, 1, 1]} : vector<2x8x8x128xf32> to vector<2x1x1x32xf32>
    %169 = vector.shape_cast %168 : vector<2x1x1x32xf32> to vector<2x32xf32>
    %170 = vector.extract_strided_slice %90 {offsets = [0, 3, 5, 0], sizes = [2, 1, 1, 32], strides = [1, 1, 1, 1]} : vector<2x8x8x128xf32> to vector<2x1x1x32xf32>
    %171 = vector.shape_cast %170 : vector<2x1x1x32xf32> to vector<2x32xf32>
    %172 = arith.maximumf %169, %171 : vector<2x32xf32>
    %173 = arith.maximumf %167, %172 : vector<2x32xf32>
    %c0_233 = arith.constant 0 : index
    %c192_234 = arith.constant 192 : index
    %174 = vector.load %arg14[%c0_233, %c192_234] : memref<2x512xf32, #tpu.memory_space<vmem>>, vector<2x32xf32>
    tpu.vector_store %arg14[%c0_233, %c192_234], %173 {strides = array<i32>} : memref<2x512xf32, #tpu.memory_space<vmem>>, vector<2x32xf32>,
    %175 = vector.extract_strided_slice %90 {offsets = [0, 2, 6, 0], sizes = [2, 1, 1, 32], strides = [1, 1, 1, 1]} : vector<2x8x8x128xf32> to vector<2x1x1x32xf32>
    %176 = vector.shape_cast %175 : vector<2x1x1x32xf32> to vector<2x32xf32>
    %177 = vector.extract_strided_slice %90 {offsets = [0, 2, 7, 0], sizes = [2, 1, 1, 32], strides = [1, 1, 1, 1]} : vector<2x8x8x128xf32> to vector<2x1x1x32xf32>
    %178 = vector.shape_cast %177 : vector<2x1x1x32xf32> to vector<2x32xf32>
    %179 = arith.maximumf %176, %178 : vector<2x32xf32>
    %180 = vector.extract_strided_slice %90 {offsets = [0, 3, 6, 0], sizes = [2, 1, 1, 32], strides = [1, 1, 1, 1]} : vector<2x8x8x128xf32> to vector<2x1x1x32xf32>
    %181 = vector.shape_cast %180 : vector<2x1x1x32xf32> to vector<2x32xf32>
    %182 = vector.extract_strided_slice %90 {offsets = [0, 3, 7, 0], sizes = [2, 1, 1, 32], strides = [1, 1, 1, 1]} : vector<2x8x8x128xf32> to vector<2x1x1x32xf32>
    %183 = vector.shape_cast %182 : vector<2x1x1x32xf32> to vector<2x32xf32>
    %184 = arith.maximumf %181, %183 : vector<2x32xf32>
    %185 = arith.maximumf %179, %184 : vector<2x32xf32>
    %c0_235 = arith.constant 0 : index
    %c224_236 = arith.constant 224 : index
    %186 = vector.load %arg14[%c0_235, %c224_236] : memref<2x512xf32, #tpu.memory_space<vmem>>, vector<2x32xf32>
    tpu.vector_store %arg14[%c0_235, %c224_236], %185 {strides = array<i32>} : memref<2x512xf32, #tpu.memory_space<vmem>>, vector<2x32xf32>,
    %187 = vector.extract_strided_slice %90 {offsets = [0, 4, 0, 0], sizes = [2, 1, 1, 32], strides = [1, 1, 1, 1]} : vector<2x8x8x128xf32> to vector<2x1x1x32xf32>
    %188 = vector.shape_cast %187 : vector<2x1x1x32xf32> to vector<2x32xf32>
    %189 = vector.extract_strided_slice %90 {offsets = [0, 4, 1, 0], sizes = [2, 1, 1, 32], strides = [1, 1, 1, 1]} : vector<2x8x8x128xf32> to vector<2x1x1x32xf32>
    %190 = vector.shape_cast %189 : vector<2x1x1x32xf32> to vector<2x32xf32>
    %191 = arith.maximumf %188, %190 : vector<2x32xf32>
    %192 = vector.extract_strided_slice %90 {offsets = [0, 5, 0, 0], sizes = [2, 1, 1, 32], strides = [1, 1, 1, 1]} : vector<2x8x8x128xf32> to vector<2x1x1x32xf32>
    %193 = vector.shape_cast %192 : vector<2x1x1x32xf32> to vector<2x32xf32>
    %194 = vector.extract_strided_slice %90 {offsets = [0, 5, 1, 0], sizes = [2, 1, 1, 32], strides = [1, 1, 1, 1]} : vector<2x8x8x128xf32> to vector<2x1x1x32xf32>
    %195 = vector.shape_cast %194 : vector<2x1x1x32xf32> to vector<2x32xf32>
    %196 = arith.maximumf %193, %195 : vector<2x32xf32>
    %197 = arith.maximumf %191, %196 : vector<2x32xf32>
    %c0_237 = arith.constant 0 : index
    %c256_238 = arith.constant 256 : index
    %198 = vector.load %arg14[%c0_237, %c256_238] : memref<2x512xf32, #tpu.memory_space<vmem>>, vector<2x32xf32>
    tpu.vector_store %arg14[%c0_237, %c256_238], %197 {strides = array<i32>} : memref<2x512xf32, #tpu.memory_space<vmem>>, vector<2x32xf32>,
    %199 = vector.extract_strided_slice %90 {offsets = [0, 4, 2, 0], sizes = [2, 1, 1, 32], strides = [1, 1, 1, 1]} : vector<2x8x8x128xf32> to vector<2x1x1x32xf32>
    %200 = vector.shape_cast %199 : vector<2x1x1x32xf32> to vector<2x32xf32>
    %201 = vector.extract_strided_slice %90 {offsets = [0, 4, 3, 0], sizes = [2, 1, 1, 32], strides = [1, 1, 1, 1]} : vector<2x8x8x128xf32> to vector<2x1x1x32xf32>
    %202 = vector.shape_cast %201 : vector<2x1x1x32xf32> to vector<2x32xf32>
    %203 = arith.maximumf %200, %202 : vector<2x32xf32>
    %204 = vector.extract_strided_slice %90 {offsets = [0, 5, 2, 0], sizes = [2, 1, 1, 32], strides = [1, 1, 1, 1]} : vector<2x8x8x128xf32> to vector<2x1x1x32xf32>
    %205 = vector.shape_cast %204 : vector<2x1x1x32xf32> to vector<2x32xf32>
    %206 = vector.extract_strided_slice %90 {offsets = [0, 5, 3, 0], sizes = [2, 1, 1, 32], strides = [1, 1, 1, 1]} : vector<2x8x8x128xf32> to vector<2x1x1x32xf32>
    %207 = vector.shape_cast %206 : vector<2x1x1x32xf32> to vector<2x32xf32>
    %208 = arith.maximumf %205, %207 : vector<2x32xf32>
    %209 = arith.maximumf %203, %208 : vector<2x32xf32>
    %c0_239 = arith.constant 0 : index
    %c288_240 = arith.constant 288 : index
    %210 = vector.load %arg14[%c0_239, %c288_240] : memref<2x512xf32, #tpu.memory_space<vmem>>, vector<2x32xf32>
    tpu.vector_store %arg14[%c0_239, %c288_240], %209 {strides = array<i32>} : memref<2x512xf32, #tpu.memory_space<vmem>>, vector<2x32xf32>,
    %211 = vector.extract_strided_slice %90 {offsets = [0, 4, 4, 0], sizes = [2, 1, 1, 32], strides = [1, 1, 1, 1]} : vector<2x8x8x128xf32> to vector<2x1x1x32xf32>
    %212 = vector.shape_cast %211 : vector<2x1x1x32xf32> to vector<2x32xf32>
    %213 = vector.extract_strided_slice %90 {offsets = [0, 4, 5, 0], sizes = [2, 1, 1, 32], strides = [1, 1, 1, 1]} : vector<2x8x8x128xf32> to vector<2x1x1x32xf32>
    %214 = vector.shape_cast %213 : vector<2x1x1x32xf32> to vector<2x32xf32>
    %215 = arith.maximumf %212, %214 : vector<2x32xf32>
    %216 = vector.extract_strided_slice %90 {offsets = [0, 5, 4, 0], sizes = [2, 1, 1, 32], strides = [1, 1, 1, 1]} : vector<2x8x8x128xf32> to vector<2x1x1x32xf32>
    %217 = vector.shape_cast %216 : vector<2x1x1x32xf32> to vector<2x32xf32>
    %218 = vector.extract_strided_slice %90 {offsets = [0, 5, 5, 0], sizes = [2, 1, 1, 32], strides = [1, 1, 1, 1]} : vector<2x8x8x128xf32> to vector<2x1x1x32xf32>
    %219 = vector.shape_cast %218 : vector<2x1x1x32xf32> to vector<2x32xf32>
    %220 = arith.maximumf %217, %219 : vector<2x32xf32>
    %221 = arith.maximumf %215, %220 : vector<2x32xf32>
    %c0_241 = arith.constant 0 : index
    %c320_242 = arith.constant 320 : index
    %222 = vector.load %arg14[%c0_241, %c320_242] : memref<2x512xf32, #tpu.memory_space<vmem>>, vector<2x32xf32>
    tpu.vector_store %arg14[%c0_241, %c320_242], %221 {strides = array<i32>} : memref<2x512xf32, #tpu.memory_space<vmem>>, vector<2x32xf32>,
    %223 = vector.extract_strided_slice %90 {offsets = [0, 4, 6, 0], sizes = [2, 1, 1, 32], strides = [1, 1, 1, 1]} : vector<2x8x8x128xf32> to vector<2x1x1x32xf32>
    %224 = vector.shape_cast %223 : vector<2x1x1x32xf32> to vector<2x32xf32>
    %225 = vector.extract_strided_slice %90 {offsets = [0, 4, 7, 0], sizes = [2, 1, 1, 32], strides = [1, 1, 1, 1]} : vector<2x8x8x128xf32> to vector<2x1x1x32xf32>
    %226 = vector.shape_cast %225 : vector<2x1x1x32xf32> to vector<2x32xf32>
    %227 = arith.maximumf %224, %226 : vector<2x32xf32>
    %228 = vector.extract_strided_slice %90 {offsets = [0, 5, 6, 0], sizes = [2, 1, 1, 32], strides = [1, 1, 1, 1]} : vector<2x8x8x128xf32> to vector<2x1x1x32xf32>
    %229 = vector.shape_cast %228 : vector<2x1x1x32xf32> to vector<2x32xf32>
    %230 = vector.extract_strided_slice %90 {offsets = [0, 5, 7, 0], sizes = [2, 1, 1, 32], strides = [1, 1, 1, 1]} : vector<2x8x8x128xf32> to vector<2x1x1x32xf32>
    %231 = vector.shape_cast %230 : vector<2x1x1x32xf32> to vector<2x32xf32>
    %232 = arith.maximumf %229, %231 : vector<2x32xf32>
    %233 = arith.maximumf %227, %232 : vector<2x32xf32>
    %c0_243 = arith.constant 0 : index
    %c352_244 = arith.constant 352 : index
    %234 = vector.load %arg14[%c0_243, %c352_244] : memref<2x512xf32, #tpu.memory_space<vmem>>, vector<2x32xf32>
    tpu.vector_store %arg14[%c0_243, %c352_244], %233 {strides = array<i32>} : memref<2x512xf32, #tpu.memory_space<vmem>>, vector<2x32xf32>,
    %235 = vector.extract_strided_slice %90 {offsets = [0, 6, 0, 0], sizes = [2, 1, 1, 32], strides = [1, 1, 1, 1]} : vector<2x8x8x128xf32> to vector<2x1x1x32xf32>
    %236 = vector.shape_cast %235 : vector<2x1x1x32xf32> to vector<2x32xf32>
    %237 = vector.extract_strided_slice %90 {offsets = [0, 6, 1, 0], sizes = [2, 1, 1, 32], strides = [1, 1, 1, 1]} : vector<2x8x8x128xf32> to vector<2x1x1x32xf32>
    %238 = vector.shape_cast %237 : vector<2x1x1x32xf32> to vector<2x32xf32>
    %239 = arith.maximumf %236, %238 : vector<2x32xf32>
    %240 = vector.extract_strided_slice %90 {offsets = [0, 7, 0, 0], sizes = [2, 1, 1, 32], strides = [1, 1, 1, 1]} : vector<2x8x8x128xf32> to vector<2x1x1x32xf32>
    %241 = vector.shape_cast %240 : vector<2x1x1x32xf32> to vector<2x32xf32>
    %242 = vector.extract_strided_slice %90 {offsets = [0, 7, 1, 0], sizes = [2, 1, 1, 32], strides = [1, 1, 1, 1]} : vector<2x8x8x128xf32> to vector<2x1x1x32xf32>
    %243 = vector.shape_cast %242 : vector<2x1x1x32xf32> to vector<2x32xf32>
    %244 = arith.maximumf %241, %243 : vector<2x32xf32>
    %245 = arith.maximumf %239, %244 : vector<2x32xf32>
    %c0_245 = arith.constant 0 : index
    %c384_246 = arith.constant 384 : index
    %246 = vector.load %arg14[%c0_245, %c384_246] : memref<2x512xf32, #tpu.memory_space<vmem>>, vector<2x32xf32>
    tpu.vector_store %arg14[%c0_245, %c384_246], %245 {strides = array<i32>} : memref<2x512xf32, #tpu.memory_space<vmem>>, vector<2x32xf32>,
    %247 = vector.extract_strided_slice %90 {offsets = [0, 6, 2, 0], sizes = [2, 1, 1, 32], strides = [1, 1, 1, 1]} : vector<2x8x8x128xf32> to vector<2x1x1x32xf32>
    %248 = vector.shape_cast %247 : vector<2x1x1x32xf32> to vector<2x32xf32>
    %249 = vector.extract_strided_slice %90 {offsets = [0, 6, 3, 0], sizes = [2, 1, 1, 32], strides = [1, 1, 1, 1]} : vector<2x8x8x128xf32> to vector<2x1x1x32xf32>
    %250 = vector.shape_cast %249 : vector<2x1x1x32xf32> to vector<2x32xf32>
    %251 = arith.maximumf %248, %250 : vector<2x32xf32>
    %252 = vector.extract_strided_slice %90 {offsets = [0, 7, 2, 0], sizes = [2, 1, 1, 32], strides = [1, 1, 1, 1]} : vector<2x8x8x128xf32> to vector<2x1x1x32xf32>
    %253 = vector.shape_cast %252 : vector<2x1x1x32xf32> to vector<2x32xf32>
    %254 = vector.extract_strided_slice %90 {offsets = [0, 7, 3, 0], sizes = [2, 1, 1, 32], strides = [1, 1, 1, 1]} : vector<2x8x8x128xf32> to vector<2x1x1x32xf32>
    %255 = vector.shape_cast %254 : vector<2x1x1x32xf32> to vector<2x32xf32>
    %256 = arith.maximumf %253, %255 : vector<2x32xf32>
    %257 = arith.maximumf %251, %256 : vector<2x32xf32>
    %c0_247 = arith.constant 0 : index
    %c416 = arith.constant 416 : index
    %258 = vector.load %arg14[%c0_247, %c416] : memref<2x512xf32, #tpu.memory_space<vmem>>, vector<2x32xf32>
    tpu.vector_store %arg14[%c0_247, %c416], %257 {strides = array<i32>} : memref<2x512xf32, #tpu.memory_space<vmem>>, vector<2x32xf32>,
    %259 = vector.extract_strided_slice %90 {offsets = [0, 6, 4, 0], sizes = [2, 1, 1, 32], strides = [1, 1, 1, 1]} : vector<2x8x8x128xf32> to vector<2x1x1x32xf32>
    %260 = vector.shape_cast %259 : vector<2x1x1x32xf32> to vector<2x32xf32>
    %261 = vector.extract_strided_slice %90 {offsets = [0, 6, 5, 0], sizes = [2, 1, 1, 32], strides = [1, 1, 1, 1]} : vector<2x8x8x128xf32> to vector<2x1x1x32xf32>
    %262 = vector.shape_cast %261 : vector<2x1x1x32xf32> to vector<2x32xf32>
    %263 = arith.maximumf %260, %262 : vector<2x32xf32>
    %264 = vector.extract_strided_slice %90 {offsets = [0, 7, 4, 0], sizes = [2, 1, 1, 32], strides = [1, 1, 1, 1]} : vector<2x8x8x128xf32> to vector<2x1x1x32xf32>
    %265 = vector.shape_cast %264 : vector<2x1x1x32xf32> to vector<2x32xf32>
    %266 = vector.extract_strided_slice %90 {offsets = [0, 7, 5, 0], sizes = [2, 1, 1, 32], strides = [1, 1, 1, 1]} : vector<2x8x8x128xf32> to vector<2x1x1x32xf32>
    %267 = vector.shape_cast %266 : vector<2x1x1x32xf32> to vector<2x32xf32>
    %268 = arith.maximumf %265, %267 : vector<2x32xf32>
    %269 = arith.maximumf %263, %268 : vector<2x32xf32>
    %c0_248 = arith.constant 0 : index
    %c448 = arith.constant 448 : index
    %270 = vector.load %arg14[%c0_248, %c448] : memref<2x512xf32, #tpu.memory_space<vmem>>, vector<2x32xf32>
    tpu.vector_store %arg14[%c0_248, %c448], %269 {strides = array<i32>} : memref<2x512xf32, #tpu.memory_space<vmem>>, vector<2x32xf32>,
    %271 = vector.extract_strided_slice %90 {offsets = [0, 6, 6, 0], sizes = [2, 1, 1, 32], strides = [1, 1, 1, 1]} : vector<2x8x8x128xf32> to vector<2x1x1x32xf32>
    %272 = vector.shape_cast %271 : vector<2x1x1x32xf32> to vector<2x32xf32>
    %273 = vector.extract_strided_slice %90 {offsets = [0, 6, 7, 0], sizes = [2, 1, 1, 32], strides = [1, 1, 1, 1]} : vector<2x8x8x128xf32> to vector<2x1x1x32xf32>
    %274 = vector.shape_cast %273 : vector<2x1x1x32xf32> to vector<2x32xf32>
    %275 = arith.maximumf %272, %274 : vector<2x32xf32>
    %276 = vector.extract_strided_slice %90 {offsets = [0, 7, 6, 0], sizes = [2, 1, 1, 32], strides = [1, 1, 1, 1]} : vector<2x8x8x128xf32> to vector<2x1x1x32xf32>
    %277 = vector.shape_cast %276 : vector<2x1x1x32xf32> to vector<2x32xf32>
    %278 = vector.extract_strided_slice %90 {offsets = [0, 7, 7, 0], sizes = [2, 1, 1, 32], strides = [1, 1, 1, 1]} : vector<2x8x8x128xf32> to vector<2x1x1x32xf32>
    %279 = vector.shape_cast %278 : vector<2x1x1x32xf32> to vector<2x32xf32>
    %280 = arith.maximumf %277, %279 : vector<2x32xf32>
    %281 = arith.maximumf %275, %280 : vector<2x32xf32>
    %c0_249 = arith.constant 0 : index
    %c480 = arith.constant 480 : index
    %282 = vector.load %arg14[%c0_249, %c480] : memref<2x512xf32, #tpu.memory_space<vmem>>, vector<2x32xf32>
    tpu.vector_store %arg14[%c0_249, %c480], %281 {strides = array<i32>} : memref<2x512xf32, #tpu.memory_space<vmem>>, vector<2x32xf32>,
    %c0_250 = arith.constant 0 : index
    %c0_251 = arith.constant 0 : index
    %283 = vector.load %arg14[%c0_250, %c0_251] : memref<2x512xf32, #tpu.memory_space<vmem>>, vector<2x512xf32>
    %c0_252 = arith.constant 0 : index
    %c0_253 = arith.constant 0 : index
    %284 = vector.load %arg6[%c0_252, %c0_253] : memref<512x128xf32, #tpu.memory_space<vmem>>, vector<512x128xf32>
    %cst_254 = arith.constant dense<0.000000e+00> : vector<2x128xf32>
    %285 = tpu.matmul %283, %284, %cst_254 {dimension_numbers = #tpu.dot_dimension_numbers<[1], [0], [0], [1], [0, 0, 1, 1], [], []>} : vector<2x512xf32>, vector<512x128xf32>, vector<2x128xf32> -> vector<2x128xf32>
    %c0_255 = arith.constant 0 : index
    %c0_256 = arith.constant 0 : index
    %286 = vector.load %arg7[%c0_255, %c0_256] : memref<1x128xf32, #tpu.memory_space<vmem>>, vector<1x128xf32>
    %287 = vector.broadcast %286 : vector<1x128xf32> to vector<2x128xf32>
    %288 = arith.addf %285, %287 : vector<2x128xf32>
    %cst_257 = arith.constant 0.000000e+00 : f32
    %289 = vector.broadcast %cst_257 : f32 to vector<2x128xf32>
    %290 = arith.maximumf %288, %289 : vector<2x128xf32>
    %c0_258 = arith.constant 0 : index
    %c0_259 = arith.constant 0 : index
    %291 = vector.load %arg8[%c0_258, %c0_259] : memref<128x128xf32, #tpu.memory_space<vmem>>, vector<128x128xf32>
    %cst_260 = arith.constant dense<0.000000e+00> : vector<2x128xf32>
    %292 = tpu.matmul %290, %291, %cst_260 {dimension_numbers = #tpu.dot_dimension_numbers<[1], [0], [0], [1], [0, 0, 1, 1], [], []>} : vector<2x128xf32>, vector<128x128xf32>, vector<2x128xf32> -> vector<2x128xf32>
    %c0_261 = arith.constant 0 : index
    %c0_262 = arith.constant 0 : index
    %293 = vector.load %arg9[%c0_261, %c0_262] : memref<1x128xf32, #tpu.memory_space<vmem>>, vector<1x128xf32>
    %294 = vector.broadcast %293 : vector<1x128xf32> to vector<2x128xf32>
    %295 = arith.addf %292, %294 : vector<2x128xf32>
    %c0_263 = arith.constant 0 : index
    %c0_264 = arith.constant 0 : index
    %296 = vector.load %arg10[%c0_263, %c0_264] : memref<2x128xf32, #tpu.memory_space<vmem>>, vector<2x128xf32>
    tpu.vector_store %arg10[%c0_263, %c0_264], %295 {strides = array<i32>} : memref<2x128xf32, #tpu.memory_space<vmem>>, vector<2x128xf32>,
    return
  }
  func.func @transform_0(%arg0: i32) -> (i32, i32, i32) {
    %c0_i32 = arith.constant 0 : i32
    %c0_i32_0 = arith.constant 0 : i32
    %c0_i32_1 = arith.constant 0 : i32
    %c0_i32_2 = arith.constant 0 : i32
    return %c0_i32, %c0_i32_0, %c0_i32_1 : i32, i32, i32
  }
  func.func @transform_1(%arg0: i32) -> (i32, i32) {
    %c0_i32 = arith.constant 0 : i32
    %c0_i32_0 = arith.constant 0 : i32
    %c0_i32_1 = arith.constant 0 : i32
    return %c0_i32, %c0_i32_0 : i32, i32
  }
  func.func @transform_2(%arg0: i32) -> (i32, i32) {
    %c0_i32 = arith.constant 0 : i32
    %c0_i32_0 = arith.constant 0 : i32
    %c0_i32_1 = arith.constant 0 : i32
    return %c0_i32, %c0_i32_0 : i32, i32
  }
  func.func @transform_3(%arg0: i32) -> (i32, i32) {
    %c0_i32 = arith.constant 0 : i32
    %c0_i32_0 = arith.constant 0 : i32
    %c0_i32_1 = arith.constant 0 : i32
    return %c0_i32, %c0_i32_0 : i32, i32
  }
  func.func @transform_4(%arg0: i32) -> (i32, i32) {
    %c0_i32 = arith.constant 0 : i32
    %c0_i32_0 = arith.constant 0 : i32
    %c0_i32_1 = arith.constant 0 : i32
    return %c0_i32, %c0_i32_0 : i32, i32
  }
  func.func @transform_5(%arg0: i32) -> (i32, i32) {
    %c0_i32 = arith.constant 0 : i32
    %c0_i32_0 = arith.constant 0 : i32
    %c0_i32_1 = arith.constant 0 : i32
    return %c0_i32, %c0_i32_0 : i32, i32
  }
  func.func @transform_6(%arg0: i32) -> (i32, i32) {
    %c0_i32 = arith.constant 0 : i32
    %c0_i32_0 = arith.constant 0 : i32
    %c0_i32_1 = arith.constant 0 : i32
    return %c0_i32, %c0_i32_0 : i32, i32
  }
  func.func @transform_7(%arg0: i32) -> (i32, i32) {
    %c0_i32 = arith.constant 0 : i32
    %c0_i32_0 = arith.constant 0 : i32
    %c0_i32_1 = arith.constant 0 : i32
    return %c0_i32, %c0_i32_0 : i32, i32
  }
  func.func @transform_8(%arg0: i32) -> (i32, i32) {
    %c0_i32 = arith.constant 0 : i32
    %c0_i32_0 = arith.constant 0 : i32
    %c0_i32_1 = arith.constant 0 : i32
    return %c0_i32, %c0_i32_0 : i32, i32
  }
  func.func @transform_9(%arg0: i32) -> (i32, i32) {
    %c0_i32 = arith.constant 0 : i32
    %c0_i32_0 = arith.constant 0 : i32
    %c0_i32_1 = arith.constant 0 : i32
    return %c0_i32, %c0_i32_0 : i32, i32
  }
}

</mosaic_0001>

<llo_original>
// kernel: simple_cnn_forward.1
$region0: #{simple_cnn_forward.1}
  #allocation0 [shape = 'u32[]', space=smem, size = 0x4, offset = 0x4, fixed_abs, tag = 'smem constant byte address 0x4 - core index']
  #allocation1 [shape = 'u32[72,128]{1,0:T(1,128)}', space=vmem, size = 0x9000, scoped, tag = 'internal scratch']
  #allocation2 [shape = 'f32[384,16]{1,0:T(8,128)}', space=vmem, size = 0x30000, scoped, tag = 'scratch operand']
  #allocation3 [shape = 'f32[2,12,16,16]{3,2,1,0:T(8,128)}', space=vmem, size = 0x30000, scoped, tag = 'scratch operand']
  #allocation4 [shape = 'f32[2,8,8,400]{3,2,1,0:T(8,128)}', space=vmem, size = 0x40000, scoped, tag = 'scratch operand']
  #allocation5 [shape = 'f32[2,512]{1,0:T(2,128)}', space=vmem, size = 0x1000, scoped, tag = 'scratch operand']
  %s0 = inlined_call_operand.vmem [shape: f32[4,384,32], index: 0, kind: input, shape index: {}]
  %s1 = inlined_call_operand.vmem [shape: f32[32,16], index: 1, kind: input, shape index: {}]
  %s2 = inlined_call_operand.vmem [shape: f32[1,16], index: 2, kind: input, shape index: {}]
  %s3 = inlined_call_operand.vmem [shape: f32[400,128], index: 3, kind: input, shape index: {}]
  %s4 = inlined_call_operand.vmem [shape: f32[1,128], index: 4, kind: input, shape index: {}]
  %s5 = inlined_call_operand.vmem [shape: f32[512,128], index: 5, kind: input, shape index: {}]
  %s6 = inlined_call_operand.vmem [shape: f32[1,128], index: 6, kind: input, shape index: {}]
  %s7 = inlined_call_operand.vmem [shape: f32[128,128], index: 7, kind: input, shape index: {}]
  %s8 = inlined_call_operand.vmem [shape: f32[1,128], index: 8, kind: input, shape index: {}]
  %s9 = inlined_call_operand.hbm [shape: f32[2,128], index: 9, kind: output, shape index: {}]
  %s10 = sld [smem:[#allocation0]]
  $region46: #{simple_cnn_forward.1} parent=0
    _
  %s12 = ssub.s32 1, %s10
  %s13 = scalar_select 0, %s12, %s10
  $region1: #{simple_cnn_forward.1} parent=0
    #allocation6 [shape = 'u8[1024]{0}', space=vmem, size = 0x400, scoped, tag = 'output window, operand 0, single buffered']
    #allocation7 [shape = 's32[1]{0}', space=sflag, size = 0x4, scoped, tag = 'scoped memory for simple_cnn_forward.1']
    %14 = vsyncpa [#allocation7], 0
    // Predicated region
    $region2: #{simple_cnn_forward.1} parent=1 // pred_check
      _
    $region3: #{simple_cnn_forward.1} parent=1 // pred_check_branch
      %16 = sbr.rel (0) target = $region5
    $region4: #{simple_cnn_forward.1} parent=1 // pred_region
      _
    $region5: #{simple_cnn_forward.1} parent=1 // pred_fallthru
      _
    // Predicated region
    $region6: #{simple_cnn_forward.1} parent=1 // pred_check
      _
    $region7: #{simple_cnn_forward.1} parent=1 // pred_check_branch
      %18 = sbr.rel (0) target = $region9
    $region8: #{simple_cnn_forward.1} parent=1 // pred_region
      _
    $region9: #{simple_cnn_forward.1} parent=1 // pred_fallthru
      _
    // Predicated region
    $region10: #{simple_cnn_forward.1} parent=1 // pred_check
      _
    $region11: #{simple_cnn_forward.1} parent=1 // pred_check_branch
      %20 = sbr.rel (0) target = $region13
    $region12: #{simple_cnn_forward.1} parent=1 // pred_region
      _
    $region13: #{simple_cnn_forward.1} parent=1 // pred_fallthru
      _
    // Predicated region
    $region14: #{simple_cnn_forward.1} parent=1 // pred_check
      _
    $region15: #{simple_cnn_forward.1} parent=1 // pred_check_branch
      %22 = sbr.rel (0) target = $region17
    $region16: #{simple_cnn_forward.1} parent=1 // pred_region
      _
    $region17: #{simple_cnn_forward.1} parent=1 // pred_fallthru
      _
    // Predicated region
    $region18: #{simple_cnn_forward.1} parent=1 // pred_check
      _
    $region19: #{simple_cnn_forward.1} parent=1 // pred_check_branch
      %24 = sbr.rel (0) target = $region21
    $region20: #{simple_cnn_forward.1} parent=1 // pred_region
      _
    $region21: #{simple_cnn_forward.1} parent=1 // pred_fallthru
      _
    // Predicated region
    $region22: #{simple_cnn_forward.1} parent=1 // pred_check
      _
    $region23: #{simple_cnn_forward.1} parent=1 // pred_check_branch
      %26 = sbr.rel (0) target = $region25
    $region24: #{simple_cnn_forward.1} parent=1 // pred_region
      _
    $region25: #{simple_cnn_forward.1} parent=1 // pred_fallthru
      _
    // Predicated region
    $region26: #{simple_cnn_forward.1} parent=1 // pred_check
      _
    $region27: #{simple_cnn_forward.1} parent=1 // pred_check_branch
      %28 = sbr.rel (0) target = $region29
    $region28: #{simple_cnn_forward.1} parent=1 // pred_region
      _
    $region29: #{simple_cnn_forward.1} parent=1 // pred_fallthru
      _
    // Predicated region
    $region30: #{simple_cnn_forward.1} parent=1 // pred_check
      _
    $region31: #{simple_cnn_forward.1} parent=1 // pred_check_branch
      %30 = sbr.rel (0) target = $region33
    $region32: #{simple_cnn_forward.1} parent=1 // pred_region
      _
    $region33: #{simple_cnn_forward.1} parent=1 // pred_fallthru
      _
    // Predicated region
    $region34: #{simple_cnn_forward.1} parent=1 // pred_check
      _
    $region35: #{simple_cnn_forward.1} parent=1 // pred_check_branch
      %32 = sbr.rel (0) target = $region37
    $region36: #{simple_cnn_forward.1} parent=1 // pred_region
      _
    $region37: #{simple_cnn_forward.1} parent=1 // pred_fallthru
      _
    %v33 = vld [vmem:[%s1] sm:$0xff]
    %v34 = vld [vmem:[%s1 + $0x8] sm:$0xff]
    %v35 = vld [vmem:[%s1 + $0x10] sm:$0xff]
    %v36 = vld [vmem:[%s1 + $0x18] sm:$0xff]
    %v37 = vld [vmem:[%s0] sm:$0xff]
    %v38 = vld [vmem:[%s0 + $0x8] sm:$0xff]
    %v39 = vld [vmem:[%s0 + $0x10] sm:$0xff]
    %v40 = vld [vmem:[%s0 + $0x18] sm:$0xff]
    %v41 = vld [vmem:[%s0 + $0x20] sm:$0xff]
    %v42 = vld [vmem:[%s0 + $0x28] sm:$0xff]
    %v43 = vld [vmem:[%s0 + $0x30] sm:$0xff]
    %v44 = vld [vmem:[%s0 + $0x38] sm:$0xff]
    %v45 = vld [vmem:[%s0 + $0x40] sm:$0xff]
    %v46 = vld [vmem:[%s0 + $0x48] sm:$0xff]
    %v47 = vld [vmem:[%s0 + $0x50] sm:$0xff]
    %v48 = vld [vmem:[%s0 + $0x58] sm:$0xff]
    %v49 = vld [vmem:[%s0 + $0x60] sm:$0xff]
    %v50 = vld [vmem:[%s0 + $0x68] sm:$0xff]
    %v51 = vld [vmem:[%s0 + $0x70] sm:$0xff]
    %v52 = vld [vmem:[%s0 + $0x78] sm:$0xff]
    %v53 = vld [vmem:[%s0 + $0x80] sm:$0xff]
    %v54 = vld [vmem:[%s0 + $0x88] sm:$0xff]
    %v55 = vld [vmem:[%s0 + $0x90] sm:$0xff]
    %v56 = vld [vmem:[%s0 + $0x98] sm:$0xff]
    %v57 = vld [vmem:[%s0 + $0xa0] sm:$0xff]
    %v58 = vld [vmem:[%s0 + $0xa8] sm:$0xff]
    %v59 = vld [vmem:[%s0 + $0xb0] sm:$0xff]
    %v60 = vld [vmem:[%s0 + $0xb8] sm:$0xff]
    %v61 = vld [vmem:[%s0 + $0xc0] sm:$0xff]
    %v62 = vld [vmem:[%s0 + $0xc8] sm:$0xff]
    %v63 = vld [vmem:[%s0 + $0xd0] sm:$0xff]
    %v64 = vld [vmem:[%s0 + $0xd8] sm:$0xff]
    %v65 = vld [vmem:[%s0 + $0xe0] sm:$0xff]
    %v66 = vld [vmem:[%s0 + $0xe8] sm:$0xff]
    %v67 = vld [vmem:[%s0 + $0xf0] sm:$0xff]
    %v68 = vld [vmem:[%s0 + $0xf8] sm:$0xff]
    %v69 = vld [vmem:[%s0 + $0x100] sm:$0xff]
    %v70 = vld [vmem:[%s0 + $0x108] sm:$0xff]
    %v71 = vld [vmem:[%s0 + $0x110] sm:$0xff]
    %v72 = vld [vmem:[%s0 + $0x118] sm:$0xff]
    %v73 = vld [vmem:[%s0 + $0x120] sm:$0xff]
    %v74 = vld [vmem:[%s0 + $0x128] sm:$0xff]
    %v75 = vld [vmem:[%s0 + $0x130] sm:$0xff]
    %v76 = vld [vmem:[%s0 + $0x138] sm:$0xff]
    %v77 = vld [vmem:[%s0 + $0x140] sm:$0xff]
    %v78 = vld [vmem:[%s0 + $0x148] sm:$0xff]
    %v79 = vld [vmem:[%s0 + $0x150] sm:$0xff]
    %v80 = vld [vmem:[%s0 + $0x158] sm:$0xff]
    %v81 = vld [vmem:[%s0 + $0x160] sm:$0xff]
    %v82 = vld [vmem:[%s0 + $0x168] sm:$0xff]
    %v83 = vld [vmem:[%s0 + $0x170] sm:$0xff]
    %v84 = vld [vmem:[%s0 + $0x178] sm:$0xff]
    %vm85 = vcmask 261120
    %v87 = vsel %vm85, %v37, 0
    %v90 = vsel %vm85, %v38, 0
    %v93 = vsel %vm85, %v39, 0
    %v96 = vsel %vm85, %v40, 0
    %v99 = vsel %vm85, %v41, 0
    %v102 = vsel %vm85, %v42, 0
    %v105 = vsel %vm85, %v43, 0
    %v108 = vsel %vm85, %v44, 0
    %v111 = vsel %vm85, %v45, 0
    %v114 = vsel %vm85, %v46, 0
    %v117 = vsel %vm85, %v47, 0
    %v120 = vsel %vm85, %v48, 0
    %v123 = vsel %vm85, %v49, 0
    %v126 = vsel %vm85, %v50, 0
    %v129 = vsel %vm85, %v51, 0
    %v132 = vsel %vm85, %v52, 0
    %v135 = vsel %vm85, %v53, 0
    %v138 = vsel %vm85, %v54, 0
    %v141 = vsel %vm85, %v55, 0
    %v144 = vsel %vm85, %v56, 0
    %v147 = vsel %vm85, %v57, 0
    %v150 = vsel %vm85, %v58, 0
    %v153 = vsel %vm85, %v59, 0
    %v156 = vsel %vm85, %v60, 0
    %v159 = vsel %vm85, %v61, 0
    %v162 = vsel %vm85, %v62, 0
    %v165 = vsel %vm85, %v63, 0
    %v168 = vsel %vm85, %v64, 0
    %v171 = vsel %vm85, %v65, 0
    %v174 = vsel %vm85, %v66, 0
    %v177 = vsel %vm85, %v67, 0
    %v180 = vsel %vm85, %v68, 0
    %v183 = vsel %vm85, %v69, 0
    %v186 = vsel %vm85, %v70, 0
    %v189 = vsel %vm85, %v71, 0
    %v192 = vsel %vm85, %v72, 0
    %v195 = vsel %vm85, %v73, 0
    %v198 = vsel %vm85, %v74, 0
    %v201 = vsel %vm85, %v75, 0
    %v204 = vsel %vm85, %v76, 0
    %v207 = vsel %vm85, %v77, 0
    %v210 = vsel %vm85, %v78, 0
    %v213 = vsel %vm85, %v79, 0
    %v216 = vsel %vm85, %v80, 0
    %v219 = vsel %vm85, %v81, 0
    %v222 = vsel %vm85, %v82, 0
    %v225 = vsel %vm85, %v83, 0
    %v228 = vsel %vm85, %v84, 0
    %230 = vmatpush.msra.mxu0 0.0
    %231 = vmatpush.msra.mxu0 0.0
    %232 = vmatpush.msra.mxu0 0.0
    %233 = vmatpush.msra.mxu0 0.0
    %234 = vmatpush.msra.mxu0 0.0
    %235 = vmatpush.msra.mxu0 0.0
    %236 = vmatpush.msra.mxu0 0.0
    %237 = vmatpush.msra.mxu0 0.0
    %238 = vmatpush.msra.mxu0 0.0
    %239 = vmatpush.msra.mxu0 0.0
    %240 = vmatpush.msra.mxu0 0.0
    %241 = vmatpush.msra.mxu0 0.0
    %242 = vmatpush.msra.mxu0 %v36
    %243 = vmatpush.msra.mxu0 %v35
    %244 = vmatpush.msra.mxu0 %v34
    %245 = vmatpush.msra.mxu0 %v33
    %246 = vmatmul.f32.gmra.mxu0 %v87
    %v247 = vpop.f32.mrf.mxu0
    %v248 = vadd.f32 0.0, %v247
    %249 = vmatmul.f32.gmra.mxu0 %v90
    %v250 = vpop.f32.mrf.mxu0
    %v251 = vadd.f32 0.0, %v250
    %252 = vmatmul.f32.gmra.mxu0 %v93
    %v253 = vpop.f32.mrf.mxu0
    %v254 = vadd.f32 0.0, %v253
    %255 = vmatmul.f32.gmra.mxu0 %v96
    %v256 = vpop.f32.mrf.mxu0
    %v257 = vadd.f32 0.0, %v256
    %258 = vmatmul.f32.gmra.mxu0 %v99
    %v259 = vpop.f32.mrf.mxu0
    %v260 = vadd.f32 0.0, %v259
    %261 = vmatmul.f32.gmra.mxu0 %v102
    %v262 = vpop.f32.mrf.mxu0
    %v263 = vadd.f32 0.0, %v262
    %264 = vmatmul.f32.gmra.mxu0 %v105
    %v265 = vpop.f32.mrf.mxu0
    %v266 = vadd.f32 0.0, %v265
    %267 = vmatmul.f32.gmra.mxu0 %v108
    %v268 = vpop.f32.mrf.mxu0
    %v269 = vadd.f32 0.0, %v268
    %270 = vmatmul.f32.gmra.mxu0 %v111
    %v271 = vpop.f32.mrf.mxu0
    %v272 = vadd.f32 0.0, %v271
    %273 = vmatmul.f32.gmra.mxu0 %v114
    %v274 = vpop.f32.mrf.mxu0
    %v275 = vadd.f32 0.0, %v274
    %276 = vmatmul.f32.gmra.mxu0 %v117
    %v277 = vpop.f32.mrf.mxu0
    %v278 = vadd.f32 0.0, %v277
    %279 = vmatmul.f32.gmra.mxu0 %v120
    %v280 = vpop.f32.mrf.mxu0
    %v281 = vadd.f32 0.0, %v280
    %282 = vmatmul.f32.gmra.mxu0 %v123
    %v283 = vpop.f32.mrf.mxu0
    %v284 = vadd.f32 0.0, %v283
    %285 = vmatmul.f32.gmra.mxu0 %v126
    %v286 = vpop.f32.mrf.mxu0
    %v287 = vadd.f32 0.0, %v286
    %288 = vmatmul.f32.gmra.mxu0 %v129
    %v289 = vpop.f32.mrf.mxu0
    %v290 = vadd.f32 0.0, %v289
    %291 = vmatmul.f32.gmra.mxu0 %v132
    %v292 = vpop.f32.mrf.mxu0
    %v293 = vadd.f32 0.0, %v292
    %294 = vmatmul.f32.gmra.mxu0 %v135
    %v295 = vpop.f32.mrf.mxu0
    %v296 = vadd.f32 0.0, %v295
    %297 = vmatmul.f32.gmra.mxu0 %v138
    %v298 = vpop.f32.mrf.mxu0
    %v299 = vadd.f32 0.0, %v298
    %300 = vmatmul.f32.gmra.mxu0 %v141
    %v301 = vpop.f32.mrf.mxu0
    %v302 = vadd.f32 0.0, %v301
    %303 = vmatmul.f32.gmra.mxu0 %v144
    %v304 = vpop.f32.mrf.mxu0
    %v305 = vadd.f32 0.0, %v304
    %306 = vmatmul.f32.gmra.mxu0 %v147
    %v307 = vpop.f32.mrf.mxu0
    %v308 = vadd.f32 0.0, %v307
    %309 = vmatmul.f32.gmra.mxu0 %v150
    %v310 = vpop.f32.mrf.mxu0
    %v311 = vadd.f32 0.0, %v310
    %312 = vmatmul.f32.gmra.mxu0 %v153
    %v313 = vpop.f32.mrf.mxu0
    %v314 = vadd.f32 0.0, %v313
    %315 = vmatmul.f32.gmra.mxu0 %v156
    %v316 = vpop.f32.mrf.mxu0
    %v317 = vadd.f32 0.0, %v316
    %318 = vmatmul.f32.gmra.mxu0 %v159
    %v319 = vpop.f32.mrf.mxu0
    %v320 = vadd.f32 0.0, %v319
    %321 = vmatmul.f32.gmra.mxu0 %v162
    %v322 = vpop.f32.mrf.mxu0
    %v323 = vadd.f32 0.0, %v322
    %324 = vmatmul.f32.gmra.mxu0 %v165
    %v325 = vpop.f32.mrf.mxu0
    %v326 = vadd.f32 0.0, %v325
    %327 = vmatmul.f32.gmra.mxu0 %v168
    %v328 = vpop.f32.mrf.mxu0
    %v329 = vadd.f32 0.0, %v328
    %330 = vmatmul.f32.gmra.mxu0 %v171
    %v331 = vpop.f32.mrf.mxu0
    %v332 = vadd.f32 0.0, %v331
    %333 = vmatmul.f32.gmra.mxu0 %v174
    %v334 = vpop.f32.mrf.mxu0
    %v335 = vadd.f32 0.0, %v334
    %336 = vmatmul.f32.gmra.mxu0 %v177
    %v337 = vpop.f32.mrf.mxu0
    %v338 = vadd.f32 0.0, %v337
    %339 = vmatmul.f32.gmra.mxu0 %v180
    %v340 = vpop.f32.mrf.mxu0
    %v341 = vadd.f32 0.0, %v340
    %342 = vmatmul.f32.gmra.mxu0 %v183
    %v343 = vpop.f32.mrf.mxu0
    %v344 = vadd.f32 0.0, %v343
    %345 = vmatmul.f32.gmra.mxu0 %v186
    %v346 = vpop.f32.mrf.mxu0
    %v347 = vadd.f32 0.0, %v346
    %348 = vmatmul.f32.gmra.mxu0 %v189
    %v349 = vpop.f32.mrf.mxu0
    %v350 = vadd.f32 0.0, %v349
    %351 = vmatmul.f32.gmra.mxu0 %v192
    %v352 = vpop.f32.mrf.mxu0
    %v353 = vadd.f32 0.0, %v352
    %354 = vmatmul.f32.gmra.mxu0 %v195
    %v355 = vpop.f32.mrf.mxu0
    %v356 = vadd.f32 0.0, %v355
    %357 = vmatmul.f32.gmra.mxu0 %v198
    %v358 = vpop.f32.mrf.mxu0
    %v359 = vadd.f32 0.0, %v358
    %360 = vmatmul.f32.gmra.mxu0 %v201
    %v361 = vpop.f32.mrf.mxu0
    %v362 = vadd.f32 0.0, %v361
    %363 = vmatmul.f32.gmra.mxu0 %v204
    %v364 = vpop.f32.mrf.mxu0
    %v365 = vadd.f32 0.0, %v364
    %366 = vmatmul.f32.gmra.mxu0 %v207
    %v367 = vpop.f32.mrf.mxu0
    %v368 = vadd.f32 0.0, %v367
    %369 = vmatmul.f32.gmra.mxu0 %v210
    %v370 = vpop.f32.mrf.mxu0
    %v371 = vadd.f32 0.0, %v370
    %372 = vmatmul.f32.gmra.mxu0 %v213
    %v373 = vpop.f32.mrf.mxu0
    %v374 = vadd.f32 0.0, %v373
    %375 = vmatmul.f32.gmra.mxu0 %v216
    %v376 = vpop.f32.mrf.mxu0
    %v377 = vadd.f32 0.0, %v376
    %378 = vmatmul.f32.gmra.mxu0 %v219
    %v379 = vpop.f32.mrf.mxu0
    %v380 = vadd.f32 0.0, %v379
    %381 = vmatmul.f32.gmra.mxu0 %v222
    %v382 = vpop.f32.mrf.mxu0
    %v383 = vadd.f32 0.0, %v382
    %384 = vmatmul.f32.gmra.mxu0 %v225
    %v385 = vpop.f32.mrf.mxu0
    %v386 = vadd.f32 0.0, %v385
    %387 = vmatmul.f32.gmra.mxu0 %v228
    %v388 = vpop.f32.mrf.mxu0
    %v389 = vadd.f32 0.0, %v388
    %390 = vdwg.mxu0
    %vm391 = vcmask 130048
    %392 = vst.msk [vmem:[#allocation2] sm:$0xff] %vm391, %v248
    %393 = vst.msk [vmem:[#allocation2 + $0x8] sm:$0xff] %vm391, %v251
    %394 = vst.msk [vmem:[#allocation2 + $0x10] sm:$0xff] %vm391, %v254
    %395 = vst.msk [vmem:[#allocation2 + $0x18] sm:$0xff] %vm391, %v257
    %396 = vst.msk [vmem:[#allocation2 + $0x20] sm:$0xff] %vm391, %v260
    %397 = vst.msk [vmem:[#allocation2 + $0x28] sm:$0xff] %vm391, %v263
    %398 = vst.msk [vmem:[#allocation2 + $0x30] sm:$0xff] %vm391, %v266
    %399 = vst.msk [vmem:[#allocation2 + $0x38] sm:$0xff] %vm391, %v269
    %400 = vst.msk [vmem:[#allocation2 + $0x40] sm:$0xff] %vm391, %v272
    %401 = vst.msk [vmem:[#allocation2 + $0x48] sm:$0xff] %vm391, %v275
    %402 = vst.msk [vmem:[#allocation2 + $0x50] sm:$0xff] %vm391, %v278
    %403 = vst.msk [vmem:[#allocation2 + $0x58] sm:$0xff] %vm391, %v281
    %404 = vst.msk [vmem:[#allocation2 + $0x60] sm:$0xff] %vm391, %v284
    %405 = vst.msk [vmem:[#allocation2 + $0x68] sm:$0xff] %vm391, %v287
    %406 = vst.msk [vmem:[#allocation2 + $0x70] sm:$0xff] %vm391, %v290
    %407 = vst.msk [vmem:[#allocation2 + $0x78] sm:$0xff] %vm391, %v293
    %408 = vst.msk [vmem:[#allocation2 + $0x80] sm:$0xff] %vm391, %v296
    %409 = vst.msk [vmem:[#allocation2 + $0x88] sm:$0xff] %vm391, %v299
    %410 = vst.msk [vmem:[#allocation2 + $0x90] sm:$0xff] %vm391, %v302
    %411 = vst.msk [vmem:[#allocation2 + $0x98] sm:$0xff] %vm391, %v305
    %412 = vst.msk [vmem:[#allocation2 + $0xa0] sm:$0xff] %vm391, %v308
    %413 = vst.msk [vmem:[#allocation2 + $0xa8] sm:$0xff] %vm391, %v311
    %414 = vst.msk [vmem:[#allocation2 + $0xb0] sm:$0xff] %vm391, %v314
    %415 = vst.msk [vmem:[#allocation2 + $0xb8] sm:$0xff] %vm391, %v317
    %416 = vst.msk [vmem:[#allocation2 + $0xc0] sm:$0xff] %vm391, %v320
    %417 = vst.msk [vmem:[#allocation2 + $0xc8] sm:$0xff] %vm391, %v323
    %418 = vst.msk [vmem:[#allocation2 + $0xd0] sm:$0xff] %vm391, %v326
    %419 = vst.msk [vmem:[#allocation2 + $0xd8] sm:$0xff] %vm391, %v329
    %420 = vst.msk [vmem:[#allocation2 + $0xe0] sm:$0xff] %vm391, %v332
    %421 = vst.msk [vmem:[#allocation2 + $0xe8] sm:$0xff] %vm391, %v335
    %422 = vst.msk [vmem:[#allocation2 + $0xf0] sm:$0xff] %vm391, %v338
    %423 = vst.msk [vmem:[#allocation2 + $0xf8] sm:$0xff] %vm391, %v341
    %424 = vst.msk [vmem:[#allocation2 + $0x100] sm:$0xff] %vm391, %v344
    %425 = vst.msk [vmem:[#allocation2 + $0x108] sm:$0xff] %vm391, %v347
    %426 = vst.msk [vmem:[#allocation2 + $0x110] sm:$0xff] %vm391, %v350
    %427 = vst.msk [vmem:[#allocation2 + $0x118] sm:$0xff] %vm391, %v353
    %428 = vst.msk [vmem:[#allocation2 + $0x120] sm:$0xff] %vm391, %v356
    %429 = vst.msk [vmem:[#allocation2 + $0x128] sm:$0xff] %vm391, %v359
    %430 = vst.msk [vmem:[#allocation2 + $0x130] sm:$0xff] %vm391, %v362
    %431 = vst.msk [vmem:[#allocation2 + $0x138] sm:$0xff] %vm391, %v365
    %432 = vst.msk [vmem:[#allocation2 + $0x140] sm:$0xff] %vm391, %v368
    %433 = vst.msk [vmem:[#allocation2 + $0x148] sm:$0xff] %vm391, %v371
    %434 = vst.msk [vmem:[#allocation2 + $0x150] sm:$0xff] %vm391, %v374
    %435 = vst.msk [vmem:[#allocation2 + $0x158] sm:$0xff] %vm391, %v377
    %436 = vst.msk [vmem:[#allocation2 + $0x160] sm:$0xff] %vm391, %v380
    %437 = vst.msk [vmem:[#allocation2 + $0x168] sm:$0xff] %vm391, %v383
    %438 = vst.msk [vmem:[#allocation2 + $0x170] sm:$0xff] %vm391, %v386
    %439 = vst.msk [vmem:[#allocation2 + $0x178] sm:$0xff] %vm391, %v389
    %v440 = vld [vmem:[#allocation2] sm:$0xff]
    %v441 = vld [vmem:[#allocation2 + $0x8] sm:$0xff]
    %v442 = vld [vmem:[#allocation2 + $0x10] sm:$0xff]
    %v443 = vld [vmem:[#allocation2 + $0x18] sm:$0xff]
    %v444 = vld [vmem:[#allocation2 + $0x20] sm:$0xff]
    %v445 = vld [vmem:[#allocation2 + $0x28] sm:$0xff]
    %v446 = vld [vmem:[#allocation2 + $0x30] sm:$0xff]
    %v447 = vld [vmem:[#allocation2 + $0x38] sm:$0xff]
    %v448 = vld [vmem:[#allocation2 + $0x40] sm:$0xff]
    %v449 = vld [vmem:[#allocation2 + $0x48] sm:$0xff]
    %v450 = vld [vmem:[#allocation2 + $0x50] sm:$0xff]
    %v451 = vld [vmem:[#allocation2 + $0x58] sm:$0xff]
    %v452 = vld [vmem:[#allocation2 + $0x60] sm:$0xff]
    %v453 = vld [vmem:[#allocation2 + $0x68] sm:$0xff]
    %v454 = vld [vmem:[#allocation2 + $0x70] sm:$0xff]
    %v455 = vld [vmem:[#allocation2 + $0x78] sm:$0xff]
    %v456 = vld [vmem:[#allocation2 + $0x80] sm:$0xff]
    %v457 = vld [vmem:[#allocation2 + $0x88] sm:$0xff]
    %v458 = vld [vmem:[#allocation2 + $0x90] sm:$0xff]
    %v459 = vld [vmem:[#allocation2 + $0x98] sm:$0xff]
    %v460 = vld [vmem:[#allocation2 + $0xa0] sm:$0xff]
    %v461 = vld [vmem:[#allocation2 + $0xa8] sm:$0xff]
    %v462 = vld [vmem:[#allocation2 + $0xb0] sm:$0xff]
    %v463 = vld [vmem:[#allocation2 + $0xb8] sm:$0xff]
    %v464 = vld [vmem:[#allocation2 + $0xc0] sm:$0xff]
    %v465 = vld [vmem:[#allocation2 + $0xc8] sm:$0xff]
    %v466 = vld [vmem:[#allocation2 + $0xd0] sm:$0xff]
    %v467 = vld [vmem:[#allocation2 + $0xd8] sm:$0xff]
    %v468 = vld [vmem:[#allocation2 + $0xe0] sm:$0xff]
    %v469 = vld [vmem:[#allocation2 + $0xe8] sm:$0xff]
    %v470 = vld [vmem:[#allocation2 + $0xf0] sm:$0xff]
    %v471 = vld [vmem:[#allocation2 + $0xf8] sm:$0xff]
    %v472 = vld [vmem:[#allocation2 + $0x100] sm:$0xff]
    %v473 = vld [vmem:[#allocation2 + $0x108] sm:$0xff]
    %v474 = vld [vmem:[#allocation2 + $0x110] sm:$0xff]
    %v475 = vld [vmem:[#allocation2 + $0x118] sm:$0xff]
    %v476 = vld [vmem:[#allocation2 + $0x120] sm:$0xff]
    %v477 = vld [vmem:[#allocation2 + $0x128] sm:$0xff]
    %v478 = vld [vmem:[#allocation2 + $0x130] sm:$0xff]
    %v479 = vld [vmem:[#allocation2 + $0x138] sm:$0xff]
    %v480 = vld [vmem:[#allocation2 + $0x140] sm:$0xff]
    %v481 = vld [vmem:[#allocation2 + $0x148] sm:$0xff]
    %v482 = vld [vmem:[#allocation2 + $0x150] sm:$0xff]
    %v483 = vld [vmem:[#allocation2 + $0x158] sm:$0xff]
    %v484 = vld [vmem:[#allocation2 + $0x160] sm:$0xff]
    %v485 = vld [vmem:[#allocation2 + $0x168] sm:$0xff]
    %v486 = vld [vmem:[#allocation2 + $0x170] sm:$0xff]
    %v487 = vld [vmem:[#allocation2 + $0x178] sm:$0xff]
    %s488 = scalar_lea.vmem %s0, 384
    %v489 = vld [vmem:[%s488] sm:$0xff]
    %v490 = vld [vmem:[%s488 + $0x8] sm:$0xff]
    %v491 = vld [vmem:[%s488 + $0x10] sm:$0xff]
    %v492 = vld [vmem:[%s488 + $0x18] sm:$0xff]
    %v493 = vld [vmem:[%s488 + $0x20] sm:$0xff]
    %v494 = vld [vmem:[%s488 + $0x28] sm:$0xff]
    %v495 = vld [vmem:[%s488 + $0x30] sm:$0xff]
    %v496 = vld [vmem:[%s488 + $0x38] sm:$0xff]
    %v497 = vld [vmem:[%s488 + $0x40] sm:$0xff]
    %v498 = vld [vmem:[%s488 + $0x48] sm:$0xff]
    %v499 = vld [vmem:[%s488 + $0x50] sm:$0xff]
    %v500 = vld [vmem:[%s488 + $0x58] sm:$0xff]
    %v501 = vld [vmem:[%s488 + $0x60] sm:$0xff]
    %v502 = vld [vmem:[%s488 + $0x68] sm:$0xff]
    %v503 = vld [vmem:[%s488 + $0x70] sm:$0xff]
    %v504 = vld [vmem:[%s488 + $0x78] sm:$0xff]
    %v505 = vld [vmem:[%s488 + $0x80] sm:$0xff]
    %v506 = vld [vmem:[%s488 + $0x88] sm:$0xff]
    %v507 = vld [vmem:[%s488 + $0x90] sm:$0xff]
    %v508 = vld [vmem:[%s488 + $0x98] sm:$0xff]
    %v509 = vld [vmem:[%s488 + $0xa0] sm:$0xff]
    %v510 = vld [vmem:[%s488 + $0xa8] sm:$0xff]
    %v511 = vld [vmem:[%s488 + $0xb0] sm:$0xff]
    %v512 = vld [vmem:[%s488 + $0xb8] sm:$0xff]
    %v513 = vld [vmem:[%s488 + $0xc0] sm:$0xff]
    %v514 = vld [vmem:[%s488 + $0xc8] sm:$0xff]
    %v515 = vld [vmem:[%s488 + $0xd0] sm:$0xff]
    %v516 = vld [vmem:[%s488 + $0xd8] sm:$0xff]
    %v517 = vld [vmem:[%s488 + $0xe0] sm:$0xff]
    %v518 = vld [vmem:[%s488 + $0xe8] sm:$0xff]
    %v519 = vld [vmem:[%s488 + $0xf0] sm:$0xff]
    %v520 = vld [vmem:[%s488 + $0xf8] sm:$0xff]
    %v521 = vld [vmem:[%s488 + $0x100] sm:$0xff]
    %v522 = vld [vmem:[%s488 + $0x108] sm:$0xff]
    %v523 = vld [vmem:[%s488 + $0x110] sm:$0xff]
    %v524 = vld [vmem:[%s488 + $0x118] sm:$0xff]
    %v525 = vld [vmem:[%s488 + $0x120] sm:$0xff]
    %v526 = vld [vmem:[%s488 + $0x128] sm:$0xff]
    %v527 = vld [vmem:[%s488 + $0x130] sm:$0xff]
    %v528 = vld [vmem:[%s488 + $0x138] sm:$0xff]
    %v529 = vld [vmem:[%s488 + $0x140] sm:$0xff]
    %v530 = vld [vmem:[%s488 + $0x148] sm:$0xff]
    %v531 = vld [vmem:[%s488 + $0x150] sm:$0xff]
    %v532 = vld [vmem:[%s488 + $0x158] sm:$0xff]
    %v533 = vld [vmem:[%s488 + $0x160] sm:$0xff]
    %v534 = vld [vmem:[%s488 + $0x168] sm:$0xff]
    %v535 = vld [vmem:[%s488 + $0x170] sm:$0xff]
    %v536 = vld [vmem:[%s488 + $0x178] sm:$0xff]
    %v538 = vsel %vm85, %v489, 0
    %v541 = vsel %vm85, %v490, 0
    %v544 = vsel %vm85, %v491, 0
    %v547 = vsel %vm85, %v492, 0
    %v550 = vsel %vm85, %v493, 0
    %v553 = vsel %vm85, %v494, 0
    %v556 = vsel %vm85, %v495, 0
    %v559 = vsel %vm85, %v496, 0
    %v562 = vsel %vm85, %v497, 0
    %v565 = vsel %vm85, %v498, 0
    %v568 = vsel %vm85, %v499, 0
    %v571 = vsel %vm85, %v500, 0
    %v574 = vsel %vm85, %v501, 0
    %v577 = vsel %vm85, %v502, 0
    %v580 = vsel %vm85, %v503, 0
    %v583 = vsel %vm85, %v504, 0
    %v586 = vsel %vm85, %v505, 0
    %v589 = vsel %vm85, %v506, 0
    %v592 = vsel %vm85, %v507, 0
    %v595 = vsel %vm85, %v508, 0
    %v598 = vsel %vm85, %v509, 0
    %v601 = vsel %vm85, %v510, 0
    %v604 = vsel %vm85, %v511, 0
    %v607 = vsel %vm85, %v512, 0
    %v610 = vsel %vm85, %v513, 0
    %v613 = vsel %vm85, %v514, 0
    %v616 = vsel %vm85, %v515, 0
    %v619 = vsel %vm85, %v516, 0
    %v622 = vsel %vm85, %v517, 0
    %v625 = vsel %vm85, %v518, 0
    %v628 = vsel %vm85, %v519, 0
    %v631 = vsel %vm85, %v520, 0
    %v634 = vsel %vm85, %v521, 0
    %v637 = vsel %vm85, %v522, 0
    %v640 = vsel %vm85, %v523, 0
    %v643 = vsel %vm85, %v524, 0
    %v646 = vsel %vm85, %v525, 0
    %v649 = vsel %vm85, %v526, 0
    %v652 = vsel %vm85, %v527, 0
    %v655 = vsel %vm85, %v528, 0
    %v658 = vsel %vm85, %v529, 0
    %v661 = vsel %vm85, %v530, 0
    %v664 = vsel %vm85, %v531, 0
    %v667 = vsel %vm85, %v532, 0
    %v670 = vsel %vm85, %v533, 0
    %v673 = vsel %vm85, %v534, 0
    %v676 = vsel %vm85, %v535, 0
    %v679 = vsel %vm85, %v536, 0
    %681 = vmatpush.msra.mxu0 0.0
    %682 = vmatpush.msra.mxu0 0.0
    %683 = vmatpush.msra.mxu0 0.0
    %684 = vmatpush.msra.mxu0 0.0
    %685 = vmatpush.msra.mxu0 0.0
    %686 = vmatpush.msra.mxu0 0.0
    %687 = vmatpush.msra.mxu0 0.0
    %688 = vmatpush.msra.mxu0 0.0
    %689 = vmatpush.msra.mxu0 0.0
    %690 = vmatpush.msra.mxu0 0.0
    %691 = vmatpush.msra.mxu0 0.0
    %692 = vmatpush.msra.mxu0 0.0
    %693 = vmatpush.msra.mxu0 %v36
    %694 = vmatpush.msra.mxu0 %v35
    %695 = vmatpush.msra.mxu0 %v34
    %696 = vmatpush.msra.mxu0 %v33
    %697 = vmatmul.f32.gmra.mxu0 %v538
    %v698 = vpop.f32.mrf.mxu0
    %v699 = vadd.f32 0.0, %v698
    %700 = vmatmul.f32.gmra.mxu0 %v541
    %v701 = vpop.f32.mrf.mxu0
    %v702 = vadd.f32 0.0, %v701
    %703 = vmatmul.f32.gmra.mxu0 %v544
    %v704 = vpop.f32.mrf.mxu0
    %v705 = vadd.f32 0.0, %v704
    %706 = vmatmul.f32.gmra.mxu0 %v547
    %v707 = vpop.f32.mrf.mxu0
    %v708 = vadd.f32 0.0, %v707
    %709 = vmatmul.f32.gmra.mxu0 %v550
    %v710 = vpop.f32.mrf.mxu0
    %v711 = vadd.f32 0.0, %v710
    %712 = vmatmul.f32.gmra.mxu0 %v553
    %v713 = vpop.f32.mrf.mxu0
    %v714 = vadd.f32 0.0, %v713
    %715 = vmatmul.f32.gmra.mxu0 %v556
    %v716 = vpop.f32.mrf.mxu0
    %v717 = vadd.f32 0.0, %v716
    %718 = vmatmul.f32.gmra.mxu0 %v559
    %v719 = vpop.f32.mrf.mxu0
    %v720 = vadd.f32 0.0, %v719
    %721 = vmatmul.f32.gmra.mxu0 %v562
    %v722 = vpop.f32.mrf.mxu0
    %v723 = vadd.f32 0.0, %v722
    %724 = vmatmul.f32.gmra.mxu0 %v565
    %v725 = vpop.f32.mrf.mxu0
    %v726 = vadd.f32 0.0, %v725
    %727 = vmatmul.f32.gmra.mxu0 %v568
    %v728 = vpop.f32.mrf.mxu0
    %v729 = vadd.f32 0.0, %v728
    %730 = vmatmul.f32.gmra.mxu0 %v571
    %v731 = vpop.f32.mrf.mxu0
    %v732 = vadd.f32 0.0, %v731
    %733 = vmatmul.f32.gmra.mxu0 %v574
    %v734 = vpop.f32.mrf.mxu0
    %v735 = vadd.f32 0.0, %v734
    %736 = vmatmul.f32.gmra.mxu0 %v577
    %v737 = vpop.f32.mrf.mxu0
    %v738 = vadd.f32 0.0, %v737
    %739 = vmatmul.f32.gmra.mxu0 %v580
    %v740 = vpop.f32.mrf.mxu0
    %v741 = vadd.f32 0.0, %v740
    %742 = vmatmul.f32.gmra.mxu0 %v583
    %v743 = vpop.f32.mrf.mxu0
    %v744 = vadd.f32 0.0, %v743
    %745 = vmatmul.f32.gmra.mxu0 %v586
    %v746 = vpop.f32.mrf.mxu0
    %v747 = vadd.f32 0.0, %v746
    %748 = vmatmul.f32.gmra.mxu0 %v589
    %v749 = vpop.f32.mrf.mxu0
    %v750 = vadd.f32 0.0, %v749
    %751 = vmatmul.f32.gmra.mxu0 %v592
    %v752 = vpop.f32.mrf.mxu0
    %v753 = vadd.f32 0.0, %v752
    %754 = vmatmul.f32.gmra.mxu0 %v595
    %v755 = vpop.f32.mrf.mxu0
    %v756 = vadd.f32 0.0, %v755
    %757 = vmatmul.f32.gmra.mxu0 %v598
    %v758 = vpop.f32.mrf.mxu0
    %v759 = vadd.f32 0.0, %v758
    %760 = vmatmul.f32.gmra.mxu0 %v601
    %v761 = vpop.f32.mrf.mxu0
    %v762 = vadd.f32 0.0, %v761
    %763 = vmatmul.f32.gmra.mxu0 %v604
    %v764 = vpop.f32.mrf.mxu0
    %v765 = vadd.f32 0.0, %v764
    %766 = vmatmul.f32.gmra.mxu0 %v607
    %v767 = vpop.f32.mrf.mxu0
    %v768 = vadd.f32 0.0, %v767
    %769 = vmatmul.f32.gmra.mxu0 %v610
    %v770 = vpop.f32.mrf.mxu0
    %v771 = vadd.f32 0.0, %v770
    %772 = vmatmul.f32.gmra.mxu0 %v613
    %v773 = vpop.f32.mrf.mxu0
    %v774 = vadd.f32 0.0, %v773
    %775 = vmatmul.f32.gmra.mxu0 %v616
    %v776 = vpop.f32.mrf.mxu0
    %v777 = vadd.f32 0.0, %v776
    %778 = vmatmul.f32.gmra.mxu0 %v619
    %v779 = vpop.f32.mrf.mxu0
    %v780 = vadd.f32 0.0, %v779
    %781 = vmatmul.f32.gmra.mxu0 %v622
    %v782 = vpop.f32.mrf.mxu0
    %v783 = vadd.f32 0.0, %v782
    %784 = vmatmul.f32.gmra.mxu0 %v625
    %v785 = vpop.f32.mrf.mxu0
    %v786 = vadd.f32 0.0, %v785
    %787 = vmatmul.f32.gmra.mxu0 %v628
    %v788 = vpop.f32.mrf.mxu0
    %v789 = vadd.f32 0.0, %v788
    %790 = vmatmul.f32.gmra.mxu0 %v631
    %v791 = vpop.f32.mrf.mxu0
    %v792 = vadd.f32 0.0, %v791
    %793 = vmatmul.f32.gmra.mxu0 %v634
    %v794 = vpop.f32.mrf.mxu0
    %v795 = vadd.f32 0.0, %v794
    %796 = vmatmul.f32.gmra.mxu0 %v637
    %v797 = vpop.f32.mrf.mxu0
    %v798 = vadd.f32 0.0, %v797
    %799 = vmatmul.f32.gmra.mxu0 %v640
    %v800 = vpop.f32.mrf.mxu0
    %v801 = vadd.f32 0.0, %v800
    %802 = vmatmul.f32.gmra.mxu0 %v643
    %v803 = vpop.f32.mrf.mxu0
    %v804 = vadd.f32 0.0, %v803
    %805 = vmatmul.f32.gmra.mxu0 %v646
    %v806 = vpop.f32.mrf.mxu0
    %v807 = vadd.f32 0.0, %v806
    %808 = vmatmul.f32.gmra.mxu0 %v649
    %v809 = vpop.f32.mrf.mxu0
    %v810 = vadd.f32 0.0, %v809
    %811 = vmatmul.f32.gmra.mxu0 %v652
    %v812 = vpop.f32.mrf.mxu0
    %v813 = vadd.f32 0.0, %v812
    %814 = vmatmul.f32.gmra.mxu0 %v655
    %v815 = vpop.f32.mrf.mxu0
    %v816 = vadd.f32 0.0, %v815
    %817 = vmatmul.f32.gmra.mxu0 %v658
    %v818 = vpop.f32.mrf.mxu0
    %v819 = vadd.f32 0.0, %v818
    %820 = vmatmul.f32.gmra.mxu0 %v661
    %v821 = vpop.f32.mrf.mxu0
    %v822 = vadd.f32 0.0, %v821
    %823 = vmatmul.f32.gmra.mxu0 %v664
    %v824 = vpop.f32.mrf.mxu0
    %v825 = vadd.f32 0.0, %v824
    %826 = vmatmul.f32.gmra.mxu0 %v667
    %v827 = vpop.f32.mrf.mxu0
    %v828 = vadd.f32 0.0, %v827
    %829 = vmatmul.f32.gmra.mxu0 %v670
    %v830 = vpop.f32.mrf.mxu0
    %v831 = vadd.f32 0.0, %v830
    %832 = vmatmul.f32.gmra.mxu0 %v673
    %v833 = vpop.f32.mrf.mxu0
    %v834 = vadd.f32 0.0, %v833
    %835 = vmatmul.f32.gmra.mxu0 %v676
    %v836 = vpop.f32.mrf.mxu0
    %v837 = vadd.f32 0.0, %v836
    %838 = vmatmul.f32.gmra.mxu0 %v679
    %v839 = vpop.f32.mrf.mxu0
    %v840 = vadd.f32 0.0, %v839
    %841 = vdwg.mxu0
    %v842 = vmax.f32 %v440, %v699
    %v843 = vmax.f32 %v441, %v702
    %v844 = vmax.f32 %v442, %v705
    %v845 = vmax.f32 %v443, %v708
    %v846 = vmax.f32 %v444, %v711
    %v847 = vmax.f32 %v445, %v714
    %v848 = vmax.f32 %v446, %v717
    %v849 = vmax.f32 %v447, %v720
    %v850 = vmax.f32 %v448, %v723
    %v851 = vmax.f32 %v449, %v726
    %v852 = vmax.f32 %v450, %v729
    %v853 = vmax.f32 %v451, %v732
    %v854 = vmax.f32 %v452, %v735
    %v855 = vmax.f32 %v453, %v738
    %v856 = vmax.f32 %v454, %v741
    %v857 = vmax.f32 %v455, %v744
    %v858 = vmax.f32 %v456, %v747
    %v859 = vmax.f32 %v457, %v750
    %v860 = vmax.f32 %v458, %v753
    %v861 = vmax.f32 %v459, %v756
    %v862 = vmax.f32 %v460, %v759
    %v863 = vmax.f32 %v461, %v762
    %v864 = vmax.f32 %v462, %v765
    %v865 = vmax.f32 %v463, %v768
    %v866 = vmax.f32 %v464, %v771
    %v867 = vmax.f32 %v465, %v774
    %v868 = vmax.f32 %v466, %v777
    %v869 = vmax.f32 %v467, %v780
    %v870 = vmax.f32 %v468, %v783
    %v871 = vmax.f32 %v469, %v786
    %v872 = vmax.f32 %v470, %v789
    %v873 = vmax.f32 %v471, %v792
    %v874 = vmax.f32 %v472, %v795
    %v875 = vmax.f32 %v473, %v798
    %v876 = vmax.f32 %v474, %v801
    %v877 = vmax.f32 %v475, %v804
    %v878 = vmax.f32 %v476, %v807
    %v879 = vmax.f32 %v477, %v810
    %v880 = vmax.f32 %v478, %v813
    %v881 = vmax.f32 %v479, %v816
    %v882 = vmax.f32 %v480, %v819
    %v883 = vmax.f32 %v481, %v822
    %v884 = vmax.f32 %v482, %v825
    %v885 = vmax.f32 %v483, %v828
    %v886 = vmax.f32 %v484, %v831
    %v887 = vmax.f32 %v485, %v834
    %v888 = vmax.f32 %v486, %v837
    %v889 = vmax.f32 %v487, %v840
    %890 = vst.msk [vmem:[#allocation2] sm:$0xff] %vm391, %v842
    %891 = vst.msk [vmem:[#allocation2 + $0x8] sm:$0xff] %vm391, %v843
    %892 = vst.msk [vmem:[#allocation2 + $0x10] sm:$0xff] %vm391, %v844
    %893 = vst.msk [vmem:[#allocation2 + $0x18] sm:$0xff] %vm391, %v845
    %894 = vst.msk [vmem:[#allocation2 + $0x20] sm:$0xff] %vm391, %v846
    %895 = vst.msk [vmem:[#allocation2 + $0x28] sm:$0xff] %vm391, %v847
    %896 = vst.msk [vmem:[#allocation2 + $0x30] sm:$0xff] %vm391, %v848
    %897 = vst.msk [vmem:[#allocation2 + $0x38] sm:$0xff] %vm391, %v849
    %898 = vst.msk [vmem:[#allocation2 + $0x40] sm:$0xff] %vm391, %v850
    %899 = vst.msk [vmem:[#allocation2 + $0x48] sm:$0xff] %vm391, %v851
    %900 = vst.msk [vmem:[#allocation2 + $0x50] sm:$0xff] %vm391, %v852
    %901 = vst.msk [vmem:[#allocation2 + $0x58] sm:$0xff] %vm391, %v853
    %902 = vst.msk [vmem:[#allocation2 + $0x60] sm:$0xff] %vm391, %v854
    %903 = vst.msk [vmem:[#allocation2 + $0x68] sm:$0xff] %vm391, %v855
    %904 = vst.msk [vmem:[#allocation2 + $0x70] sm:$0xff] %vm391, %v856
    %905 = vst.msk [vmem:[#allocation2 + $0x78] sm:$0xff] %vm391, %v857
    %906 = vst.msk [vmem:[#allocation2 + $0x80] sm:$0xff] %vm391, %v858
    %907 = vst.msk [vmem:[#allocation2 + $0x88] sm:$0xff] %vm391, %v859
    %908 = vst.msk [vmem:[#allocation2 + $0x90] sm:$0xff] %vm391, %v860
    %909 = vst.msk [vmem:[#allocation2 + $0x98] sm:$0xff] %vm391, %v861
    %910 = vst.msk [vmem:[#allocation2 + $0xa0] sm:$0xff] %vm391, %v862
    %911 = vst.msk [vmem:[#allocation2 + $0xa8] sm:$0xff] %vm391, %v863
    %912 = vst.msk [vmem:[#allocation2 + $0xb0] sm:$0xff] %vm391, %v864
    %913 = vst.msk [vmem:[#allocation2 + $0xb8] sm:$0xff] %vm391, %v865
    %914 = vst.msk [vmem:[#allocation2 + $0xc0] sm:$0xff] %vm391, %v866
    %915 = vst.msk [vmem:[#allocation2 + $0xc8] sm:$0xff] %vm391, %v867
    %916 = vst.msk [vmem:[#allocation2 + $0xd0] sm:$0xff] %vm391, %v868
    %917 = vst.msk [vmem:[#allocation2 + $0xd8] sm:$0xff] %vm391, %v869
    %918 = vst.msk [vmem:[#allocation2 + $0xe0] sm:$0xff] %vm391, %v870
    %919 = vst.msk [vmem:[#allocation2 + $0xe8] sm:$0xff] %vm391, %v871
    %920 = vst.msk [vmem:[#allocation2 + $0xf0] sm:$0xff] %vm391, %v872
    %921 = vst.msk [vmem:[#allocation2 + $0xf8] sm:$0xff] %vm391, %v873
    %922 = vst.msk [vmem:[#allocation2 + $0x100] sm:$0xff] %vm391, %v874
    %923 = vst.msk [vmem:[#allocation2 + $0x108] sm:$0xff] %vm391, %v875
    %924 = vst.msk [vmem:[#allocation2 + $0x110] sm:$0xff] %vm391, %v876
    %925 = vst.msk [vmem:[#allocation2 + $0x118] sm:$0xff] %vm391, %v877
    %926 = vst.msk [vmem:[#allocation2 + $0x120] sm:$0xff] %vm391, %v878
    %927 = vst.msk [vmem:[#allocation2 + $0x128] sm:$0xff] %vm391, %v879
    %928 = vst.msk [vmem:[#allocation2 + $0x130] sm:$0xff] %vm391, %v880
    %929 = vst.msk [vmem:[#allocation2 + $0x138] sm:$0xff] %vm391, %v881
    %930 = vst.msk [vmem:[#allocation2 + $0x140] sm:$0xff] %vm391, %v882
    %931 = vst.msk [vmem:[#allocation2 + $0x148] sm:$0xff] %vm391, %v883
    %932 = vst.msk [vmem:[#allocation2 + $0x150] sm:$0xff] %vm391, %v884
    %933 = vst.msk [vmem:[#allocation2 + $0x158] sm:$0xff] %vm391, %v885
    %934 = vst.msk [vmem:[#allocation2 + $0x160] sm:$0xff] %vm391, %v886
    %935 = vst.msk [vmem:[#allocation2 + $0x168] sm:$0xff] %vm391, %v887
    %936 = vst.msk [vmem:[#allocation2 + $0x170] sm:$0xff] %vm391, %v888
    %937 = vst.msk [vmem:[#allocation2 + $0x178] sm:$0xff] %vm391, %v889
    %v938 = vld [vmem:[#allocation2] sm:$0xff]
    %v939 = vld [vmem:[#allocation2 + $0x8] sm:$0xff]
    %v940 = vld [vmem:[#allocation2 + $0x10] sm:$0xff]
    %v941 = vld [vmem:[#allocation2 + $0x18] sm:$0xff]
    %v942 = vld [vmem:[#allocation2 + $0x20] sm:$0xff]
    %v943 = vld [vmem:[#allocation2 + $0x28] sm:$0xff]
    %v944 = vld [vmem:[#allocation2 + $0x30] sm:$0xff]
    %v945 = vld [vmem:[#allocation2 + $0x38] sm:$0xff]
    %v946 = vld [vmem:[#allocation2 + $0x40] sm:$0xff]
    %v947 = vld [vmem:[#allocation2 + $0x48] sm:$0xff]
    %v948 = vld [vmem:[#allocation2 + $0x50] sm:$0xff]
    %v949 = vld [vmem:[#allocation2 + $0x58] sm:$0xff]
    %v950 = vld [vmem:[#allocation2 + $0x60] sm:$0xff]
    %v951 = vld [vmem:[#allocation2 + $0x68] sm:$0xff]
    %v952 = vld [vmem:[#allocation2 + $0x70] sm:$0xff]
    %v953 = vld [vmem:[#allocation2 + $0x78] sm:$0xff]
    %v954 = vld [vmem:[#allocation2 + $0x80] sm:$0xff]
    %v955 = vld [vmem:[#allocation2 + $0x88] sm:$0xff]
    %v956 = vld [vmem:[#allocation2 + $0x90] sm:$0xff]
    %v957 = vld [vmem:[#allocation2 + $0x98] sm:$0xff]
    %v958 = vld [vmem:[#allocation2 + $0xa0] sm:$0xff]
    %v959 = vld [vmem:[#allocation2 + $0xa8] sm:$0xff]
    %v960 = vld [vmem:[#allocation2 + $0xb0] sm:$0xff]
    %v961 = vld [vmem:[#allocation2 + $0xb8] sm:$0xff]
    %v962 = vld [vmem:[#allocation2 + $0xc0] sm:$0xff]
    %v963 = vld [vmem:[#allocation2 + $0xc8] sm:$0xff]
    %v964 = vld [vmem:[#allocation2 + $0xd0] sm:$0xff]
    %v965 = vld [vmem:[#allocation2 + $0xd8] sm:$0xff]
    %v966 = vld [vmem:[#allocation2 + $0xe0] sm:$0xff]
    %v967 = vld [vmem:[#allocation2 + $0xe8] sm:$0xff]
    %v968 = vld [vmem:[#allocation2 + $0xf0] sm:$0xff]
    %v969 = vld [vmem:[#allocation2 + $0xf8] sm:$0xff]
    %v970 = vld [vmem:[#allocation2 + $0x100] sm:$0xff]
    %v971 = vld [vmem:[#allocation2 + $0x108] sm:$0xff]
    %v972 = vld [vmem:[#allocation2 + $0x110] sm:$0xff]
    %v973 = vld [vmem:[#allocation2 + $0x118] sm:$0xff]
    %v974 = vld [vmem:[#allocation2 + $0x120] sm:$0xff]
    %v975 = vld [vmem:[#allocation2 + $0x128] sm:$0xff]
    %v976 = vld [vmem:[#allocation2 + $0x130] sm:$0xff]
    %v977 = vld [vmem:[#allocation2 + $0x138] sm:$0xff]
    %v978 = vld [vmem:[#allocation2 + $0x140] sm:$0xff]
    %v979 = vld [vmem:[#allocation2 + $0x148] sm:$0xff]
    %v980 = vld [vmem:[#allocation2 + $0x150] sm:$0xff]
    %v981 = vld [vmem:[#allocation2 + $0x158] sm:$0xff]
    %v982 = vld [vmem:[#allocation2 + $0x160] sm:$0xff]
    %v983 = vld [vmem:[#allocation2 + $0x168] sm:$0xff]
    %v984 = vld [vmem:[#allocation2 + $0x170] sm:$0xff]
    %v985 = vld [vmem:[#allocation2 + $0x178] sm:$0xff]
    %s986 = scalar_lea.vmem %s0, 768
    %v987 = vld [vmem:[%s986] sm:$0xff]
    %v988 = vld [vmem:[%s986 + $0x8] sm:$0xff]
    %v989 = vld [vmem:[%s986 + $0x10] sm:$0xff]
    %v990 = vld [vmem:[%s986 + $0x18] sm:$0xff]
    %v991 = vld [vmem:[%s986 + $0x20] sm:$0xff]
    %v992 = vld [vmem:[%s986 + $0x28] sm:$0xff]
    %v993 = vld [vmem:[%s986 + $0x30] sm:$0xff]
    %v994 = vld [vmem:[%s986 + $0x38] sm:$0xff]
    %v995 = vld [vmem:[%s986 + $0x40] sm:$0xff]
    %v996 = vld [vmem:[%s986 + $0x48] sm:$0xff]
    %v997 = vld [vmem:[%s986 + $0x50] sm:$0xff]
    %v998 = vld [vmem:[%s986 + $0x58] sm:$0xff]
    %v999 = vld [vmem:[%s986 + $0x60] sm:$0xff]
    %v1000 = vld [vmem:[%s986 + $0x68] sm:$0xff]
    %v1001 = vld [vmem:[%s986 + $0x70] sm:$0xff]
    %v1002 = vld [vmem:[%s986 + $0x78] sm:$0xff]
    %v1003 = vld [vmem:[%s986 + $0x80] sm:$0xff]
    %v1004 = vld [vmem:[%s986 + $0x88] sm:$0xff]
    %v1005 = vld [vmem:[%s986 + $0x90] sm:$0xff]
    %v1006 = vld [vmem:[%s986 + $0x98] sm:$0xff]
    %v1007 = vld [vmem:[%s986 + $0xa0] sm:$0xff]
    %v1008 = vld [vmem:[%s986 + $0xa8] sm:$0xff]
    %v1009 = vld [vmem:[%s986 + $0xb0] sm:$0xff]
    %v1010 = vld [vmem:[%s986 + $0xb8] sm:$0xff]
    %v1011 = vld [vmem:[%s986 + $0xc0] sm:$0xff]
    %v1012 = vld [vmem:[%s986 + $0xc8] sm:$0xff]
    %v1013 = vld [vmem:[%s986 + $0xd0] sm:$0xff]
    %v1014 = vld [vmem:[%s986 + $0xd8] sm:$0xff]
    %v1015 = vld [vmem:[%s986 + $0xe0] sm:$0xff]
    %v1016 = vld [vmem:[%s986 + $0xe8] sm:$0xff]
    %v1017 = vld [vmem:[%s986 + $0xf0] sm:$0xff]
    %v1018 = vld [vmem:[%s986 + $0xf8] sm:$0xff]
    %v1019 = vld [vmem:[%s986 + $0x100] sm:$0xff]
    %v1020 = vld [vmem:[%s986 + $0x108] sm:$0xff]
    %v1021 = vld [vmem:[%s986 + $0x110] sm:$0xff]
    %v1022 = vld [vmem:[%s986 + $0x118] sm:$0xff]
    %v1023 = vld [vmem:[%s986 + $0x120] sm:$0xff]
    %v1024 = vld [vmem:[%s986 + $0x128] sm:$0xff]
    %v1025 = vld [vmem:[%s986 + $0x130] sm:$0xff]
    %v1026 = vld [vmem:[%s986 + $0x138] sm:$0xff]
    %v1027 = vld [vmem:[%s986 + $0x140] sm:$0xff]
    %v1028 = vld [vmem:[%s986 + $0x148] sm:$0xff]
    %v1029 = vld [vmem:[%s986 + $0x150] sm:$0xff]
    %v1030 = vld [vmem:[%s986 + $0x158] sm:$0xff]
    %v1031 = vld [vmem:[%s986 + $0x160] sm:$0xff]
    %v1032 = vld [vmem:[%s986 + $0x168] sm:$0xff]
    %v1033 = vld [vmem:[%s986 + $0x170] sm:$0xff]
    %v1034 = vld [vmem:[%s986 + $0x178] sm:$0xff]
    %v1036 = vsel %vm85, %v987, 0
    %v1039 = vsel %vm85, %v988, 0
    %v1042 = vsel %vm85, %v989, 0
    %v1045 = vsel %vm85, %v990, 0
    %v1048 = vsel %vm85, %v991, 0
    %v1051 = vsel %vm85, %v992, 0
    %v1054 = vsel %vm85, %v993, 0
    %v1057 = vsel %vm85, %v994, 0
    %v1060 = vsel %vm85, %v995, 0
    %v1063 = vsel %vm85, %v996, 0
    %v1066 = vsel %vm85, %v997, 0
    %v1069 = vsel %vm85, %v998, 0
    %v1072 = vsel %vm85, %v999, 0
    %v1075 = vsel %vm85, %v1000, 0
    %v1078 = vsel %vm85, %v1001, 0
    %v1081 = vsel %vm85, %v1002, 0
    %v1084 = vsel %vm85, %v1003, 0
    %v1087 = vsel %vm85, %v1004, 0
    %v1090 = vsel %vm85, %v1005, 0
    %v1093 = vsel %vm85, %v1006, 0
    %v1096 = vsel %vm85, %v1007, 0
    %v1099 = vsel %vm85, %v1008, 0
    %v1102 = vsel %vm85, %v1009, 0
    %v1105 = vsel %vm85, %v1010, 0
    %v1108 = vsel %vm85, %v1011, 0
    %v1111 = vsel %vm85, %v1012, 0
    %v1114 = vsel %vm85, %v1013, 0
    %v1117 = vsel %vm85, %v1014, 0
    %v1120 = vsel %vm85, %v1015, 0
    %v1123 = vsel %vm85, %v1016, 0
    %v1126 = vsel %vm85, %v1017, 0
    %v1129 = vsel %vm85, %v1018, 0
    %v1132 = vsel %vm85, %v1019, 0
    %v1135 = vsel %vm85, %v1020, 0
    %v1138 = vsel %vm85, %v1021, 0
    %v1141 = vsel %vm85, %v1022, 0
    %v1144 = vsel %vm85, %v1023, 0
    %v1147 = vsel %vm85, %v1024, 0
    %v1150 = vsel %vm85, %v1025, 0
    %v1153 = vsel %vm85, %v1026, 0
    %v1156 = vsel %vm85, %v1027, 0
    %v1159 = vsel %vm85, %v1028, 0
    %v1162 = vsel %vm85, %v1029, 0
    %v1165 = vsel %vm85, %v1030, 0
    %v1168 = vsel %vm85, %v1031, 0
    %v1171 = vsel %vm85, %v1032, 0
    %v1174 = vsel %vm85, %v1033, 0
    %v1177 = vsel %vm85, %v1034, 0
    %1179 = vmatpush.msra.mxu0 0.0
    %1180 = vmatpush.msra.mxu0 0.0
    %1181 = vmatpush.msra.mxu0 0.0
    %1182 = vmatpush.msra.mxu0 0.0
    %1183 = vmatpush.msra.mxu0 0.0
    %1184 = vmatpush.msra.mxu0 0.0
    %1185 = vmatpush.msra.mxu0 0.0
    %1186 = vmatpush.msra.mxu0 0.0
    %1187 = vmatpush.msra.mxu0 0.0
    %1188 = vmatpush.msra.mxu0 0.0
    %1189 = vmatpush.msra.mxu0 0.0
    %1190 = vmatpush.msra.mxu0 0.0
    %1191 = vmatpush.msra.mxu0 %v36
    %1192 = vmatpush.msra.mxu0 %v35
    %1193 = vmatpush.msra.mxu0 %v34
    %1194 = vmatpush.msra.mxu0 %v33
    %1195 = vmatmul.f32.gmra.mxu0 %v1036
    %v1196 = vpop.f32.mrf.mxu0
    %v1197 = vadd.f32 0.0, %v1196
    %1198 = vmatmul.f32.gmra.mxu0 %v1039
    %v1199 = vpop.f32.mrf.mxu0
    %v1200 = vadd.f32 0.0, %v1199
    %1201 = vmatmul.f32.gmra.mxu0 %v1042
    %v1202 = vpop.f32.mrf.mxu0
    %v1203 = vadd.f32 0.0, %v1202
    %1204 = vmatmul.f32.gmra.mxu0 %v1045
    %v1205 = vpop.f32.mrf.mxu0
    %v1206 = vadd.f32 0.0, %v1205
    %1207 = vmatmul.f32.gmra.mxu0 %v1048
    %v1208 = vpop.f32.mrf.mxu0
    %v1209 = vadd.f32 0.0, %v1208
    %1210 = vmatmul.f32.gmra.mxu0 %v1051
    %v1211 = vpop.f32.mrf.mxu0
    %v1212 = vadd.f32 0.0, %v1211
    %1213 = vmatmul.f32.gmra.mxu0 %v1054
    %v1214 = vpop.f32.mrf.mxu0
    %v1215 = vadd.f32 0.0, %v1214
    %1216 = vmatmul.f32.gmra.mxu0 %v1057
    %v1217 = vpop.f32.mrf.mxu0
    %v1218 = vadd.f32 0.0, %v1217
    %1219 = vmatmul.f32.gmra.mxu0 %v1060
    %v1220 = vpop.f32.mrf.mxu0
    %v1221 = vadd.f32 0.0, %v1220
    %1222 = vmatmul.f32.gmra.mxu0 %v1063
    %v1223 = vpop.f32.mrf.mxu0
    %v1224 = vadd.f32 0.0, %v1223
    %1225 = vmatmul.f32.gmra.mxu0 %v1066
    %v1226 = vpop.f32.mrf.mxu0
    %v1227 = vadd.f32 0.0, %v1226
    %1228 = vmatmul.f32.gmra.mxu0 %v1069
    %v1229 = vpop.f32.mrf.mxu0
    %v1230 = vadd.f32 0.0, %v1229
    %1231 = vmatmul.f32.gmra.mxu0 %v1072
    %v1232 = vpop.f32.mrf.mxu0
    %v1233 = vadd.f32 0.0, %v1232
    %1234 = vmatmul.f32.gmra.mxu0 %v1075
    %v1235 = vpop.f32.mrf.mxu0
    %v1236 = vadd.f32 0.0, %v1235
    %1237 = vmatmul.f32.gmra.mxu0 %v1078
    %v1238 = vpop.f32.mrf.mxu0
    %v1239 = vadd.f32 0.0, %v1238
    %1240 = vmatmul.f32.gmra.mxu0 %v1081
    %v1241 = vpop.f32.mrf.mxu0
    %v1242 = vadd.f32 0.0, %v1241
    %1243 = vmatmul.f32.gmra.mxu0 %v1084
    %v1244 = vpop.f32.mrf.mxu0
    %v1245 = vadd.f32 0.0, %v1244
    %1246 = vmatmul.f32.gmra.mxu0 %v1087
    %v1247 = vpop.f32.mrf.mxu0
    %v1248 = vadd.f32 0.0, %v1247
    %1249 = vmatmul.f32.gmra.mxu0 %v1090
    %v1250 = vpop.f32.mrf.mxu0
    %v1251 = vadd.f32 0.0, %v1250
    %1252 = vmatmul.f32.gmra.mxu0 %v1093
    %v1253 = vpop.f32.mrf.mxu0
    %v1254 = vadd.f32 0.0, %v1253
    %1255 = vmatmul.f32.gmra.mxu0 %v1096
    %v1256 = vpop.f32.mrf.mxu0
    %v1257 = vadd.f32 0.0, %v1256
    %1258 = vmatmul.f32.gmra.mxu0 %v1099
    %v1259 = vpop.f32.mrf.mxu0
    %v1260 = vadd.f32 0.0, %v1259
    %1261 = vmatmul.f32.gmra.mxu0 %v1102
    %v1262 = vpop.f32.mrf.mxu0
    %v1263 = vadd.f32 0.0, %v1262
    %1264 = vmatmul.f32.gmra.mxu0 %v1105
    %v1265 = vpop.f32.mrf.mxu0
    %v1266 = vadd.f32 0.0, %v1265
    %1267 = vmatmul.f32.gmra.mxu0 %v1108
    %v1268 = vpop.f32.mrf.mxu0
    %v1269 = vadd.f32 0.0, %v1268
    %1270 = vmatmul.f32.gmra.mxu0 %v1111
    %v1271 = vpop.f32.mrf.mxu0
    %v1272 = vadd.f32 0.0, %v1271
    %1273 = vmatmul.f32.gmra.mxu0 %v1114
    %v1274 = vpop.f32.mrf.mxu0
    %v1275 = vadd.f32 0.0, %v1274
    %1276 = vmatmul.f32.gmra.mxu0 %v1117
    %v1277 = vpop.f32.mrf.mxu0
    %v1278 = vadd.f32 0.0, %v1277
    %1279 = vmatmul.f32.gmra.mxu0 %v1120
    %v1280 = vpop.f32.mrf.mxu0
    %v1281 = vadd.f32 0.0, %v1280
    %1282 = vmatmul.f32.gmra.mxu0 %v1123
    %v1283 = vpop.f32.mrf.mxu0
    %v1284 = vadd.f32 0.0, %v1283
    %1285 = vmatmul.f32.gmra.mxu0 %v1126
    %v1286 = vpop.f32.mrf.mxu0
    %v1287 = vadd.f32 0.0, %v1286
    %1288 = vmatmul.f32.gmra.mxu0 %v1129
    %v1289 = vpop.f32.mrf.mxu0
    %v1290 = vadd.f32 0.0, %v1289
    %1291 = vmatmul.f32.gmra.mxu0 %v1132
    %v1292 = vpop.f32.mrf.mxu0
    %v1293 = vadd.f32 0.0, %v1292
    %1294 = vmatmul.f32.gmra.mxu0 %v1135
    %v1295 = vpop.f32.mrf.mxu0
    %v1296 = vadd.f32 0.0, %v1295
    %1297 = vmatmul.f32.gmra.mxu0 %v1138
    %v1298 = vpop.f32.mrf.mxu0
    %v1299 = vadd.f32 0.0, %v1298
    %1300 = vmatmul.f32.gmra.mxu0 %v1141
    %v1301 = vpop.f32.mrf.mxu0
    %v1302 = vadd.f32 0.0, %v1301
    %1303 = vmatmul.f32.gmra.mxu0 %v1144
    %v1304 = vpop.f32.mrf.mxu0
    %v1305 = vadd.f32 0.0, %v1304
    %1306 = vmatmul.f32.gmra.mxu0 %v1147
    %v1307 = vpop.f32.mrf.mxu0
    %v1308 = vadd.f32 0.0, %v1307
    %1309 = vmatmul.f32.gmra.mxu0 %v1150
    %v1310 = vpop.f32.mrf.mxu0
    %v1311 = vadd.f32 0.0, %v1310
    %1312 = vmatmul.f32.gmra.mxu0 %v1153
    %v1313 = vpop.f32.mrf.mxu0
    %v1314 = vadd.f32 0.0, %v1313
    %1315 = vmatmul.f32.gmra.mxu0 %v1156
    %v1316 = vpop.f32.mrf.mxu0
    %v1317 = vadd.f32 0.0, %v1316
    %1318 = vmatmul.f32.gmra.mxu0 %v1159
    %v1319 = vpop.f32.mrf.mxu0
    %v1320 = vadd.f32 0.0, %v1319
    %1321 = vmatmul.f32.gmra.mxu0 %v1162
    %v1322 = vpop.f32.mrf.mxu0
    %v1323 = vadd.f32 0.0, %v1322
    %1324 = vmatmul.f32.gmra.mxu0 %v1165
    %v1325 = vpop.f32.mrf.mxu0
    %v1326 = vadd.f32 0.0, %v1325
    %1327 = vmatmul.f32.gmra.mxu0 %v1168
    %v1328 = vpop.f32.mrf.mxu0
    %v1329 = vadd.f32 0.0, %v1328
    %1330 = vmatmul.f32.gmra.mxu0 %v1171
    %v1331 = vpop.f32.mrf.mxu0
    %v1332 = vadd.f32 0.0, %v1331
    %1333 = vmatmul.f32.gmra.mxu0 %v1174
    %v1334 = vpop.f32.mrf.mxu0
    %v1335 = vadd.f32 0.0, %v1334
    %1336 = vmatmul.f32.gmra.mxu0 %v1177
    %v1337 = vpop.f32.mrf.mxu0
    %v1338 = vadd.f32 0.0, %v1337
    %1339 = vdwg.mxu0
    %v1340 = vmax.f32 %v938, %v1197
    %v1341 = vmax.f32 %v939, %v1200
    %v1342 = vmax.f32 %v940, %v1203
    %v1343 = vmax.f32 %v941, %v1206
    %v1344 = vmax.f32 %v942, %v1209
    %v1345 = vmax.f32 %v943, %v1212
    %v1346 = vmax.f32 %v944, %v1215
    %v1347 = vmax.f32 %v945, %v1218
    %v1348 = vmax.f32 %v946, %v1221
    %v1349 = vmax.f32 %v947, %v1224
    %v1350 = vmax.f32 %v948, %v1227
    %v1351 = vmax.f32 %v949, %v1230
    %v1352 = vmax.f32 %v950, %v1233
    %v1353 = vmax.f32 %v951, %v1236
    %v1354 = vmax.f32 %v952, %v1239
    %v1355 = vmax.f32 %v953, %v1242
    %v1356 = vmax.f32 %v954, %v1245
    %v1357 = vmax.f32 %v955, %v1248
    %v1358 = vmax.f32 %v956, %v1251
    %v1359 = vmax.f32 %v957, %v1254
    %v1360 = vmax.f32 %v958, %v1257
    %v1361 = vmax.f32 %v959, %v1260
    %v1362 = vmax.f32 %v960, %v1263
    %v1363 = vmax.f32 %v961, %v1266
    %v1364 = vmax.f32 %v962, %v1269
    %v1365 = vmax.f32 %v963, %v1272
    %v1366 = vmax.f32 %v964, %v1275
    %v1367 = vmax.f32 %v965, %v1278
    %v1368 = vmax.f32 %v966, %v1281
    %v1369 = vmax.f32 %v967, %v1284
    %v1370 = vmax.f32 %v968, %v1287
    %v1371 = vmax.f32 %v969, %v1290
    %v1372 = vmax.f32 %v970, %v1293
    %v1373 = vmax.f32 %v971, %v1296
    %v1374 = vmax.f32 %v972, %v1299
    %v1375 = vmax.f32 %v973, %v1302
    %v1376 = vmax.f32 %v974, %v1305
    %v1377 = vmax.f32 %v975, %v1308
    %v1378 = vmax.f32 %v976, %v1311
    %v1379 = vmax.f32 %v977, %v1314
    %v1380 = vmax.f32 %v978, %v1317
    %v1381 = vmax.f32 %v979, %v1320
    %v1382 = vmax.f32 %v980, %v1323
    %v1383 = vmax.f32 %v981, %v1326
    %v1384 = vmax.f32 %v982, %v1329
    %v1385 = vmax.f32 %v983, %v1332
    %v1386 = vmax.f32 %v984, %v1335
    %v1387 = vmax.f32 %v985, %v1338
    %1388 = vst.msk [vmem:[#allocation2] sm:$0xff] %vm391, %v1340
    %1389 = vst.msk [vmem:[#allocation2 + $0x8] sm:$0xff] %vm391, %v1341
    %1390 = vst.msk [vmem:[#allocation2 + $0x10] sm:$0xff] %vm391, %v1342
    %1391 = vst.msk [vmem:[#allocation2 + $0x18] sm:$0xff] %vm391, %v1343
    %1392 = vst.msk [vmem:[#allocation2 + $0x20] sm:$0xff] %vm391, %v1344
    %1393 = vst.msk [vmem:[#allocation2 + $0x28] sm:$0xff] %vm391, %v1345
    %1394 = vst.msk [vmem:[#allocation2 + $0x30] sm:$0xff] %vm391, %v1346
    %1395 = vst.msk [vmem:[#allocation2 + $0x38] sm:$0xff] %vm391, %v1347
    %1396 = vst.msk [vmem:[#allocation2 + $0x40] sm:$0xff] %vm391, %v1348
    %1397 = vst.msk [vmem:[#allocation2 + $0x48] sm:$0xff] %vm391, %v1349
    %1398 = vst.msk [vmem:[#allocation2 + $0x50] sm:$0xff] %vm391, %v1350
    %1399 = vst.msk [vmem:[#allocation2 + $0x58] sm:$0xff] %vm391, %v1351
    %1400 = vst.msk [vmem:[#allocation2 + $0x60] sm:$0xff] %vm391, %v1352
    %1401 = vst.msk [vmem:[#allocation2 + $0x68] sm:$0xff] %vm391, %v1353
    %1402 = vst.msk [vmem:[#allocation2 + $0x70] sm:$0xff] %vm391, %v1354
    %1403 = vst.msk [vmem:[#allocation2 + $0x78] sm:$0xff] %vm391, %v1355
    %1404 = vst.msk [vmem:[#allocation2 + $0x80] sm:$0xff] %vm391, %v1356
    %1405 = vst.msk [vmem:[#allocation2 + $0x88] sm:$0xff] %vm391, %v1357
    %1406 = vst.msk [vmem:[#allocation2 + $0x90] sm:$0xff] %vm391, %v1358
    %1407 = vst.msk [vmem:[#allocation2 + $0x98] sm:$0xff] %vm391, %v1359
    %1408 = vst.msk [vmem:[#allocation2 + $0xa0] sm:$0xff] %vm391, %v1360
    %1409 = vst.msk [vmem:[#allocation2 + $0xa8] sm:$0xff] %vm391, %v1361
    %1410 = vst.msk [vmem:[#allocation2 + $0xb0] sm:$0xff] %vm391, %v1362
    %1411 = vst.msk [vmem:[#allocation2 + $0xb8] sm:$0xff] %vm391, %v1363
    %1412 = vst.msk [vmem:[#allocation2 + $0xc0] sm:$0xff] %vm391, %v1364
    %1413 = vst.msk [vmem:[#allocation2 + $0xc8] sm:$0xff] %vm391, %v1365
    %1414 = vst.msk [vmem:[#allocation2 + $0xd0] sm:$0xff] %vm391, %v1366
    %1415 = vst.msk [vmem:[#allocation2 + $0xd8] sm:$0xff] %vm391, %v1367
    %1416 = vst.msk [vmem:[#allocation2 + $0xe0] sm:$0xff] %vm391, %v1368
    %1417 = vst.msk [vmem:[#allocation2 + $0xe8] sm:$0xff] %vm391, %v1369
    %1418 = vst.msk [vmem:[#allocation2 + $0xf0] sm:$0xff] %vm391, %v1370
    %1419 = vst.msk [vmem:[#allocation2 + $0xf8] sm:$0xff] %vm391, %v1371
    %1420 = vst.msk [vmem:[#allocation2 + $0x100] sm:$0xff] %vm391, %v1372
    %1421 = vst.msk [vmem:[#allocation2 + $0x108] sm:$0xff] %vm391, %v1373
    %1422 = vst.msk [vmem:[#allocation2 + $0x110] sm:$0xff] %vm391, %v1374
    %1423 = vst.msk [vmem:[#allocation2 + $0x118] sm:$0xff] %vm391, %v1375
    %1424 = vst.msk [vmem:[#allocation2 + $0x120] sm:$0xff] %vm391, %v1376
    %1425 = vst.msk [vmem:[#allocation2 + $0x128] sm:$0xff] %vm391, %v1377
    %1426 = vst.msk [vmem:[#allocation2 + $0x130] sm:$0xff] %vm391, %v1378
    %1427 = vst.msk [vmem:[#allocation2 + $0x138] sm:$0xff] %vm391, %v1379
    %1428 = vst.msk [vmem:[#allocation2 + $0x140] sm:$0xff] %vm391, %v1380
    %1429 = vst.msk [vmem:[#allocation2 + $0x148] sm:$0xff] %vm391, %v1381
    %1430 = vst.msk [vmem:[#allocation2 + $0x150] sm:$0xff] %vm391, %v1382
    %1431 = vst.msk [vmem:[#allocation2 + $0x158] sm:$0xff] %vm391, %v1383
    %1432 = vst.msk [vmem:[#allocation2 + $0x160] sm:$0xff] %vm391, %v1384
    %1433 = vst.msk [vmem:[#allocation2 + $0x168] sm:$0xff] %vm391, %v1385
    %1434 = vst.msk [vmem:[#allocation2 + $0x170] sm:$0xff] %vm391, %v1386
    %1435 = vst.msk [vmem:[#allocation2 + $0x178] sm:$0xff] %vm391, %v1387
    %v1436 = vld [vmem:[#allocation2] sm:$0xff]
    %v1437 = vld [vmem:[#allocation2 + $0x8] sm:$0xff]
    %v1438 = vld [vmem:[#allocation2 + $0x10] sm:$0xff]
    %v1439 = vld [vmem:[#allocation2 + $0x18] sm:$0xff]
    %v1440 = vld [vmem:[#allocation2 + $0x20] sm:$0xff]
    %v1441 = vld [vmem:[#allocation2 + $0x28] sm:$0xff]
    %v1442 = vld [vmem:[#allocation2 + $0x30] sm:$0xff]
    %v1443 = vld [vmem:[#allocation2 + $0x38] sm:$0xff]
    %v1444 = vld [vmem:[#allocation2 + $0x40] sm:$0xff]
    %v1445 = vld [vmem:[#allocation2 + $0x48] sm:$0xff]
    %v1446 = vld [vmem:[#allocation2 + $0x50] sm:$0xff]
    %v1447 = vld [vmem:[#allocation2 + $0x58] sm:$0xff]
    %v1448 = vld [vmem:[#allocation2 + $0x60] sm:$0xff]
    %v1449 = vld [vmem:[#allocation2 + $0x68] sm:$0xff]
    %v1450 = vld [vmem:[#allocation2 + $0x70] sm:$0xff]
    %v1451 = vld [vmem:[#allocation2 + $0x78] sm:$0xff]
    %v1452 = vld [vmem:[#allocation2 + $0x80] sm:$0xff]
    %v1453 = vld [vmem:[#allocation2 + $0x88] sm:$0xff]
    %v1454 = vld [vmem:[#allocation2 + $0x90] sm:$0xff]
    %v1455 = vld [vmem:[#allocation2 + $0x98] sm:$0xff]
    %v1456 = vld [vmem:[#allocation2 + $0xa0] sm:$0xff]
    %v1457 = vld [vmem:[#allocation2 + $0xa8] sm:$0xff]
    %v1458 = vld [vmem:[#allocation2 + $0xb0] sm:$0xff]
    %v1459 = vld [vmem:[#allocation2 + $0xb8] sm:$0xff]
    %v1460 = vld [vmem:[#allocation2 + $0xc0] sm:$0xff]
    %v1461 = vld [vmem:[#allocation2 + $0xc8] sm:$0xff]
    %v1462 = vld [vmem:[#allocation2 + $0xd0] sm:$0xff]
    %v1463 = vld [vmem:[#allocation2 + $0xd8] sm:$0xff]
    %v1464 = vld [vmem:[#allocation2 + $0xe0] sm:$0xff]
    %v1465 = vld [vmem:[#allocation2 + $0xe8] sm:$0xff]
    %v1466 = vld [vmem:[#allocation2 + $0xf0] sm:$0xff]
    %v1467 = vld [vmem:[#allocation2 + $0xf8] sm:$0xff]
    %v1468 = vld [vmem:[#allocation2 + $0x100] sm:$0xff]
    %v1469 = vld [vmem:[#allocation2 + $0x108] sm:$0xff]
    %v1470 = vld [vmem:[#allocation2 + $0x110] sm:$0xff]
    %v1471 = vld [vmem:[#allocation2 + $0x118] sm:$0xff]
    %v1472 = vld [vmem:[#allocation2 + $0x120] sm:$0xff]
    %v1473 = vld [vmem:[#allocation2 + $0x128] sm:$0xff]
    %v1474 = vld [vmem:[#allocation2 + $0x130] sm:$0xff]
    %v1475 = vld [vmem:[#allocation2 + $0x138] sm:$0xff]
    %v1476 = vld [vmem:[#allocation2 + $0x140] sm:$0xff]
    %v1477 = vld [vmem:[#allocation2 + $0x148] sm:$0xff]
    %v1478 = vld [vmem:[#allocation2 + $0x150] sm:$0xff]
    %v1479 = vld [vmem:[#allocation2 + $0x158] sm:$0xff]
    %v1480 = vld [vmem:[#allocation2 + $0x160] sm:$0xff]
    %v1481 = vld [vmem:[#allocation2 + $0x168] sm:$0xff]
    %v1482 = vld [vmem:[#allocation2 + $0x170] sm:$0xff]
    %v1483 = vld [vmem:[#allocation2 + $0x178] sm:$0xff]
    %s1484 = scalar_lea.vmem %s0, 1152
    %v1485 = vld [vmem:[%s1484] sm:$0xff]
    %v1486 = vld [vmem:[%s1484 + $0x8] sm:$0xff]
    %v1487 = vld [vmem:[%s1484 + $0x10] sm:$0xff]
    %v1488 = vld [vmem:[%s1484 + $0x18] sm:$0xff]
    %v1489 = vld [vmem:[%s1484 + $0x20] sm:$0xff]
    %v1490 = vld [vmem:[%s1484 + $0x28] sm:$0xff]
    %v1491 = vld [vmem:[%s1484 + $0x30] sm:$0xff]
    %v1492 = vld [vmem:[%s1484 + $0x38] sm:$0xff]
    %v1493 = vld [vmem:[%s1484 + $0x40] sm:$0xff]
    %v1494 = vld [vmem:[%s1484 + $0x48] sm:$0xff]
    %v1495 = vld [vmem:[%s1484 + $0x50] sm:$0xff]
    %v1496 = vld [vmem:[%s1484 + $0x58] sm:$0xff]
    %v1497 = vld [vmem:[%s1484 + $0x60] sm:$0xff]
    %v1498 = vld [vmem:[%s1484 + $0x68] sm:$0xff]
    %v1499 = vld [vmem:[%s1484 + $0x70] sm:$0xff]
    %v1500 = vld [vmem:[%s1484 + $0x78] sm:$0xff]
    %v1501 = vld [vmem:[%s1484 + $0x80] sm:$0xff]
    %v1502 = vld [vmem:[%s1484 + $0x88] sm:$0xff]
    %v1503 = vld [vmem:[%s1484 + $0x90] sm:$0xff]
    %v1504 = vld [vmem:[%s1484 + $0x98] sm:$0xff]
    %v1505 = vld [vmem:[%s1484 + $0xa0] sm:$0xff]
    %v1506 = vld [vmem:[%s1484 + $0xa8] sm:$0xff]
    %v1507 = vld [vmem:[%s1484 + $0xb0] sm:$0xff]
    %v1508 = vld [vmem:[%s1484 + $0xb8] sm:$0xff]
    %v1509 = vld [vmem:[%s1484 + $0xc0] sm:$0xff]
    %v1510 = vld [vmem:[%s1484 + $0xc8] sm:$0xff]
    %v1511 = vld [vmem:[%s1484 + $0xd0] sm:$0xff]
    %v1512 = vld [vmem:[%s1484 + $0xd8] sm:$0xff]
    %v1513 = vld [vmem:[%s1484 + $0xe0] sm:$0xff]
    %v1514 = vld [vmem:[%s1484 + $0xe8] sm:$0xff]
    %v1515 = vld [vmem:[%s1484 + $0xf0] sm:$0xff]
    %v1516 = vld [vmem:[%s1484 + $0xf8] sm:$0xff]
    %v1517 = vld [vmem:[%s1484 + $0x100] sm:$0xff]
    %v1518 = vld [vmem:[%s1484 + $0x108] sm:$0xff]
    %v1519 = vld [vmem:[%s1484 + $0x110] sm:$0xff]
    %v1520 = vld [vmem:[%s1484 + $0x118] sm:$0xff]
    %v1521 = vld [vmem:[%s1484 + $0x120] sm:$0xff]
    %v1522 = vld [vmem:[%s1484 + $0x128] sm:$0xff]
    %v1523 = vld [vmem:[%s1484 + $0x130] sm:$0xff]
    %v1524 = vld [vmem:[%s1484 + $0x138] sm:$0xff]
    %v1525 = vld [vmem:[%s1484 + $0x140] sm:$0xff]
    %v1526 = vld [vmem:[%s1484 + $0x148] sm:$0xff]
    %v1527 = vld [vmem:[%s1484 + $0x150] sm:$0xff]
    %v1528 = vld [vmem:[%s1484 + $0x158] sm:$0xff]
    %v1529 = vld [vmem:[%s1484 + $0x160] sm:$0xff]
    %v1530 = vld [vmem:[%s1484 + $0x168] sm:$0xff]
    %v1531 = vld [vmem:[%s1484 + $0x170] sm:$0xff]
    %v1532 = vld [vmem:[%s1484 + $0x178] sm:$0xff]
    %v1534 = vsel %vm85, %v1485, 0
    %v1537 = vsel %vm85, %v1486, 0
    %v1540 = vsel %vm85, %v1487, 0
    %v1543 = vsel %vm85, %v1488, 0
    %v1546 = vsel %vm85, %v1489, 0
    %v1549 = vsel %vm85, %v1490, 0
    %v1552 = vsel %vm85, %v1491, 0
    %v1555 = vsel %vm85, %v1492, 0
    %v1558 = vsel %vm85, %v1493, 0
    %v1561 = vsel %vm85, %v1494, 0
    %v1564 = vsel %vm85, %v1495, 0
    %v1567 = vsel %vm85, %v1496, 0
    %v1570 = vsel %vm85, %v1497, 0
    %v1573 = vsel %vm85, %v1498, 0
    %v1576 = vsel %vm85, %v1499, 0
    %v1579 = vsel %vm85, %v1500, 0
    %v1582 = vsel %vm85, %v1501, 0
    %v1585 = vsel %vm85, %v1502, 0
    %v1588 = vsel %vm85, %v1503, 0
    %v1591 = vsel %vm85, %v1504, 0
    %v1594 = vsel %vm85, %v1505, 0
    %v1597 = vsel %vm85, %v1506, 0
    %v1600 = vsel %vm85, %v1507, 0
    %v1603 = vsel %vm85, %v1508, 0
    %v1606 = vsel %vm85, %v1509, 0
    %v1609 = vsel %vm85, %v1510, 0
    %v1612 = vsel %vm85, %v1511, 0
    %v1615 = vsel %vm85, %v1512, 0
    %v1618 = vsel %vm85, %v1513, 0
    %v1621 = vsel %vm85, %v1514, 0
    %v1624 = vsel %vm85, %v1515, 0
    %v1627 = vsel %vm85, %v1516, 0
    %v1630 = vsel %vm85, %v1517, 0
    %v1633 = vsel %vm85, %v1518, 0
    %v1636 = vsel %vm85, %v1519, 0
    %v1639 = vsel %vm85, %v1520, 0
    %v1642 = vsel %vm85, %v1521, 0
    %v1645 = vsel %vm85, %v1522, 0
    %v1648 = vsel %vm85, %v1523, 0
    %v1651 = vsel %vm85, %v1524, 0
    %v1654 = vsel %vm85, %v1525, 0
    %v1657 = vsel %vm85, %v1526, 0
    %v1660 = vsel %vm85, %v1527, 0
    %v1663 = vsel %vm85, %v1528, 0
    %v1666 = vsel %vm85, %v1529, 0
    %v1669 = vsel %vm85, %v1530, 0
    %v1672 = vsel %vm85, %v1531, 0
    %v1675 = vsel %vm85, %v1532, 0
    %1677 = vmatpush.msra.mxu0 0.0
    %1678 = vmatpush.msra.mxu0 0.0
    %1679 = vmatpush.msra.mxu0 0.0
    %1680 = vmatpush.msra.mxu0 0.0
    %1681 = vmatpush.msra.mxu0 0.0
    %1682 = vmatpush.msra.mxu0 0.0
    %1683 = vmatpush.msra.mxu0 0.0
    %1684 = vmatpush.msra.mxu0 0.0
    %1685 = vmatpush.msra.mxu0 0.0
    %1686 = vmatpush.msra.mxu0 0.0
    %1687 = vmatpush.msra.mxu0 0.0
    %1688 = vmatpush.msra.mxu0 0.0
    %1689 = vmatpush.msra.mxu0 %v36
    %1690 = vmatpush.msra.mxu0 %v35
    %1691 = vmatpush.msra.mxu0 %v34
    %1692 = vmatpush.msra.mxu0 %v33
    %1693 = vmatmul.f32.gmra.mxu0 %v1534
    %v1694 = vpop.f32.mrf.mxu0
    %v1695 = vadd.f32 0.0, %v1694
    %1696 = vmatmul.f32.gmra.mxu0 %v1537
    %v1697 = vpop.f32.mrf.mxu0
    %v1698 = vadd.f32 0.0, %v1697
    %1699 = vmatmul.f32.gmra.mxu0 %v1540
    %v1700 = vpop.f32.mrf.mxu0
    %v1701 = vadd.f32 0.0, %v1700
    %1702 = vmatmul.f32.gmra.mxu0 %v1543
    %v1703 = vpop.f32.mrf.mxu0
    %v1704 = vadd.f32 0.0, %v1703
    %1705 = vmatmul.f32.gmra.mxu0 %v1546
    %v1706 = vpop.f32.mrf.mxu0
    %v1707 = vadd.f32 0.0, %v1706
    %1708 = vmatmul.f32.gmra.mxu0 %v1549
    %v1709 = vpop.f32.mrf.mxu0
    %v1710 = vadd.f32 0.0, %v1709
    %1711 = vmatmul.f32.gmra.mxu0 %v1552
    %v1712 = vpop.f32.mrf.mxu0
    %v1713 = vadd.f32 0.0, %v1712
    %1714 = vmatmul.f32.gmra.mxu0 %v1555
    %v1715 = vpop.f32.mrf.mxu0
    %v1716 = vadd.f32 0.0, %v1715
    %1717 = vmatmul.f32.gmra.mxu0 %v1558
    %v1718 = vpop.f32.mrf.mxu0
    %v1719 = vadd.f32 0.0, %v1718
    %1720 = vmatmul.f32.gmra.mxu0 %v1561
    %v1721 = vpop.f32.mrf.mxu0
    %v1722 = vadd.f32 0.0, %v1721
    %1723 = vmatmul.f32.gmra.mxu0 %v1564
    %v1724 = vpop.f32.mrf.mxu0
    %v1725 = vadd.f32 0.0, %v1724
    %1726 = vmatmul.f32.gmra.mxu0 %v1567
    %v1727 = vpop.f32.mrf.mxu0
    %v1728 = vadd.f32 0.0, %v1727
    %1729 = vmatmul.f32.gmra.mxu0 %v1570
    %v1730 = vpop.f32.mrf.mxu0
    %v1731 = vadd.f32 0.0, %v1730
    %1732 = vmatmul.f32.gmra.mxu0 %v1573
    %v1733 = vpop.f32.mrf.mxu0
    %v1734 = vadd.f32 0.0, %v1733
    %1735 = vmatmul.f32.gmra.mxu0 %v1576
    %v1736 = vpop.f32.mrf.mxu0
    %v1737 = vadd.f32 0.0, %v1736
    %1738 = vmatmul.f32.gmra.mxu0 %v1579
    %v1739 = vpop.f32.mrf.mxu0
    %v1740 = vadd.f32 0.0, %v1739
    %1741 = vmatmul.f32.gmra.mxu0 %v1582
    %v1742 = vpop.f32.mrf.mxu0
    %v1743 = vadd.f32 0.0, %v1742
    %1744 = vmatmul.f32.gmra.mxu0 %v1585
    %v1745 = vpop.f32.mrf.mxu0
    %v1746 = vadd.f32 0.0, %v1745
    %1747 = vmatmul.f32.gmra.mxu0 %v1588
    %v1748 = vpop.f32.mrf.mxu0
    %v1749 = vadd.f32 0.0, %v1748
    %1750 = vmatmul.f32.gmra.mxu0 %v1591
    %v1751 = vpop.f32.mrf.mxu0
    %v1752 = vadd.f32 0.0, %v1751
    %1753 = vmatmul.f32.gmra.mxu0 %v1594
    %v1754 = vpop.f32.mrf.mxu0
    %v1755 = vadd.f32 0.0, %v1754
    %1756 = vmatmul.f32.gmra.mxu0 %v1597
    %v1757 = vpop.f32.mrf.mxu0
    %v1758 = vadd.f32 0.0, %v1757
    %1759 = vmatmul.f32.gmra.mxu0 %v1600
    %v1760 = vpop.f32.mrf.mxu0
    %v1761 = vadd.f32 0.0, %v1760
    %1762 = vmatmul.f32.gmra.mxu0 %v1603
    %v1763 = vpop.f32.mrf.mxu0
    %v1764 = vadd.f32 0.0, %v1763
    %1765 = vmatmul.f32.gmra.mxu0 %v1606
    %v1766 = vpop.f32.mrf.mxu0
    %v1767 = vadd.f32 0.0, %v1766
    %1768 = vmatmul.f32.gmra.mxu0 %v1609
    %v1769 = vpop.f32.mrf.mxu0
    %v1770 = vadd.f32 0.0, %v1769
    %1771 = vmatmul.f32.gmra.mxu0 %v1612
    %v1772 = vpop.f32.mrf.mxu0
    %v1773 = vadd.f32 0.0, %v1772
    %1774 = vmatmul.f32.gmra.mxu0 %v1615
    %v1775 = vpop.f32.mrf.mxu0
    %v1776 = vadd.f32 0.0, %v1775
    %1777 = vmatmul.f32.gmra.mxu0 %v1618
    %v1778 = vpop.f32.mrf.mxu0
    %v1779 = vadd.f32 0.0, %v1778
    %1780 = vmatmul.f32.gmra.mxu0 %v1621
    %v1781 = vpop.f32.mrf.mxu0
    %v1782 = vadd.f32 0.0, %v1781
    %1783 = vmatmul.f32.gmra.mxu0 %v1624
    %v1784 = vpop.f32.mrf.mxu0
    %v1785 = vadd.f32 0.0, %v1784
    %1786 = vmatmul.f32.gmra.mxu0 %v1627
    %v1787 = vpop.f32.mrf.mxu0
    %v1788 = vadd.f32 0.0, %v1787
    %1789 = vmatmul.f32.gmra.mxu0 %v1630
    %v1790 = vpop.f32.mrf.mxu0
    %v1791 = vadd.f32 0.0, %v1790
    %1792 = vmatmul.f32.gmra.mxu0 %v1633
    %v1793 = vpop.f32.mrf.mxu0
    %v1794 = vadd.f32 0.0, %v1793
    %1795 = vmatmul.f32.gmra.mxu0 %v1636
    %v1796 = vpop.f32.mrf.mxu0
    %v1797 = vadd.f32 0.0, %v1796
    %1798 = vmatmul.f32.gmra.mxu0 %v1639
    %v1799 = vpop.f32.mrf.mxu0
    %v1800 = vadd.f32 0.0, %v1799
    %1801 = vmatmul.f32.gmra.mxu0 %v1642
    %v1802 = vpop.f32.mrf.mxu0
    %v1803 = vadd.f32 0.0, %v1802
    %1804 = vmatmul.f32.gmra.mxu0 %v1645
    %v1805 = vpop.f32.mrf.mxu0
    %v1806 = vadd.f32 0.0, %v1805
    %1807 = vmatmul.f32.gmra.mxu0 %v1648
    %v1808 = vpop.f32.mrf.mxu0
    %v1809 = vadd.f32 0.0, %v1808
    %1810 = vmatmul.f32.gmra.mxu0 %v1651
    %v1811 = vpop.f32.mrf.mxu0
    %v1812 = vadd.f32 0.0, %v1811
    %1813 = vmatmul.f32.gmra.mxu0 %v1654
    %v1814 = vpop.f32.mrf.mxu0
    %v1815 = vadd.f32 0.0, %v1814
    %1816 = vmatmul.f32.gmra.mxu0 %v1657
    %v1817 = vpop.f32.mrf.mxu0
    %v1818 = vadd.f32 0.0, %v1817
    %1819 = vmatmul.f32.gmra.mxu0 %v1660
    %v1820 = vpop.f32.mrf.mxu0
    %v1821 = vadd.f32 0.0, %v1820
    %1822 = vmatmul.f32.gmra.mxu0 %v1663
    %v1823 = vpop.f32.mrf.mxu0
    %v1824 = vadd.f32 0.0, %v1823
    %1825 = vmatmul.f32.gmra.mxu0 %v1666
    %v1826 = vpop.f32.mrf.mxu0
    %v1827 = vadd.f32 0.0, %v1826
    %1828 = vmatmul.f32.gmra.mxu0 %v1669
    %v1829 = vpop.f32.mrf.mxu0
    %v1830 = vadd.f32 0.0, %v1829
    %1831 = vmatmul.f32.gmra.mxu0 %v1672
    %v1832 = vpop.f32.mrf.mxu0
    %v1833 = vadd.f32 0.0, %v1832
    %1834 = vmatmul.f32.gmra.mxu0 %v1675
    %v1835 = vpop.f32.mrf.mxu0
    %v1836 = vadd.f32 0.0, %v1835
    %1837 = vdwg.mxu0
    %v1838 = vmax.f32 %v1436, %v1695
    %v1839 = vmax.f32 %v1437, %v1698
    %v1840 = vmax.f32 %v1438, %v1701
    %v1841 = vmax.f32 %v1439, %v1704
    %v1842 = vmax.f32 %v1440, %v1707
    %v1843 = vmax.f32 %v1441, %v1710
    %v1844 = vmax.f32 %v1442, %v1713
    %v1845 = vmax.f32 %v1443, %v1716
    %v1846 = vmax.f32 %v1444, %v1719
    %v1847 = vmax.f32 %v1445, %v1722
    %v1848 = vmax.f32 %v1446, %v1725
    %v1849 = vmax.f32 %v1447, %v1728
    %v1850 = vmax.f32 %v1448, %v1731
    %v1851 = vmax.f32 %v1449, %v1734
    %v1852 = vmax.f32 %v1450, %v1737
    %v1853 = vmax.f32 %v1451, %v1740
    %v1854 = vmax.f32 %v1452, %v1743
    %v1855 = vmax.f32 %v1453, %v1746
    %v1856 = vmax.f32 %v1454, %v1749
    %v1857 = vmax.f32 %v1455, %v1752
    %v1858 = vmax.f32 %v1456, %v1755
    %v1859 = vmax.f32 %v1457, %v1758
    %v1860 = vmax.f32 %v1458, %v1761
    %v1861 = vmax.f32 %v1459, %v1764
    %v1862 = vmax.f32 %v1460, %v1767
    %v1863 = vmax.f32 %v1461, %v1770
    %v1864 = vmax.f32 %v1462, %v1773
    %v1865 = vmax.f32 %v1463, %v1776
    %v1866 = vmax.f32 %v1464, %v1779
    %v1867 = vmax.f32 %v1465, %v1782
    %v1868 = vmax.f32 %v1466, %v1785
    %v1869 = vmax.f32 %v1467, %v1788
    %v1870 = vmax.f32 %v1468, %v1791
    %v1871 = vmax.f32 %v1469, %v1794
    %v1872 = vmax.f32 %v1470, %v1797
    %v1873 = vmax.f32 %v1471, %v1800
    %v1874 = vmax.f32 %v1472, %v1803
    %v1875 = vmax.f32 %v1473, %v1806
    %v1876 = vmax.f32 %v1474, %v1809
    %v1877 = vmax.f32 %v1475, %v1812
    %v1878 = vmax.f32 %v1476, %v1815
    %v1879 = vmax.f32 %v1477, %v1818
    %v1880 = vmax.f32 %v1478, %v1821
    %v1881 = vmax.f32 %v1479, %v1824
    %v1882 = vmax.f32 %v1480, %v1827
    %v1883 = vmax.f32 %v1481, %v1830
    %v1884 = vmax.f32 %v1482, %v1833
    %v1885 = vmax.f32 %v1483, %v1836
    %1886 = vst.msk [vmem:[#allocation2] sm:$0xff] %vm391, %v1838
    %1887 = vst.msk [vmem:[#allocation2 + $0x8] sm:$0xff] %vm391, %v1839
    %1888 = vst.msk [vmem:[#allocation2 + $0x10] sm:$0xff] %vm391, %v1840
    %1889 = vst.msk [vmem:[#allocation2 + $0x18] sm:$0xff] %vm391, %v1841
    %1890 = vst.msk [vmem:[#allocation2 + $0x20] sm:$0xff] %vm391, %v1842
    %1891 = vst.msk [vmem:[#allocation2 + $0x28] sm:$0xff] %vm391, %v1843
    %1892 = vst.msk [vmem:[#allocation2 + $0x30] sm:$0xff] %vm391, %v1844
    %1893 = vst.msk [vmem:[#allocation2 + $0x38] sm:$0xff] %vm391, %v1845
    %1894 = vst.msk [vmem:[#allocation2 + $0x40] sm:$0xff] %vm391, %v1846
    %1895 = vst.msk [vmem:[#allocation2 + $0x48] sm:$0xff] %vm391, %v1847
    %1896 = vst.msk [vmem:[#allocation2 + $0x50] sm:$0xff] %vm391, %v1848
    %1897 = vst.msk [vmem:[#allocation2 + $0x58] sm:$0xff] %vm391, %v1849
    %1898 = vst.msk [vmem:[#allocation2 + $0x60] sm:$0xff] %vm391, %v1850
    %1899 = vst.msk [vmem:[#allocation2 + $0x68] sm:$0xff] %vm391, %v1851
    %1900 = vst.msk [vmem:[#allocation2 + $0x70] sm:$0xff] %vm391, %v1852
    %1901 = vst.msk [vmem:[#allocation2 + $0x78] sm:$0xff] %vm391, %v1853
    %1902 = vst.msk [vmem:[#allocation2 + $0x80] sm:$0xff] %vm391, %v1854
    %1903 = vst.msk [vmem:[#allocation2 + $0x88] sm:$0xff] %vm391, %v1855
    %1904 = vst.msk [vmem:[#allocation2 + $0x90] sm:$0xff] %vm391, %v1856
    %1905 = vst.msk [vmem:[#allocation2 + $0x98] sm:$0xff] %vm391, %v1857
    %1906 = vst.msk [vmem:[#allocation2 + $0xa0] sm:$0xff] %vm391, %v1858
    %1907 = vst.msk [vmem:[#allocation2 + $0xa8] sm:$0xff] %vm391, %v1859
    %1908 = vst.msk [vmem:[#allocation2 + $0xb0] sm:$0xff] %vm391, %v1860
    %1909 = vst.msk [vmem:[#allocation2 + $0xb8] sm:$0xff] %vm391, %v1861
    %1910 = vst.msk [vmem:[#allocation2 + $0xc0] sm:$0xff] %vm391, %v1862
    %1911 = vst.msk [vmem:[#allocation2 + $0xc8] sm:$0xff] %vm391, %v1863
    %1912 = vst.msk [vmem:[#allocation2 + $0xd0] sm:$0xff] %vm391, %v1864
    %1913 = vst.msk [vmem:[#allocation2 + $0xd8] sm:$0xff] %vm391, %v1865
    %1914 = vst.msk [vmem:[#allocation2 + $0xe0] sm:$0xff] %vm391, %v1866
    %1915 = vst.msk [vmem:[#allocation2 + $0xe8] sm:$0xff] %vm391, %v1867
    %1916 = vst.msk [vmem:[#allocation2 + $0xf0] sm:$0xff] %vm391, %v1868
    %1917 = vst.msk [vmem:[#allocation2 + $0xf8] sm:$0xff] %vm391, %v1869
    %1918 = vst.msk [vmem:[#allocation2 + $0x100] sm:$0xff] %vm391, %v1870
    %1919 = vst.msk [vmem:[#allocation2 + $0x108] sm:$0xff] %vm391, %v1871
    %1920 = vst.msk [vmem:[#allocation2 + $0x110] sm:$0xff] %vm391, %v1872
    %1921 = vst.msk [vmem:[#allocation2 + $0x118] sm:$0xff] %vm391, %v1873
    %1922 = vst.msk [vmem:[#allocation2 + $0x120] sm:$0xff] %vm391, %v1874
    %1923 = vst.msk [vmem:[#allocation2 + $0x128] sm:$0xff] %vm391, %v1875
    %1924 = vst.msk [vmem:[#allocation2 + $0x130] sm:$0xff] %vm391, %v1876
    %1925 = vst.msk [vmem:[#allocation2 + $0x138] sm:$0xff] %vm391, %v1877
    %1926 = vst.msk [vmem:[#allocation2 + $0x140] sm:$0xff] %vm391, %v1878
    %1927 = vst.msk [vmem:[#allocation2 + $0x148] sm:$0xff] %vm391, %v1879
    %1928 = vst.msk [vmem:[#allocation2 + $0x150] sm:$0xff] %vm391, %v1880
    %1929 = vst.msk [vmem:[#allocation2 + $0x158] sm:$0xff] %vm391, %v1881
    %1930 = vst.msk [vmem:[#allocation2 + $0x160] sm:$0xff] %vm391, %v1882
    %1931 = vst.msk [vmem:[#allocation2 + $0x168] sm:$0xff] %vm391, %v1883
    %1932 = vst.msk [vmem:[#allocation2 + $0x170] sm:$0xff] %vm391, %v1884
    %1933 = vst.msk [vmem:[#allocation2 + $0x178] sm:$0xff] %vm391, %v1885
    %v1934 = vld [vmem:[#allocation2] sm:$0xff]
    %v1935 = vld [vmem:[#allocation2 + $0x8] sm:$0xff]
    %v1936 = vld [vmem:[#allocation2 + $0x10] sm:$0xff]
    %v1937 = vld [vmem:[#allocation2 + $0x18] sm:$0xff]
    %v1938 = vld [vmem:[#allocation2 + $0x20] sm:$0xff]
    %v1939 = vld [vmem:[#allocation2 + $0x28] sm:$0xff]
    %v1940 = vld [vmem:[#allocation2 + $0x30] sm:$0xff]
    %v1941 = vld [vmem:[#allocation2 + $0x38] sm:$0xff]
    %v1942 = vld [vmem:[#allocation2 + $0x40] sm:$0xff]
    %v1943 = vld [vmem:[#allocation2 + $0x48] sm:$0xff]
    %v1944 = vld [vmem:[#allocation2 + $0x50] sm:$0xff]
    %v1945 = vld [vmem:[#allocation2 + $0x58] sm:$0xff]
    %v1946 = vld [vmem:[#allocation2 + $0x60] sm:$0xff]
    %v1947 = vld [vmem:[#allocation2 + $0x68] sm:$0xff]
    %v1948 = vld [vmem:[#allocation2 + $0x70] sm:$0xff]
    %v1949 = vld [vmem:[#allocation2 + $0x78] sm:$0xff]
    %v1950 = vld [vmem:[#allocation2 + $0x80] sm:$0xff]
    %v1951 = vld [vmem:[#allocation2 + $0x88] sm:$0xff]
    %v1952 = vld [vmem:[#allocation2 + $0x90] sm:$0xff]
    %v1953 = vld [vmem:[#allocation2 + $0x98] sm:$0xff]
    %v1954 = vld [vmem:[#allocation2 + $0xa0] sm:$0xff]
    %v1955 = vld [vmem:[#allocation2 + $0xa8] sm:$0xff]
    %v1956 = vld [vmem:[#allocation2 + $0xb0] sm:$0xff]
    %v1957 = vld [vmem:[#allocation2 + $0xb8] sm:$0xff]
    %v1958 = vld [vmem:[#allocation2 + $0xc0] sm:$0xff]
    %v1959 = vld [vmem:[#allocation2 + $0xc8] sm:$0xff]
    %v1960 = vld [vmem:[#allocation2 + $0xd0] sm:$0xff]
    %v1961 = vld [vmem:[#allocation2 + $0xd8] sm:$0xff]
    %v1962 = vld [vmem:[#allocation2 + $0xe0] sm:$0xff]
    %v1963 = vld [vmem:[#allocation2 + $0xe8] sm:$0xff]
    %v1964 = vld [vmem:[#allocation2 + $0xf0] sm:$0xff]
    %v1965 = vld [vmem:[#allocation2 + $0xf8] sm:$0xff]
    %v1966 = vld [vmem:[#allocation2 + $0x100] sm:$0xff]
    %v1967 = vld [vmem:[#allocation2 + $0x108] sm:$0xff]
    %v1968 = vld [vmem:[#allocation2 + $0x110] sm:$0xff]
    %v1969 = vld [vmem:[#allocation2 + $0x118] sm:$0xff]
    %v1970 = vld [vmem:[#allocation2 + $0x120] sm:$0xff]
    %v1971 = vld [vmem:[#allocation2 + $0x128] sm:$0xff]
    %v1972 = vld [vmem:[#allocation2 + $0x130] sm:$0xff]
    %v1973 = vld [vmem:[#allocation2 + $0x138] sm:$0xff]
    %v1974 = vld [vmem:[#allocation2 + $0x140] sm:$0xff]
    %v1975 = vld [vmem:[#allocation2 + $0x148] sm:$0xff]
    %v1976 = vld [vmem:[#allocation2 + $0x150] sm:$0xff]
    %v1977 = vld [vmem:[#allocation2 + $0x158] sm:$0xff]
    %v1978 = vld [vmem:[#allocation2 + $0x160] sm:$0xff]
    %v1979 = vld [vmem:[#allocation2 + $0x168] sm:$0xff]
    %v1980 = vld [vmem:[#allocation2 + $0x170] sm:$0xff]
    %v1981 = vld [vmem:[#allocation2 + $0x178] sm:$0xff]
    %v1982 = vld [vmem:[%s2] sm:$0x1]
    %v1984 = vperm.slane %v1982, 0
    %v1986 = vadd.f32 %v1934, %v1984
    %v1987 = vadd.f32 %v1935, %v1984
    %v1988 = vadd.f32 %v1936, %v1984
    %v1989 = vadd.f32 %v1937, %v1984
    %v1990 = vadd.f32 %v1938, %v1984
    %v1991 = vadd.f32 %v1939, %v1984
    %v1992 = vadd.f32 %v1940, %v1984
    %v1993 = vadd.f32 %v1941, %v1984
    %v1994 = vadd.f32 %v1942, %v1984
    %v1995 = vadd.f32 %v1943, %v1984
    %v1996 = vadd.f32 %v1944, %v1984
    %v1997 = vadd.f32 %v1945, %v1984
    %v1998 = vadd.f32 %v1946, %v1984
    %v1999 = vadd.f32 %v1947, %v1984
    %v2000 = vadd.f32 %v1948, %v1984
    %v2001 = vadd.f32 %v1949, %v1984
    %v2002 = vadd.f32 %v1950, %v1984
    %v2003 = vadd.f32 %v1951, %v1984
    %v2004 = vadd.f32 %v1952, %v1984
    %v2005 = vadd.f32 %v1953, %v1984
    %v2006 = vadd.f32 %v1954, %v1984
    %v2007 = vadd.f32 %v1955, %v1984
    %v2008 = vadd.f32 %v1956, %v1984
    %v2009 = vadd.f32 %v1957, %v1984
    %v2010 = vadd.f32 %v1958, %v1984
    %v2011 = vadd.f32 %v1959, %v1984
    %v2012 = vadd.f32 %v1960, %v1984
    %v2013 = vadd.f32 %v1961, %v1984
    %v2014 = vadd.f32 %v1962, %v1984
    %v2015 = vadd.f32 %v1963, %v1984
    %v2016 = vadd.f32 %v1964, %v1984
    %v2017 = vadd.f32 %v1965, %v1984
    %v2018 = vadd.f32 %v1966, %v1984
    %v2019 = vadd.f32 %v1967, %v1984
    %v2020 = vadd.f32 %v1968, %v1984
    %v2021 = vadd.f32 %v1969, %v1984
    %v2022 = vadd.f32 %v1970, %v1984
    %v2023 = vadd.f32 %v1971, %v1984
    %v2024 = vadd.f32 %v1972, %v1984
    %v2025 = vadd.f32 %v1973, %v1984
    %v2026 = vadd.f32 %v1974, %v1984
    %v2027 = vadd.f32 %v1975, %v1984
    %v2028 = vadd.f32 %v1976, %v1984
    %v2029 = vadd.f32 %v1977, %v1984
    %v2030 = vadd.f32 %v1978, %v1984
    %v2031 = vadd.f32 %v1979, %v1984
    %v2032 = vadd.f32 %v1980, %v1984
    %v2033 = vadd.f32 %v1981, %v1984
    %v2034 = vmax.f32 %v1986, 0.0
    %v2035 = vmax.f32 %v1987, 0.0
    %v2036 = vmax.f32 %v1988, 0.0
    %v2037 = vmax.f32 %v1989, 0.0
    %v2038 = vmax.f32 %v1990, 0.0
    %v2039 = vmax.f32 %v1991, 0.0
    %v2040 = vmax.f32 %v1992, 0.0
    %v2041 = vmax.f32 %v1993, 0.0
    %v2042 = vmax.f32 %v1994, 0.0
    %v2043 = vmax.f32 %v1995, 0.0
    %v2044 = vmax.f32 %v1996, 0.0
    %v2045 = vmax.f32 %v1997, 0.0
    %v2046 = vmax.f32 %v1998, 0.0
    %v2047 = vmax.f32 %v1999, 0.0
    %v2048 = vmax.f32 %v2000, 0.0
    %v2049 = vmax.f32 %v2001, 0.0
    %v2050 = vmax.f32 %v2002, 0.0
    %v2051 = vmax.f32 %v2003, 0.0
    %v2052 = vmax.f32 %v2004, 0.0
    %v2053 = vmax.f32 %v2005, 0.0
    %v2054 = vmax.f32 %v2006, 0.0
    %v2055 = vmax.f32 %v2007, 0.0
    %v2056 = vmax.f32 %v2008, 0.0
    %v2057 = vmax.f32 %v2009, 0.0
    %v2058 = vmax.f32 %v2010, 0.0
    %v2059 = vmax.f32 %v2011, 0.0
    %v2060 = vmax.f32 %v2012, 0.0
    %v2061 = vmax.f32 %v2013, 0.0
    %v2062 = vmax.f32 %v2014, 0.0
    %v2063 = vmax.f32 %v2015, 0.0
    %v2064 = vmax.f32 %v2016, 0.0
    %v2065 = vmax.f32 %v2017, 0.0
    %v2066 = vmax.f32 %v2018, 0.0
    %v2067 = vmax.f32 %v2019, 0.0
    %v2068 = vmax.f32 %v2020, 0.0
    %v2069 = vmax.f32 %v2021, 0.0
    %v2070 = vmax.f32 %v2022, 0.0
    %v2071 = vmax.f32 %v2023, 0.0
    %v2072 = vmax.f32 %v2024, 0.0
    %v2073 = vmax.f32 %v2025, 0.0
    %v2074 = vmax.f32 %v2026, 0.0
    %v2075 = vmax.f32 %v2027, 0.0
    %v2076 = vmax.f32 %v2028, 0.0
    %v2077 = vmax.f32 %v2029, 0.0
    %v2078 = vmax.f32 %v2030, 0.0
    %v2079 = vmax.f32 %v2031, 0.0
    %v2080 = vmax.f32 %v2032, 0.0
    %v2081 = vmax.f32 %v2033, 0.0
    %2082 = vst.msk [vmem:[#allocation3] sm:$0xff] %vm391, %v2034
    %2083 = vst.msk [vmem:[#allocation3 + $0x8] sm:$0xff] %vm391, %v2035
    %2084 = vst.msk [vmem:[#allocation3 + $0x10] sm:$0xff] %vm391, %v2036
    %2085 = vst.msk [vmem:[#allocation3 + $0x18] sm:$0xff] %vm391, %v2037
    %2086 = vst.msk [vmem:[#allocation3 + $0x20] sm:$0xff] %vm391, %v2038
    %2087 = vst.msk [vmem:[#allocation3 + $0x28] sm:$0xff] %vm391, %v2039
    %2088 = vst.msk [vmem:[#allocation3 + $0x30] sm:$0xff] %vm391, %v2040
    %2089 = vst.msk [vmem:[#allocation3 + $0x38] sm:$0xff] %vm391, %v2041
    %2090 = vst.msk [vmem:[#allocation3 + $0x40] sm:$0xff] %vm391, %v2042
    %2091 = vst.msk [vmem:[#allocation3 + $0x48] sm:$0xff] %vm391, %v2043
    %2092 = vst.msk [vmem:[#allocation3 + $0x50] sm:$0xff] %vm391, %v2044
    %2093 = vst.msk [vmem:[#allocation3 + $0x58] sm:$0xff] %vm391, %v2045
    %2094 = vst.msk [vmem:[#allocation3 + $0x60] sm:$0xff] %vm391, %v2046
    %2095 = vst.msk [vmem:[#allocation3 + $0x68] sm:$0xff] %vm391, %v2047
    %2096 = vst.msk [vmem:[#allocation3 + $0x70] sm:$0xff] %vm391, %v2048
    %2097 = vst.msk [vmem:[#allocation3 + $0x78] sm:$0xff] %vm391, %v2049
    %2098 = vst.msk [vmem:[#allocation3 + $0x80] sm:$0xff] %vm391, %v2050
    %2099 = vst.msk [vmem:[#allocation3 + $0x88] sm:$0xff] %vm391, %v2051
    %2100 = vst.msk [vmem:[#allocation3 + $0x90] sm:$0xff] %vm391, %v2052
    %2101 = vst.msk [vmem:[#allocation3 + $0x98] sm:$0xff] %vm391, %v2053
    %2102 = vst.msk [vmem:[#allocation3 + $0xa0] sm:$0xff] %vm391, %v2054
    %2103 = vst.msk [vmem:[#allocation3 + $0xa8] sm:$0xff] %vm391, %v2055
    %2104 = vst.msk [vmem:[#allocation3 + $0xb0] sm:$0xff] %vm391, %v2056
    %2105 = vst.msk [vmem:[#allocation3 + $0xb8] sm:$0xff] %vm391, %v2057
    %2106 = vst.msk [vmem:[#allocation3 + $0xc0] sm:$0xff] %vm391, %v2058
    %2107 = vst.msk [vmem:[#allocation3 + $0xc8] sm:$0xff] %vm391, %v2059
    %2108 = vst.msk [vmem:[#allocation3 + $0xd0] sm:$0xff] %vm391, %v2060
    %2109 = vst.msk [vmem:[#allocation3 + $0xd8] sm:$0xff] %vm391, %v2061
    %2110 = vst.msk [vmem:[#allocation3 + $0xe0] sm:$0xff] %vm391, %v2062
    %2111 = vst.msk [vmem:[#allocation3 + $0xe8] sm:$0xff] %vm391, %v2063
    %2112 = vst.msk [vmem:[#allocation3 + $0xf0] sm:$0xff] %vm391, %v2064
    %2113 = vst.msk [vmem:[#allocation3 + $0xf8] sm:$0xff] %vm391, %v2065
    %2114 = vst.msk [vmem:[#allocation3 + $0x100] sm:$0xff] %vm391, %v2066
    %2115 = vst.msk [vmem:[#allocation3 + $0x108] sm:$0xff] %vm391, %v2067
    %2116 = vst.msk [vmem:[#allocation3 + $0x110] sm:$0xff] %vm391, %v2068
    %2117 = vst.msk [vmem:[#allocation3 + $0x118] sm:$0xff] %vm391, %v2069
    %2118 = vst.msk [vmem:[#allocation3 + $0x120] sm:$0xff] %vm391, %v2070
    %2119 = vst.msk [vmem:[#allocation3 + $0x128] sm:$0xff] %vm391, %v2071
    %2120 = vst.msk [vmem:[#allocation3 + $0x130] sm:$0xff] %vm391, %v2072
    %2121 = vst.msk [vmem:[#allocation3 + $0x138] sm:$0xff] %vm391, %v2073
    %2122 = vst.msk [vmem:[#allocation3 + $0x140] sm:$0xff] %vm391, %v2074
    %2123 = vst.msk [vmem:[#allocation3 + $0x148] sm:$0xff] %vm391, %v2075
    %2124 = vst.msk [vmem:[#allocation3 + $0x150] sm:$0xff] %vm391, %v2076
    %2125 = vst.msk [vmem:[#allocation3 + $0x158] sm:$0xff] %vm391, %v2077
    %2126 = vst.msk [vmem:[#allocation3 + $0x160] sm:$0xff] %vm391, %v2078
    %2127 = vst.msk [vmem:[#allocation3 + $0x168] sm:$0xff] %vm391, %v2079
    %2128 = vst.msk [vmem:[#allocation3 + $0x170] sm:$0xff] %vm391, %v2080
    %2129 = vst.msk [vmem:[#allocation3 + $0x178] sm:$0xff] %vm391, %v2081
    %v2130 = vld [vmem:[#allocation3] sm:$0xff]
    %v2131 = vld [vmem:[#allocation3 + $0x10] sm:$0xff]
    %v2132 = vld [vmem:[#allocation3 + $0x20] sm:$0xff]
    %v2133 = vld [vmem:[#allocation3 + $0x30] sm:$0xff]
    %v2134 = vld [vmem:[#allocation3 + $0x40] sm:$0xff]
    %v2135 = vld [vmem:[#allocation3 + $0x50] sm:$0xff]
    %v2136 = vld [vmem:[#allocation3 + $0x60] sm:$0xff]
    %v2137 = vld [vmem:[#allocation3 + $0x70] sm:$0xff]
    %v2138 = vld [vmem:[#allocation3 + $0xc0] sm:$0xff]
    %v2139 = vld [vmem:[#allocation3 + $0xd0] sm:$0xff]
    %v2140 = vld [vmem:[#allocation3 + $0xe0] sm:$0xff]
    %v2141 = vld [vmem:[#allocation3 + $0xf0] sm:$0xff]
    %v2142 = vld [vmem:[#allocation3 + $0x100] sm:$0xff]
    %v2143 = vld [vmem:[#allocation3 + $0x110] sm:$0xff]
    %v2144 = vld [vmem:[#allocation3 + $0x120] sm:$0xff]
    %v2145 = vld [vmem:[#allocation3 + $0x130] sm:$0xff]
    %2146 = vst.msk [vmem:[#allocation4] sm:$0xff] %vm391, %v2130
    %2147 = vst.msk [vmem:[#allocation4 + $0x20] sm:$0xff] %vm391, %v2131
    %2148 = vst.msk [vmem:[#allocation4 + $0x40] sm:$0xff] %vm391, %v2132
    %2149 = vst.msk [vmem:[#allocation4 + $0x60] sm:$0xff] %vm391, %v2133
    %2150 = vst.msk [vmem:[#allocation4 + $0x80] sm:$0xff] %vm391, %v2134
    %2151 = vst.msk [vmem:[#allocation4 + $0xa0] sm:$0xff] %vm391, %v2135
    %2152 = vst.msk [vmem:[#allocation4 + $0xc0] sm:$0xff] %vm391, %v2136
    %2153 = vst.msk [vmem:[#allocation4 + $0xe0] sm:$0xff] %vm391, %v2137
    %2154 = vst.msk [vmem:[#allocation4 + $0x100] sm:$0xff] %vm391, %v2138
    %2155 = vst.msk [vmem:[#allocation4 + $0x120] sm:$0xff] %vm391, %v2139
    %2156 = vst.msk [vmem:[#allocation4 + $0x140] sm:$0xff] %vm391, %v2140
    %2157 = vst.msk [vmem:[#allocation4 + $0x160] sm:$0xff] %vm391, %v2141
    %2158 = vst.msk [vmem:[#allocation4 + $0x180] sm:$0xff] %vm391, %v2142
    %2159 = vst.msk [vmem:[#allocation4 + $0x1a0] sm:$0xff] %vm391, %v2143
    %2160 = vst.msk [vmem:[#allocation4 + $0x1c0] sm:$0xff] %vm391, %v2144
    %2161 = vst.msk [vmem:[#allocation4 + $0x1e0] sm:$0xff] %vm391, %v2145
    %v2162 = vld [vmem:[#allocation3 + $0x1] sm:$0xff]
    %v2163 = vld [vmem:[#allocation3 + $0x11] sm:$0xff]
    %v2164 = vld [vmem:[#allocation3 + $0x21] sm:$0xff]
    %v2165 = vld [vmem:[#allocation3 + $0x31] sm:$0xff]
    %v2166 = vld [vmem:[#allocation3 + $0x41] sm:$0xff]
    %v2167 = vld [vmem:[#allocation3 + $0x51] sm:$0xff]
    %v2168 = vld [vmem:[#allocation3 + $0x61] sm:$0xff]
    %v2169 = vld [vmem:[#allocation3 + $0x71] sm:$0xff]
    %v2170 = vld [vmem:[#allocation3 + $0xc1] sm:$0xff]
    %v2171 = vld [vmem:[#allocation3 + $0xd1] sm:$0xff]
    %v2172 = vld [vmem:[#allocation3 + $0xe1] sm:$0xff]
    %v2173 = vld [vmem:[#allocation3 + $0xf1] sm:$0xff]
    %v2174 = vld [vmem:[#allocation3 + $0x101] sm:$0xff]
    %v2175 = vld [vmem:[#allocation3 + $0x111] sm:$0xff]
    %v2176 = vld [vmem:[#allocation3 + $0x121] sm:$0xff]
    %v2177 = vld [vmem:[#allocation3 + $0x131] sm:$0xff]
    %2194 = vrot.lane.b32.xlu0 %v2162, 16
    %v2195 = vpop.permute.xlu0 %2194
    %2196 = vrot.lane.b32.xlu0 %v2163, 16
    %v2197 = vpop.permute.xlu0 %2196
    %2198 = vrot.lane.b32.xlu0 %v2164, 16
    %v2199 = vpop.permute.xlu0 %2198
    %2200 = vrot.lane.b32.xlu0 %v2165, 16
    %v2201 = vpop.permute.xlu0 %2200
    %2202 = vrot.lane.b32.xlu0 %v2166, 16
    %v2203 = vpop.permute.xlu0 %2202
    %2204 = vrot.lane.b32.xlu0 %v2167, 16
    %v2205 = vpop.permute.xlu0 %2204
    %2206 = vrot.lane.b32.xlu0 %v2168, 16
    %v2207 = vpop.permute.xlu0 %2206
    %2208 = vrot.lane.b32.xlu0 %v2169, 16
    %v2209 = vpop.permute.xlu0 %2208
    %2210 = vrot.lane.b32.xlu0 %v2170, 16
    %v2211 = vpop.permute.xlu0 %2210
    %2212 = vrot.lane.b32.xlu0 %v2171, 16
    %v2213 = vpop.permute.xlu0 %2212
    %2214 = vrot.lane.b32.xlu0 %v2172, 16
    %v2215 = vpop.permute.xlu0 %2214
    %2216 = vrot.lane.b32.xlu0 %v2173, 16
    %v2217 = vpop.permute.xlu0 %2216
    %2218 = vrot.lane.b32.xlu0 %v2174, 16
    %v2219 = vpop.permute.xlu0 %2218
    %2220 = vrot.lane.b32.xlu0 %v2175, 16
    %v2221 = vpop.permute.xlu0 %2220
    %2222 = vrot.lane.b32.xlu0 %v2176, 16
    %v2223 = vpop.permute.xlu0 %2222
    %2224 = vrot.lane.b32.xlu0 %v2177, 16
    %v2225 = vpop.permute.xlu0 %2224
    %vm2242 = vcmask 261248
    %2243 = vst.msk [vmem:[#allocation4] sm:$0xff] %vm2242, %v2195
    %2244 = vst.msk [vmem:[#allocation4 + $0x20] sm:$0xff] %vm2242, %v2197
    %2245 = vst.msk [vmem:[#allocation4 + $0x40] sm:$0xff] %vm2242, %v2199
    %2246 = vst.msk [vmem:[#allocation4 + $0x60] sm:$0xff] %vm2242, %v2201
    %2247 = vst.msk [vmem:[#allocation4 + $0x80] sm:$0xff] %vm2242, %v2203
    %2248 = vst.msk [vmem:[#allocation4 + $0xa0] sm:$0xff] %vm2242, %v2205
    %2249 = vst.msk [vmem:[#allocation4 + $0xc0] sm:$0xff] %vm2242, %v2207
    %2250 = vst.msk [vmem:[#allocation4 + $0xe0] sm:$0xff] %vm2242, %v2209
    %2251 = vst.msk [vmem:[#allocation4 + $0x100] sm:$0xff] %vm2242, %v2211
    %2252 = vst.msk [vmem:[#allocation4 + $0x120] sm:$0xff] %vm2242, %v2213
    %2253 = vst.msk [vmem:[#allocation4 + $0x140] sm:$0xff] %vm2242, %v2215
    %2254 = vst.msk [vmem:[#allocation4 + $0x160] sm:$0xff] %vm2242, %v2217
    %2255 = vst.msk [vmem:[#allocation4 + $0x180] sm:$0xff] %vm2242, %v2219
    %2256 = vst.msk [vmem:[#allocation4 + $0x1a0] sm:$0xff] %vm2242, %v2221
    %2257 = vst.msk [vmem:[#allocation4 + $0x1c0] sm:$0xff] %vm2242, %v2223
    %2258 = vst.msk [vmem:[#allocation4 + $0x1e0] sm:$0xff] %vm2242, %v2225
    %v2259 = vld [vmem:[#allocation3 + $0x2] sm:$0xff]
    %v2260 = vld [vmem:[#allocation3 + $0x12] sm:$0xff]
    %v2261 = vld [vmem:[#allocation3 + $0x22] sm:$0xff]
    %v2262 = vld [vmem:[#allocation3 + $0x32] sm:$0xff]
    %v2263 = vld [vmem:[#allocation3 + $0x42] sm:$0xff]
    %v2264 = vld [vmem:[#allocation3 + $0x52] sm:$0xff]
    %v2265 = vld [vmem:[#allocation3 + $0x62] sm:$0xff]
    %v2266 = vld [vmem:[#allocation3 + $0x72] sm:$0xff]
    %v2267 = vld [vmem:[#allocation3 + $0xc2] sm:$0xff]
    %v2268 = vld [vmem:[#allocation3 + $0xd2] sm:$0xff]
    %v2269 = vld [vmem:[#allocation3 + $0xe2] sm:$0xff]
    %v2270 = vld [vmem:[#allocation3 + $0xf2] sm:$0xff]
    %v2271 = vld [vmem:[#allocation3 + $0x102] sm:$0xff]
    %v2272 = vld [vmem:[#allocation3 + $0x112] sm:$0xff]
    %v2273 = vld [vmem:[#allocation3 + $0x122] sm:$0xff]
    %v2274 = vld [vmem:[#allocation3 + $0x132] sm:$0xff]
    %2291 = vrot.lane.b32.xlu0 %v2259, 32
    %v2292 = vpop.permute.xlu0 %2291
    %2293 = vrot.lane.b32.xlu0 %v2260, 32
    %v2294 = vpop.permute.xlu0 %2293
    %2295 = vrot.lane.b32.xlu0 %v2261, 32
    %v2296 = vpop.permute.xlu0 %2295
    %2297 = vrot.lane.b32.xlu0 %v2262, 32
    %v2298 = vpop.permute.xlu0 %2297
    %2299 = vrot.lane.b32.xlu0 %v2263, 32
    %v2300 = vpop.permute.xlu0 %2299
    %2301 = vrot.lane.b32.xlu0 %v2264, 32
    %v2302 = vpop.permute.xlu0 %2301
    %2303 = vrot.lane.b32.xlu0 %v2265, 32
    %v2304 = vpop.permute.xlu0 %2303
    %2305 = vrot.lane.b32.xlu0 %v2266, 32
    %v2306 = vpop.permute.xlu0 %2305
    %2307 = vrot.lane.b32.xlu0 %v2267, 32
    %v2308 = vpop.permute.xlu0 %2307
    %2309 = vrot.lane.b32.xlu0 %v2268, 32
    %v2310 = vpop.permute.xlu0 %2309
    %2311 = vrot.lane.b32.xlu0 %v2269, 32
    %v2312 = vpop.permute.xlu0 %2311
    %2313 = vrot.lane.b32.xlu0 %v2270, 32
    %v2314 = vpop.permute.xlu0 %2313
    %2315 = vrot.lane.b32.xlu0 %v2271, 32
    %v2316 = vpop.permute.xlu0 %2315
    %2317 = vrot.lane.b32.xlu0 %v2272, 32
    %v2318 = vpop.permute.xlu0 %2317
    %2319 = vrot.lane.b32.xlu0 %v2273, 32
    %v2320 = vpop.permute.xlu0 %2319
    %2321 = vrot.lane.b32.xlu0 %v2274, 32
    %v2322 = vpop.permute.xlu0 %2321
    %vm2339 = vcmask 392448
    %2340 = vst.msk [vmem:[#allocation4] sm:$0xff] %vm2339, %v2292
    %2341 = vst.msk [vmem:[#allocation4 + $0x20] sm:$0xff] %vm2339, %v2294
    %2342 = vst.msk [vmem:[#allocation4 + $0x40] sm:$0xff] %vm2339, %v2296
    %2343 = vst.msk [vmem:[#allocation4 + $0x60] sm:$0xff] %vm2339, %v2298
    %2344 = vst.msk [vmem:[#allocation4 + $0x80] sm:$0xff] %vm2339, %v2300
    %2345 = vst.msk [vmem:[#allocation4 + $0xa0] sm:$0xff] %vm2339, %v2302
    %2346 = vst.msk [vmem:[#allocation4 + $0xc0] sm:$0xff] %vm2339, %v2304
    %2347 = vst.msk [vmem:[#allocation4 + $0xe0] sm:$0xff] %vm2339, %v2306
    %2348 = vst.msk [vmem:[#allocation4 + $0x100] sm:$0xff] %vm2339, %v2308
    %2349 = vst.msk [vmem:[#allocation4 + $0x120] sm:$0xff] %vm2339, %v2310
    %2350 = vst.msk [vmem:[#allocation4 + $0x140] sm:$0xff] %vm2339, %v2312
    %2351 = vst.msk [vmem:[#allocation4 + $0x160] sm:$0xff] %vm2339, %v2314
    %2352 = vst.msk [vmem:[#allocation4 + $0x180] sm:$0xff] %vm2339, %v2316
    %2353 = vst.msk [vmem:[#allocation4 + $0x1a0] sm:$0xff] %vm2339, %v2318
    %2354 = vst.msk [vmem:[#allocation4 + $0x1c0] sm:$0xff] %vm2339, %v2320
    %2355 = vst.msk [vmem:[#allocation4 + $0x1e0] sm:$0xff] %vm2339, %v2322
    %v2356 = vld [vmem:[#allocation3 + $0x3] sm:$0xff]
    %v2357 = vld [vmem:[#allocation3 + $0x13] sm:$0xff]
    %v2358 = vld [vmem:[#allocation3 + $0x23] sm:$0xff]
    %v2359 = vld [vmem:[#allocation3 + $0x33] sm:$0xff]
    %v2360 = vld [vmem:[#allocation3 + $0x43] sm:$0xff]
    %v2361 = vld [vmem:[#allocation3 + $0x53] sm:$0xff]
    %v2362 = vld [vmem:[#allocation3 + $0x63] sm:$0xff]
    %v2363 = vld [vmem:[#allocation3 + $0x73] sm:$0xff]
    %v2364 = vld [vmem:[#allocation3 + $0xc3] sm:$0xff]
    %v2365 = vld [vmem:[#allocation3 + $0xd3] sm:$0xff]
    %v2366 = vld [vmem:[#allocation3 + $0xe3] sm:$0xff]
    %v2367 = vld [vmem:[#allocation3 + $0xf3] sm:$0xff]
    %v2368 = vld [vmem:[#allocation3 + $0x103] sm:$0xff]
    %v2369 = vld [vmem:[#allocation3 + $0x113] sm:$0xff]
    %v2370 = vld [vmem:[#allocation3 + $0x123] sm:$0xff]
    %v2371 = vld [vmem:[#allocation3 + $0x133] sm:$0xff]
    %2388 = vrot.lane.b32.xlu0 %v2356, 48
    %v2389 = vpop.permute.xlu0 %2388
    %2390 = vrot.lane.b32.xlu0 %v2357, 48
    %v2391 = vpop.permute.xlu0 %2390
    %2392 = vrot.lane.b32.xlu0 %v2358, 48
    %v2393 = vpop.permute.xlu0 %2392
    %2394 = vrot.lane.b32.xlu0 %v2359, 48
    %v2395 = vpop.permute.xlu0 %2394
    %2396 = vrot.lane.b32.xlu0 %v2360, 48
    %v2397 = vpop.permute.xlu0 %2396
    %2398 = vrot.lane.b32.xlu0 %v2361, 48
    %v2399 = vpop.permute.xlu0 %2398
    %2400 = vrot.lane.b32.xlu0 %v2362, 48
    %v2401 = vpop.permute.xlu0 %2400
    %2402 = vrot.lane.b32.xlu0 %v2363, 48
    %v2403 = vpop.permute.xlu0 %2402
    %2404 = vrot.lane.b32.xlu0 %v2364, 48
    %v2405 = vpop.permute.xlu0 %2404
    %2406 = vrot.lane.b32.xlu0 %v2365, 48
    %v2407 = vpop.permute.xlu0 %2406
    %2408 = vrot.lane.b32.xlu0 %v2366, 48
    %v2409 = vpop.permute.xlu0 %2408
    %2410 = vrot.lane.b32.xlu0 %v2367, 48
    %v2411 = vpop.permute.xlu0 %2410
    %2412 = vrot.lane.b32.xlu0 %v2368, 48
    %v2413 = vpop.permute.xlu0 %2412
    %2414 = vrot.lane.b32.xlu0 %v2369, 48
    %v2415 = vpop.permute.xlu0 %2414
    %2416 = vrot.lane.b32.xlu0 %v2370, 48
    %v2417 = vpop.permute.xlu0 %2416
    %2418 = vrot.lane.b32.xlu0 %v2371, 48
    %v2419 = vpop.permute.xlu0 %2418
    %vm2436 = vcmask 523648
    %2437 = vst.msk [vmem:[#allocation4] sm:$0xff] %vm2436, %v2389
    %2438 = vst.msk [vmem:[#allocation4 + $0x20] sm:$0xff] %vm2436, %v2391
    %2439 = vst.msk [vmem:[#allocation4 + $0x40] sm:$0xff] %vm2436, %v2393
    %2440 = vst.msk [vmem:[#allocation4 + $0x60] sm:$0xff] %vm2436, %v2395
    %2441 = vst.msk [vmem:[#allocation4 + $0x80] sm:$0xff] %vm2436, %v2397
    %2442 = vst.msk [vmem:[#allocation4 + $0xa0] sm:$0xff] %vm2436, %v2399
    %2443 = vst.msk [vmem:[#allocation4 + $0xc0] sm:$0xff] %vm2436, %v2401
    %2444 = vst.msk [vmem:[#allocation4 + $0xe0] sm:$0xff] %vm2436, %v2403
    %2445 = vst.msk [vmem:[#allocation4 + $0x100] sm:$0xff] %vm2436, %v2405
    %2446 = vst.msk [vmem:[#allocation4 + $0x120] sm:$0xff] %vm2436, %v2407
    %2447 = vst.msk [vmem:[#allocation4 + $0x140] sm:$0xff] %vm2436, %v2409
    %2448 = vst.msk [vmem:[#allocation4 + $0x160] sm:$0xff] %vm2436, %v2411
    %2449 = vst.msk [vmem:[#allocation4 + $0x180] sm:$0xff] %vm2436, %v2413
    %2450 = vst.msk [vmem:[#allocation4 + $0x1a0] sm:$0xff] %vm2436, %v2415
    %2451 = vst.msk [vmem:[#allocation4 + $0x1c0] sm:$0xff] %vm2436, %v2417
    %2452 = vst.msk [vmem:[#allocation4 + $0x1e0] sm:$0xff] %vm2436, %v2419
    %v2453 = vld [vmem:[#allocation3 + $0x4] sm:$0xff]
    %v2454 = vld [vmem:[#allocation3 + $0x14] sm:$0xff]
    %v2455 = vld [vmem:[#allocation3 + $0x24] sm:$0xff]
    %v2456 = vld [vmem:[#allocation3 + $0x34] sm:$0xff]
    %v2457 = vld [vmem:[#allocation3 + $0x44] sm:$0xff]
    %v2458 = vld [vmem:[#allocation3 + $0x54] sm:$0xff]
    %v2459 = vld [vmem:[#allocation3 + $0x64] sm:$0xff]
    %v2460 = vld [vmem:[#allocation3 + $0x74] sm:$0xff]
    %v2461 = vld [vmem:[#allocation3 + $0xc4] sm:$0xff]
    %v2462 = vld [vmem:[#allocation3 + $0xd4] sm:$0xff]
    %v2463 = vld [vmem:[#allocation3 + $0xe4] sm:$0xff]
    %v2464 = vld [vmem:[#allocation3 + $0xf4] sm:$0xff]
    %v2465 = vld [vmem:[#allocation3 + $0x104] sm:$0xff]
    %v2466 = vld [vmem:[#allocation3 + $0x114] sm:$0xff]
    %v2467 = vld [vmem:[#allocation3 + $0x124] sm:$0xff]
    %v2468 = vld [vmem:[#allocation3 + $0x134] sm:$0xff]
    %2485 = vrot.lane.b32.xlu0 %v2453, 64
    %v2486 = vpop.permute.xlu0 %2485
    %2487 = vrot.lane.b32.xlu0 %v2454, 64
    %v2488 = vpop.permute.xlu0 %2487
    %2489 = vrot.lane.b32.xlu0 %v2455, 64
    %v2490 = vpop.permute.xlu0 %2489
    %2491 = vrot.lane.b32.xlu0 %v2456, 64
    %v2492 = vpop.permute.xlu0 %2491
    %2493 = vrot.lane.b32.xlu0 %v2457, 64
    %v2494 = vpop.permute.xlu0 %2493
    %2495 = vrot.lane.b32.xlu0 %v2458, 64
    %v2496 = vpop.permute.xlu0 %2495
    %2497 = vrot.lane.b32.xlu0 %v2459, 64
    %v2498 = vpop.permute.xlu0 %2497
    %2499 = vrot.lane.b32.xlu0 %v2460, 64
    %v2500 = vpop.permute.xlu0 %2499
    %2501 = vrot.lane.b32.xlu0 %v2461, 64
    %v2502 = vpop.permute.xlu0 %2501
    %2503 = vrot.lane.b32.xlu0 %v2462, 64
    %v2504 = vpop.permute.xlu0 %2503
    %2505 = vrot.lane.b32.xlu0 %v2463, 64
    %v2506 = vpop.permute.xlu0 %2505
    %2507 = vrot.lane.b32.xlu0 %v2464, 64
    %v2508 = vpop.permute.xlu0 %2507
    %2509 = vrot.lane.b32.xlu0 %v2465, 64
    %v2510 = vpop.permute.xlu0 %2509
    %2511 = vrot.lane.b32.xlu0 %v2466, 64
    %v2512 = vpop.permute.xlu0 %2511
    %2513 = vrot.lane.b32.xlu0 %v2467, 64
    %v2514 = vpop.permute.xlu0 %2513
    %2515 = vrot.lane.b32.xlu0 %v2468, 64
    %v2516 = vpop.permute.xlu0 %2515
    %vm2533 = vcmask 654848
    %2534 = vst.msk [vmem:[#allocation4] sm:$0xff] %vm2533, %v2486
    %2535 = vst.msk [vmem:[#allocation4 + $0x20] sm:$0xff] %vm2533, %v2488
    %2536 = vst.msk [vmem:[#allocation4 + $0x40] sm:$0xff] %vm2533, %v2490
    %2537 = vst.msk [vmem:[#allocation4 + $0x60] sm:$0xff] %vm2533, %v2492
    %2538 = vst.msk [vmem:[#allocation4 + $0x80] sm:$0xff] %vm2533, %v2494
    %2539 = vst.msk [vmem:[#allocation4 + $0xa0] sm:$0xff] %vm2533, %v2496
    %2540 = vst.msk [vmem:[#allocation4 + $0xc0] sm:$0xff] %vm2533, %v2498
    %2541 = vst.msk [vmem:[#allocation4 + $0xe0] sm:$0xff] %vm2533, %v2500
    %2542 = vst.msk [vmem:[#allocation4 + $0x100] sm:$0xff] %vm2533, %v2502
    %2543 = vst.msk [vmem:[#allocation4 + $0x120] sm:$0xff] %vm2533, %v2504
    %2544 = vst.msk [vmem:[#allocation4 + $0x140] sm:$0xff] %vm2533, %v2506
    %2545 = vst.msk [vmem:[#allocation4 + $0x160] sm:$0xff] %vm2533, %v2508
    %2546 = vst.msk [vmem:[#allocation4 + $0x180] sm:$0xff] %vm2533, %v2510
    %2547 = vst.msk [vmem:[#allocation4 + $0x1a0] sm:$0xff] %vm2533, %v2512
    %2548 = vst.msk [vmem:[#allocation4 + $0x1c0] sm:$0xff] %vm2533, %v2514
    %2549 = vst.msk [vmem:[#allocation4 + $0x1e0] sm:$0xff] %vm2533, %v2516
    %s2550 = scalar_lea.vmem [#allocation3], 16
    %v2551 = vld [vmem:[%s2550] sm:$0xff]
    %v2552 = vld [vmem:[%s2550 + $0x10] sm:$0xff]
    %v2553 = vld [vmem:[%s2550 + $0x20] sm:$0xff]
    %v2554 = vld [vmem:[%s2550 + $0x30] sm:$0xff]
    %v2555 = vld [vmem:[%s2550 + $0x40] sm:$0xff]
    %v2556 = vld [vmem:[%s2550 + $0x50] sm:$0xff]
    %v2557 = vld [vmem:[%s2550 + $0x60] sm:$0xff]
    %v2558 = vld [vmem:[%s2550 + $0x70] sm:$0xff]
    %v2559 = vld [vmem:[%s2550 + $0xc0] sm:$0xff]
    %v2560 = vld [vmem:[%s2550 + $0xd0] sm:$0xff]
    %v2561 = vld [vmem:[%s2550 + $0xe0] sm:$0xff]
    %v2562 = vld [vmem:[%s2550 + $0xf0] sm:$0xff]
    %v2563 = vld [vmem:[%s2550 + $0x100] sm:$0xff]
    %v2564 = vld [vmem:[%s2550 + $0x110] sm:$0xff]
    %v2565 = vld [vmem:[%s2550 + $0x120] sm:$0xff]
    %v2566 = vld [vmem:[%s2550 + $0x130] sm:$0xff]
    %2583 = vrot.lane.b32.xlu0 %v2551, 80
    %v2584 = vpop.permute.xlu0 %2583
    %2585 = vrot.lane.b32.xlu0 %v2552, 80
    %v2586 = vpop.permute.xlu0 %2585
    %2587 = vrot.lane.b32.xlu0 %v2553, 80
    %v2588 = vpop.permute.xlu0 %2587
    %2589 = vrot.lane.b32.xlu0 %v2554, 80
    %v2590 = vpop.permute.xlu0 %2589
    %2591 = vrot.lane.b32.xlu0 %v2555, 80
    %v2592 = vpop.permute.xlu0 %2591
    %2593 = vrot.lane.b32.xlu0 %v2556, 80
    %v2594 = vpop.permute.xlu0 %2593
    %2595 = vrot.lane.b32.xlu0 %v2557, 80
    %v2596 = vpop.permute.xlu0 %2595
    %2597 = vrot.lane.b32.xlu0 %v2558, 80
    %v2598 = vpop.permute.xlu0 %2597
    %2599 = vrot.lane.b32.xlu0 %v2559, 80
    %v2600 = vpop.permute.xlu0 %2599
    %2601 = vrot.lane.b32.xlu0 %v2560, 80
    %v2602 = vpop.permute.xlu0 %2601
    %2603 = vrot.lane.b32.xlu0 %v2561, 80
    %v2604 = vpop.permute.xlu0 %2603
    %2605 = vrot.lane.b32.xlu0 %v2562, 80
    %v2606 = vpop.permute.xlu0 %2605
    %2607 = vrot.lane.b32.xlu0 %v2563, 80
    %v2608 = vpop.permute.xlu0 %2607
    %2609 = vrot.lane.b32.xlu0 %v2564, 80
    %v2610 = vpop.permute.xlu0 %2609
    %2611 = vrot.lane.b32.xlu0 %v2565, 80
    %v2612 = vpop.permute.xlu0 %2611
    %2613 = vrot.lane.b32.xlu0 %v2566, 80
    %v2614 = vpop.permute.xlu0 %2613
    %vm2631 = vcmask 786048
    %2632 = vst.msk [vmem:[#allocation4] sm:$0xff] %vm2631, %v2584
    %2633 = vst.msk [vmem:[#allocation4 + $0x20] sm:$0xff] %vm2631, %v2586
    %2634 = vst.msk [vmem:[#allocation4 + $0x40] sm:$0xff] %vm2631, %v2588
    %2635 = vst.msk [vmem:[#allocation4 + $0x60] sm:$0xff] %vm2631, %v2590
    %2636 = vst.msk [vmem:[#allocation4 + $0x80] sm:$0xff] %vm2631, %v2592
    %2637 = vst.msk [vmem:[#allocation4 + $0xa0] sm:$0xff] %vm2631, %v2594
    %2638 = vst.msk [vmem:[#allocation4 + $0xc0] sm:$0xff] %vm2631, %v2596
    %2639 = vst.msk [vmem:[#allocation4 + $0xe0] sm:$0xff] %vm2631, %v2598
    %2640 = vst.msk [vmem:[#allocation4 + $0x100] sm:$0xff] %vm2631, %v2600
    %2641 = vst.msk [vmem:[#allocation4 + $0x120] sm:$0xff] %vm2631, %v2602
    %2642 = vst.msk [vmem:[#allocation4 + $0x140] sm:$0xff] %vm2631, %v2604
    %2643 = vst.msk [vmem:[#allocation4 + $0x160] sm:$0xff] %vm2631, %v2606
    %2644 = vst.msk [vmem:[#allocation4 + $0x180] sm:$0xff] %vm2631, %v2608
    %2645 = vst.msk [vmem:[#allocation4 + $0x1a0] sm:$0xff] %vm2631, %v2610
    %2646 = vst.msk [vmem:[#allocation4 + $0x1c0] sm:$0xff] %vm2631, %v2612
    %2647 = vst.msk [vmem:[#allocation4 + $0x1e0] sm:$0xff] %vm2631, %v2614
    %v2648 = vld [vmem:[%s2550 + $0x1] sm:$0xff]
    %v2649 = vld [vmem:[%s2550 + $0x11] sm:$0xff]
    %v2650 = vld [vmem:[%s2550 + $0x21] sm:$0xff]
    %v2651 = vld [vmem:[%s2550 + $0x31] sm:$0xff]
    %v2652 = vld [vmem:[%s2550 + $0x41] sm:$0xff]
    %v2653 = vld [vmem:[%s2550 + $0x51] sm:$0xff]
    %v2654 = vld [vmem:[%s2550 + $0x61] sm:$0xff]
    %v2655 = vld [vmem:[%s2550 + $0x71] sm:$0xff]
    %v2656 = vld [vmem:[%s2550 + $0xc1] sm:$0xff]
    %v2657 = vld [vmem:[%s2550 + $0xd1] sm:$0xff]
    %v2658 = vld [vmem:[%s2550 + $0xe1] sm:$0xff]
    %v2659 = vld [vmem:[%s2550 + $0xf1] sm:$0xff]
    %v2660 = vld [vmem:[%s2550 + $0x101] sm:$0xff]
    %v2661 = vld [vmem:[%s2550 + $0x111] sm:$0xff]
    %v2662 = vld [vmem:[%s2550 + $0x121] sm:$0xff]
    %v2663 = vld [vmem:[%s2550 + $0x131] sm:$0xff]
    %2680 = vrot.lane.b32.xlu0 %v2648, 96
    %v2681 = vpop.permute.xlu0 %2680
    %2682 = vrot.lane.b32.xlu0 %v2649, 96
    %v2683 = vpop.permute.xlu0 %2682
    %2684 = vrot.lane.b32.xlu0 %v2650, 96
    %v2685 = vpop.permute.xlu0 %2684
    %2686 = vrot.lane.b32.xlu0 %v2651, 96
    %v2687 = vpop.permute.xlu0 %2686
    %2688 = vrot.lane.b32.xlu0 %v2652, 96
    %v2689 = vpop.permute.xlu0 %2688
    %2690 = vrot.lane.b32.xlu0 %v2653, 96
    %v2691 = vpop.permute.xlu0 %2690
    %2692 = vrot.lane.b32.xlu0 %v2654, 96
    %v2693 = vpop.permute.xlu0 %2692
    %2694 = vrot.lane.b32.xlu0 %v2655, 96
    %v2695 = vpop.permute.xlu0 %2694
    %2696 = vrot.lane.b32.xlu0 %v2656, 96
    %v2697 = vpop.permute.xlu0 %2696
    %2698 = vrot.lane.b32.xlu0 %v2657, 96
    %v2699 = vpop.permute.xlu0 %2698
    %2700 = vrot.lane.b32.xlu0 %v2658, 96
    %v2701 = vpop.permute.xlu0 %2700
    %2702 = vrot.lane.b32.xlu0 %v2659, 96
    %v2703 = vpop.permute.xlu0 %2702
    %2704 = vrot.lane.b32.xlu0 %v2660, 96
    %v2705 = vpop.permute.xlu0 %2704
    %2706 = vrot.lane.b32.xlu0 %v2661, 96
    %v2707 = vpop.permute.xlu0 %2706
    %2708 = vrot.lane.b32.xlu0 %v2662, 96
    %v2709 = vpop.permute.xlu0 %2708
    %2710 = vrot.lane.b32.xlu0 %v2663, 96
    %v2711 = vpop.permute.xlu0 %2710
    %vm2728 = vcmask 917248
    %2729 = vst.msk [vmem:[#allocation4] sm:$0xff] %vm2728, %v2681
    %2730 = vst.msk [vmem:[#allocation4 + $0x20] sm:$0xff] %vm2728, %v2683
    %2731 = vst.msk [vmem:[#allocation4 + $0x40] sm:$0xff] %vm2728, %v2685
    %2732 = vst.msk [vmem:[#allocation4 + $0x60] sm:$0xff] %vm2728, %v2687
    %2733 = vst.msk [vmem:[#allocation4 + $0x80] sm:$0xff] %vm2728, %v2689
    %2734 = vst.msk [vmem:[#allocation4 + $0xa0] sm:$0xff] %vm2728, %v2691
    %2735 = vst.msk [vmem:[#allocation4 + $0xc0] sm:$0xff] %vm2728, %v2693
    %2736 = vst.msk [vmem:[#allocation4 + $0xe0] sm:$0xff] %vm2728, %v2695
    %2737 = vst.msk [vmem:[#allocation4 + $0x100] sm:$0xff] %vm2728, %v2697
    %2738 = vst.msk [vmem:[#allocation4 + $0x120] sm:$0xff] %vm2728, %v2699
    %2739 = vst.msk [vmem:[#allocation4 + $0x140] sm:$0xff] %vm2728, %v2701
    %2740 = vst.msk [vmem:[#allocation4 + $0x160] sm:$0xff] %vm2728, %v2703
    %2741 = vst.msk [vmem:[#allocation4 + $0x180] sm:$0xff] %vm2728, %v2705
    %2742 = vst.msk [vmem:[#allocation4 + $0x1a0] sm:$0xff] %vm2728, %v2707
    %2743 = vst.msk [vmem:[#allocation4 + $0x1c0] sm:$0xff] %vm2728, %v2709
    %2744 = vst.msk [vmem:[#allocation4 + $0x1e0] sm:$0xff] %vm2728, %v2711
    %v2745 = vld [vmem:[%s2550 + $0x2] sm:$0xff]
    %v2746 = vld [vmem:[%s2550 + $0x12] sm:$0xff]
    %v2747 = vld [vmem:[%s2550 + $0x22] sm:$0xff]
    %v2748 = vld [vmem:[%s2550 + $0x32] sm:$0xff]
    %v2749 = vld [vmem:[%s2550 + $0x42] sm:$0xff]
    %v2750 = vld [vmem:[%s2550 + $0x52] sm:$0xff]
    %v2751 = vld [vmem:[%s2550 + $0x62] sm:$0xff]
    %v2752 = vld [vmem:[%s2550 + $0x72] sm:$0xff]
    %v2753 = vld [vmem:[%s2550 + $0xc2] sm:$0xff]
    %v2754 = vld [vmem:[%s2550 + $0xd2] sm:$0xff]
    %v2755 = vld [vmem:[%s2550 + $0xe2] sm:$0xff]
    %v2756 = vld [vmem:[%s2550 + $0xf2] sm:$0xff]
    %v2757 = vld [vmem:[%s2550 + $0x102] sm:$0xff]
    %v2758 = vld [vmem:[%s2550 + $0x112] sm:$0xff]
    %v2759 = vld [vmem:[%s2550 + $0x122] sm:$0xff]
    %v2760 = vld [vmem:[%s2550 + $0x132] sm:$0xff]
    %2777 = vrot.lane.b32.xlu0 %v2745, 112
    %v2778 = vpop.permute.xlu0 %2777
    %2779 = vrot.lane.b32.xlu0 %v2746, 112
    %v2780 = vpop.permute.xlu0 %2779
    %2781 = vrot.lane.b32.xlu0 %v2747, 112
    %v2782 = vpop.permute.xlu0 %2781
    %2783 = vrot.lane.b32.xlu0 %v2748, 112
    %v2784 = vpop.permute.xlu0 %2783
    %2785 = vrot.lane.b32.xlu0 %v2749, 112
    %v2786 = vpop.permute.xlu0 %2785
    %2787 = vrot.lane.b32.xlu0 %v2750, 112
    %v2788 = vpop.permute.xlu0 %2787
    %2789 = vrot.lane.b32.xlu0 %v2751, 112
    %v2790 = vpop.permute.xlu0 %2789
    %2791 = vrot.lane.b32.xlu0 %v2752, 112
    %v2792 = vpop.permute.xlu0 %2791
    %2793 = vrot.lane.b32.xlu0 %v2753, 112
    %v2794 = vpop.permute.xlu0 %2793
    %2795 = vrot.lane.b32.xlu0 %v2754, 112
    %v2796 = vpop.permute.xlu0 %2795
    %2797 = vrot.lane.b32.xlu0 %v2755, 112
    %v2798 = vpop.permute.xlu0 %2797
    %2799 = vrot.lane.b32.xlu0 %v2756, 112
    %v2800 = vpop.permute.xlu0 %2799
    %2801 = vrot.lane.b32.xlu0 %v2757, 112
    %v2802 = vpop.permute.xlu0 %2801
    %2803 = vrot.lane.b32.xlu0 %v2758, 112
    %v2804 = vpop.permute.xlu0 %2803
    %2805 = vrot.lane.b32.xlu0 %v2759, 112
    %v2806 = vpop.permute.xlu0 %2805
    %2807 = vrot.lane.b32.xlu0 %v2760, 112
    %v2808 = vpop.permute.xlu0 %2807
    %vm2825 = vcmask 1048448
    %2826 = vst.msk [vmem:[#allocation4] sm:$0xff] %vm2825, %v2778
    %2827 = vst.msk [vmem:[#allocation4 + $0x20] sm:$0xff] %vm2825, %v2780
    %2828 = vst.msk [vmem:[#allocation4 + $0x40] sm:$0xff] %vm2825, %v2782
    %2829 = vst.msk [vmem:[#allocation4 + $0x60] sm:$0xff] %vm2825, %v2784
    %2830 = vst.msk [vmem:[#allocation4 + $0x80] sm:$0xff] %vm2825, %v2786
    %2831 = vst.msk [vmem:[#allocation4 + $0xa0] sm:$0xff] %vm2825, %v2788
    %2832 = vst.msk [vmem:[#allocation4 + $0xc0] sm:$0xff] %vm2825, %v2790
    %2833 = vst.msk [vmem:[#allocation4 + $0xe0] sm:$0xff] %vm2825, %v2792
    %2834 = vst.msk [vmem:[#allocation4 + $0x100] sm:$0xff] %vm2825, %v2794
    %2835 = vst.msk [vmem:[#allocation4 + $0x120] sm:$0xff] %vm2825, %v2796
    %2836 = vst.msk [vmem:[#allocation4 + $0x140] sm:$0xff] %vm2825, %v2798
    %2837 = vst.msk [vmem:[#allocation4 + $0x160] sm:$0xff] %vm2825, %v2800
    %2838 = vst.msk [vmem:[#allocation4 + $0x180] sm:$0xff] %vm2825, %v2802
    %2839 = vst.msk [vmem:[#allocation4 + $0x1a0] sm:$0xff] %vm2825, %v2804
    %2840 = vst.msk [vmem:[#allocation4 + $0x1c0] sm:$0xff] %vm2825, %v2806
    %2841 = vst.msk [vmem:[#allocation4 + $0x1e0] sm:$0xff] %vm2825, %v2808
    %v2842 = vld [vmem:[%s2550 + $0x3] sm:$0xff]
    %v2843 = vld [vmem:[%s2550 + $0x13] sm:$0xff]
    %v2844 = vld [vmem:[%s2550 + $0x23] sm:$0xff]
    %v2845 = vld [vmem:[%s2550 + $0x33] sm:$0xff]
    %v2846 = vld [vmem:[%s2550 + $0x43] sm:$0xff]
    %v2847 = vld [vmem:[%s2550 + $0x53] sm:$0xff]
    %v2848 = vld [vmem:[%s2550 + $0x63] sm:$0xff]
    %v2849 = vld [vmem:[%s2550 + $0x73] sm:$0xff]
    %v2850 = vld [vmem:[%s2550 + $0xc3] sm:$0xff]
    %v2851 = vld [vmem:[%s2550 + $0xd3] sm:$0xff]
    %v2852 = vld [vmem:[%s2550 + $0xe3] sm:$0xff]
    %v2853 = vld [vmem:[%s2550 + $0xf3] sm:$0xff]
    %v2854 = vld [vmem:[%s2550 + $0x103] sm:$0xff]
    %v2855 = vld [vmem:[%s2550 + $0x113] sm:$0xff]
    %v2856 = vld [vmem:[%s2550 + $0x123] sm:$0xff]
    %v2857 = vld [vmem:[%s2550 + $0x133] sm:$0xff]
    %2858 = vst.msk [vmem:[#allocation4 + $0x8] sm:$0xff] %vm391, %v2842
    %2859 = vst.msk [vmem:[#allocation4 + $0x28] sm:$0xff] %vm391, %v2843
    %2860 = vst.msk [vmem:[#allocation4 + $0x48] sm:$0xff] %vm391, %v2844
    %2861 = vst.msk [vmem:[#allocation4 + $0x68] sm:$0xff] %vm391, %v2845
    %2862 = vst.msk [vmem:[#allocation4 + $0x88] sm:$0xff] %vm391, %v2846
    %2863 = vst.msk [vmem:[#allocation4 + $0xa8] sm:$0xff] %vm391, %v2847
    %2864 = vst.msk [vmem:[#allocation4 + $0xc8] sm:$0xff] %vm391, %v2848
    %2865 = vst.msk [vmem:[#allocation4 + $0xe8] sm:$0xff] %vm391, %v2849
    %2866 = vst.msk [vmem:[#allocation4 + $0x108] sm:$0xff] %vm391, %v2850
    %2867 = vst.msk [vmem:[#allocation4 + $0x128] sm:$0xff] %vm391, %v2851
    %2868 = vst.msk [vmem:[#allocation4 + $0x148] sm:$0xff] %vm391, %v2852
    %2869 = vst.msk [vmem:[#allocation4 + $0x168] sm:$0xff] %vm391, %v2853
    %2870 = vst.msk [vmem:[#allocation4 + $0x188] sm:$0xff] %vm391, %v2854
    %2871 = vst.msk [vmem:[#allocation4 + $0x1a8] sm:$0xff] %vm391, %v2855
    %2872 = vst.msk [vmem:[#allocation4 + $0x1c8] sm:$0xff] %vm391, %v2856
    %2873 = vst.msk [vmem:[#allocation4 + $0x1e8] sm:$0xff] %vm391, %v2857
    %v2874 = vld [vmem:[%s2550 + $0x4] sm:$0xff]
    %v2875 = vld [vmem:[%s2550 + $0x14] sm:$0xff]
    %v2876 = vld [vmem:[%s2550 + $0x24] sm:$0xff]
    %v2877 = vld [vmem:[%s2550 + $0x34] sm:$0xff]
    %v2878 = vld [vmem:[%s2550 + $0x44] sm:$0xff]
    %v2879 = vld [vmem:[%s2550 + $0x54] sm:$0xff]
    %v2880 = vld [vmem:[%s2550 + $0x64] sm:$0xff]
    %v2881 = vld [vmem:[%s2550 + $0x74] sm:$0xff]
    %v2882 = vld [vmem:[%s2550 + $0xc4] sm:$0xff]
    %v2883 = vld [vmem:[%s2550 + $0xd4] sm:$0xff]
    %v2884 = vld [vmem:[%s2550 + $0xe4] sm:$0xff]
    %v2885 = vld [vmem:[%s2550 + $0xf4] sm:$0xff]
    %v2886 = vld [vmem:[%s2550 + $0x104] sm:$0xff]
    %v2887 = vld [vmem:[%s2550 + $0x114] sm:$0xff]
    %v2888 = vld [vmem:[%s2550 + $0x124] sm:$0xff]
    %v2889 = vld [vmem:[%s2550 + $0x134] sm:$0xff]
    %2906 = vrot.lane.b32.xlu0 %v2874, 16
    %v2907 = vpop.permute.xlu0 %2906
    %2908 = vrot.lane.b32.xlu0 %v2875, 16
    %v2909 = vpop.permute.xlu0 %2908
    %2910 = vrot.lane.b32.xlu0 %v2876, 16
    %v2911 = vpop.permute.xlu0 %2910
    %2912 = vrot.lane.b32.xlu0 %v2877, 16
    %v2913 = vpop.permute.xlu0 %2912
    %2914 = vrot.lane.b32.xlu0 %v2878, 16
    %v2915 = vpop.permute.xlu0 %2914
    %2916 = vrot.lane.b32.xlu0 %v2879, 16
    %v2917 = vpop.permute.xlu0 %2916
    %2918 = vrot.lane.b32.xlu0 %v2880, 16
    %v2919 = vpop.permute.xlu0 %2918
    %2920 = vrot.lane.b32.xlu0 %v2881, 16
    %v2921 = vpop.permute.xlu0 %2920
    %2922 = vrot.lane.b32.xlu0 %v2882, 16
    %v2923 = vpop.permute.xlu0 %2922
    %2924 = vrot.lane.b32.xlu0 %v2883, 16
    %v2925 = vpop.permute.xlu0 %2924
    %2926 = vrot.lane.b32.xlu0 %v2884, 16
    %v2927 = vpop.permute.xlu0 %2926
    %2928 = vrot.lane.b32.xlu0 %v2885, 16
    %v2929 = vpop.permute.xlu0 %2928
    %2930 = vrot.lane.b32.xlu0 %v2886, 16
    %v2931 = vpop.permute.xlu0 %2930
    %2932 = vrot.lane.b32.xlu0 %v2887, 16
    %v2933 = vpop.permute.xlu0 %2932
    %2934 = vrot.lane.b32.xlu0 %v2888, 16
    %v2935 = vpop.permute.xlu0 %2934
    %2936 = vrot.lane.b32.xlu0 %v2889, 16
    %v2937 = vpop.permute.xlu0 %2936
    %2954 = vst.msk [vmem:[#allocation4 + $0x8] sm:$0xff] %vm2242, %v2907
    %2955 = vst.msk [vmem:[#allocation4 + $0x28] sm:$0xff] %vm2242, %v2909
    %2956 = vst.msk [vmem:[#allocation4 + $0x48] sm:$0xff] %vm2242, %v2911
    %2957 = vst.msk [vmem:[#allocation4 + $0x68] sm:$0xff] %vm2242, %v2913
    %2958 = vst.msk [vmem:[#allocation4 + $0x88] sm:$0xff] %vm2242, %v2915
    %2959 = vst.msk [vmem:[#allocation4 + $0xa8] sm:$0xff] %vm2242, %v2917
    %2960 = vst.msk [vmem:[#allocation4 + $0xc8] sm:$0xff] %vm2242, %v2919
    %2961 = vst.msk [vmem:[#allocation4 + $0xe8] sm:$0xff] %vm2242, %v2921
    %2962 = vst.msk [vmem:[#allocation4 + $0x108] sm:$0xff] %vm2242, %v2923
    %2963 = vst.msk [vmem:[#allocation4 + $0x128] sm:$0xff] %vm2242, %v2925
    %2964 = vst.msk [vmem:[#allocation4 + $0x148] sm:$0xff] %vm2242, %v2927
    %2965 = vst.msk [vmem:[#allocation4 + $0x168] sm:$0xff] %vm2242, %v2929
    %2966 = vst.msk [vmem:[#allocation4 + $0x188] sm:$0xff] %vm2242, %v2931
    %2967 = vst.msk [vmem:[#allocation4 + $0x1a8] sm:$0xff] %vm2242, %v2933
    %2968 = vst.msk [vmem:[#allocation4 + $0x1c8] sm:$0xff] %vm2242, %v2935
    %2969 = vst.msk [vmem:[#allocation4 + $0x1e8] sm:$0xff] %vm2242, %v2937
    %s2970 = scalar_lea.vmem [#allocation3], 32
    %v2971 = vld [vmem:[%s2970] sm:$0xff]
    %v2972 = vld [vmem:[%s2970 + $0x10] sm:$0xff]
    %v2973 = vld [vmem:[%s2970 + $0x20] sm:$0xff]
    %v2974 = vld [vmem:[%s2970 + $0x30] sm:$0xff]
    %v2975 = vld [vmem:[%s2970 + $0x40] sm:$0xff]
    %v2976 = vld [vmem:[%s2970 + $0x50] sm:$0xff]
    %v2977 = vld [vmem:[%s2970 + $0x60] sm:$0xff]
    %v2978 = vld [vmem:[%s2970 + $0x70] sm:$0xff]
    %v2979 = vld [vmem:[%s2970 + $0xc0] sm:$0xff]
    %v2980 = vld [vmem:[%s2970 + $0xd0] sm:$0xff]
    %v2981 = vld [vmem:[%s2970 + $0xe0] sm:$0xff]
    %v2982 = vld [vmem:[%s2970 + $0xf0] sm:$0xff]
    %v2983 = vld [vmem:[%s2970 + $0x100] sm:$0xff]
    %v2984 = vld [vmem:[%s2970 + $0x110] sm:$0xff]
    %v2985 = vld [vmem:[%s2970 + $0x120] sm:$0xff]
    %v2986 = vld [vmem:[%s2970 + $0x130] sm:$0xff]
    %3003 = vrot.lane.b32.xlu0 %v2971, 32
    %v3004 = vpop.permute.xlu0 %3003
    %3005 = vrot.lane.b32.xlu0 %v2972, 32
    %v3006 = vpop.permute.xlu0 %3005
    %3007 = vrot.lane.b32.xlu0 %v2973, 32
    %v3008 = vpop.permute.xlu0 %3007
    %3009 = vrot.lane.b32.xlu0 %v2974, 32
    %v3010 = vpop.permute.xlu0 %3009
    %3011 = vrot.lane.b32.xlu0 %v2975, 32
    %v3012 = vpop.permute.xlu0 %3011
    %3013 = vrot.lane.b32.xlu0 %v2976, 32
    %v3014 = vpop.permute.xlu0 %3013
    %3015 = vrot.lane.b32.xlu0 %v2977, 32
    %v3016 = vpop.permute.xlu0 %3015
    %3017 = vrot.lane.b32.xlu0 %v2978, 32
    %v3018 = vpop.permute.xlu0 %3017
    %3019 = vrot.lane.b32.xlu0 %v2979, 32
    %v3020 = vpop.permute.xlu0 %3019
    %3021 = vrot.lane.b32.xlu0 %v2980, 32
    %v3022 = vpop.permute.xlu0 %3021
    %3023 = vrot.lane.b32.xlu0 %v2981, 32
    %v3024 = vpop.permute.xlu0 %3023
    %3025 = vrot.lane.b32.xlu0 %v2982, 32
    %v3026 = vpop.permute.xlu0 %3025
    %3027 = vrot.lane.b32.xlu0 %v2983, 32
    %v3028 = vpop.permute.xlu0 %3027
    %3029 = vrot.lane.b32.xlu0 %v2984, 32
    %v3030 = vpop.permute.xlu0 %3029
    %3031 = vrot.lane.b32.xlu0 %v2985, 32
    %v3032 = vpop.permute.xlu0 %3031
    %3033 = vrot.lane.b32.xlu0 %v2986, 32
    %v3034 = vpop.permute.xlu0 %3033
    %3051 = vst.msk [vmem:[#allocation4 + $0x8] sm:$0xff] %vm2339, %v3004
    %3052 = vst.msk [vmem:[#allocation4 + $0x28] sm:$0xff] %vm2339, %v3006
    %3053 = vst.msk [vmem:[#allocation4 + $0x48] sm:$0xff] %vm2339, %v3008
    %3054 = vst.msk [vmem:[#allocation4 + $0x68] sm:$0xff] %vm2339, %v3010
    %3055 = vst.msk [vmem:[#allocation4 + $0x88] sm:$0xff] %vm2339, %v3012
    %3056 = vst.msk [vmem:[#allocation4 + $0xa8] sm:$0xff] %vm2339, %v3014
    %3057 = vst.msk [vmem:[#allocation4 + $0xc8] sm:$0xff] %vm2339, %v3016
    %3058 = vst.msk [vmem:[#allocation4 + $0xe8] sm:$0xff] %vm2339, %v3018
    %3059 = vst.msk [vmem:[#allocation4 + $0x108] sm:$0xff] %vm2339, %v3020
    %3060 = vst.msk [vmem:[#allocation4 + $0x128] sm:$0xff] %vm2339, %v3022
    %3061 = vst.msk [vmem:[#allocation4 + $0x148] sm:$0xff] %vm2339, %v3024
    %3062 = vst.msk [vmem:[#allocation4 + $0x168] sm:$0xff] %vm2339, %v3026
    %3063 = vst.msk [vmem:[#allocation4 + $0x188] sm:$0xff] %vm2339, %v3028
    %3064 = vst.msk [vmem:[#allocation4 + $0x1a8] sm:$0xff] %vm2339, %v3030
    %3065 = vst.msk [vmem:[#allocation4 + $0x1c8] sm:$0xff] %vm2339, %v3032
    %3066 = vst.msk [vmem:[#allocation4 + $0x1e8] sm:$0xff] %vm2339, %v3034
    %v3067 = vld [vmem:[%s2970 + $0x1] sm:$0xff]
    %v3068 = vld [vmem:[%s2970 + $0x11] sm:$0xff]
    %v3069 = vld [vmem:[%s2970 + $0x21] sm:$0xff]
    %v3070 = vld [vmem:[%s2970 + $0x31] sm:$0xff]
    %v3071 = vld [vmem:[%s2970 + $0x41] sm:$0xff]
    %v3072 = vld [vmem:[%s2970 + $0x51] sm:$0xff]
    %v3073 = vld [vmem:[%s2970 + $0x61] sm:$0xff]
    %v3074 = vld [vmem:[%s2970 + $0x71] sm:$0xff]
    %v3075 = vld [vmem:[%s2970 + $0xc1] sm:$0xff]
    %v3076 = vld [vmem:[%s2970 + $0xd1] sm:$0xff]
    %v3077 = vld [vmem:[%s2970 + $0xe1] sm:$0xff]
    %v3078 = vld [vmem:[%s2970 + $0xf1] sm:$0xff]
    %v3079 = vld [vmem:[%s2970 + $0x101] sm:$0xff]
    %v3080 = vld [vmem:[%s2970 + $0x111] sm:$0xff]
    %v3081 = vld [vmem:[%s2970 + $0x121] sm:$0xff]
    %v3082 = vld [vmem:[%s2970 + $0x131] sm:$0xff]
    %3099 = vrot.lane.b32.xlu0 %v3067, 48
    %v3100 = vpop.permute.xlu0 %3099
    %3101 = vrot.lane.b32.xlu0 %v3068, 48
    %v3102 = vpop.permute.xlu0 %3101
    %3103 = vrot.lane.b32.xlu0 %v3069, 48
    %v3104 = vpop.permute.xlu0 %3103
    %3105 = vrot.lane.b32.xlu0 %v3070, 48
    %v3106 = vpop.permute.xlu0 %3105
    %3107 = vrot.lane.b32.xlu0 %v3071, 48
    %v3108 = vpop.permute.xlu0 %3107
    %3109 = vrot.lane.b32.xlu0 %v3072, 48
    %v3110 = vpop.permute.xlu0 %3109
    %3111 = vrot.lane.b32.xlu0 %v3073, 48
    %v3112 = vpop.permute.xlu0 %3111
    %3113 = vrot.lane.b32.xlu0 %v3074, 48
    %v3114 = vpop.permute.xlu0 %3113
    %3115 = vrot.lane.b32.xlu0 %v3075, 48
    %v3116 = vpop.permute.xlu0 %3115
    %3117 = vrot.lane.b32.xlu0 %v3076, 48
    %v3118 = vpop.permute.xlu0 %3117
    %3119 = vrot.lane.b32.xlu0 %v3077, 48
    %v3120 = vpop.permute.xlu0 %3119
    %3121 = vrot.lane.b32.xlu0 %v3078, 48
    %v3122 = vpop.permute.xlu0 %3121
    %3123 = vrot.lane.b32.xlu0 %v3079, 48
    %v3124 = vpop.permute.xlu0 %3123
    %3125 = vrot.lane.b32.xlu0 %v3080, 48
    %v3126 = vpop.permute.xlu0 %3125
    %3127 = vrot.lane.b32.xlu0 %v3081, 48
    %v3128 = vpop.permute.xlu0 %3127
    %3129 = vrot.lane.b32.xlu0 %v3082, 48
    %v3130 = vpop.permute.xlu0 %3129
    %3147 = vst.msk [vmem:[#allocation4 + $0x8] sm:$0xff] %vm2436, %v3100
    %3148 = vst.msk [vmem:[#allocation4 + $0x28] sm:$0xff] %vm2436, %v3102
    %3149 = vst.msk [vmem:[#allocation4 + $0x48] sm:$0xff] %vm2436, %v3104
    %3150 = vst.msk [vmem:[#allocation4 + $0x68] sm:$0xff] %vm2436, %v3106
    %3151 = vst.msk [vmem:[#allocation4 + $0x88] sm:$0xff] %vm2436, %v3108
    %3152 = vst.msk [vmem:[#allocation4 + $0xa8] sm:$0xff] %vm2436, %v3110
    %3153 = vst.msk [vmem:[#allocation4 + $0xc8] sm:$0xff] %vm2436, %v3112
    %3154 = vst.msk [vmem:[#allocation4 + $0xe8] sm:$0xff] %vm2436, %v3114
    %3155 = vst.msk [vmem:[#allocation4 + $0x108] sm:$0xff] %vm2436, %v3116
    %3156 = vst.msk [vmem:[#allocation4 + $0x128] sm:$0xff] %vm2436, %v3118
    %3157 = vst.msk [vmem:[#allocation4 + $0x148] sm:$0xff] %vm2436, %v3120
    %3158 = vst.msk [vmem:[#allocation4 + $0x168] sm:$0xff] %vm2436, %v3122
    %3159 = vst.msk [vmem:[#allocation4 + $0x188] sm:$0xff] %vm2436, %v3124
    %3160 = vst.msk [vmem:[#allocation4 + $0x1a8] sm:$0xff] %vm2436, %v3126
    %3161 = vst.msk [vmem:[#allocation4 + $0x1c8] sm:$0xff] %vm2436, %v3128
    %3162 = vst.msk [vmem:[#allocation4 + $0x1e8] sm:$0xff] %vm2436, %v3130
    %v3163 = vld [vmem:[%s2970 + $0x2] sm:$0xff]
    %v3164 = vld [vmem:[%s2970 + $0x12] sm:$0xff]
    %v3165 = vld [vmem:[%s2970 + $0x22] sm:$0xff]
    %v3166 = vld [vmem:[%s2970 + $0x32] sm:$0xff]
    %v3167 = vld [vmem:[%s2970 + $0x42] sm:$0xff]
    %v3168 = vld [vmem:[%s2970 + $0x52] sm:$0xff]
    %v3169 = vld [vmem:[%s2970 + $0x62] sm:$0xff]
    %v3170 = vld [vmem:[%s2970 + $0x72] sm:$0xff]
    %v3171 = vld [vmem:[%s2970 + $0xc2] sm:$0xff]
    %v3172 = vld [vmem:[%s2970 + $0xd2] sm:$0xff]
    %v3173 = vld [vmem:[%s2970 + $0xe2] sm:$0xff]
    %v3174 = vld [vmem:[%s2970 + $0xf2] sm:$0xff]
    %v3175 = vld [vmem:[%s2970 + $0x102] sm:$0xff]
    %v3176 = vld [vmem:[%s2970 + $0x112] sm:$0xff]
    %v3177 = vld [vmem:[%s2970 + $0x122] sm:$0xff]
    %v3178 = vld [vmem:[%s2970 + $0x132] sm:$0xff]
    %3195 = vrot.lane.b32.xlu0 %v3163, 64
    %v3196 = vpop.permute.xlu0 %3195
    %3197 = vrot.lane.b32.xlu0 %v3164, 64
    %v3198 = vpop.permute.xlu0 %3197
    %3199 = vrot.lane.b32.xlu0 %v3165, 64
    %v3200 = vpop.permute.xlu0 %3199
    %3201 = vrot.lane.b32.xlu0 %v3166, 64
    %v3202 = vpop.permute.xlu0 %3201
    %3203 = vrot.lane.b32.xlu0 %v3167, 64
    %v3204 = vpop.permute.xlu0 %3203
    %3205 = vrot.lane.b32.xlu0 %v3168, 64
    %v3206 = vpop.permute.xlu0 %3205
    %3207 = vrot.lane.b32.xlu0 %v3169, 64
    %v3208 = vpop.permute.xlu0 %3207
    %3209 = vrot.lane.b32.xlu0 %v3170, 64
    %v3210 = vpop.permute.xlu0 %3209
    %3211 = vrot.lane.b32.xlu0 %v3171, 64
    %v3212 = vpop.permute.xlu0 %3211
    %3213 = vrot.lane.b32.xlu0 %v3172, 64
    %v3214 = vpop.permute.xlu0 %3213
    %3215 = vrot.lane.b32.xlu0 %v3173, 64
    %v3216 = vpop.permute.xlu0 %3215
    %3217 = vrot.lane.b32.xlu0 %v3174, 64
    %v3218 = vpop.permute.xlu0 %3217
    %3219 = vrot.lane.b32.xlu0 %v3175, 64
    %v3220 = vpop.permute.xlu0 %3219
    %3221 = vrot.lane.b32.xlu0 %v3176, 64
    %v3222 = vpop.permute.xlu0 %3221
    %3223 = vrot.lane.b32.xlu0 %v3177, 64
    %v3224 = vpop.permute.xlu0 %3223
    %3225 = vrot.lane.b32.xlu0 %v3178, 64
    %v3226 = vpop.permute.xlu0 %3225
    %3243 = vst.msk [vmem:[#allocation4 + $0x8] sm:$0xff] %vm2533, %v3196
    %3244 = vst.msk [vmem:[#allocation4 + $0x28] sm:$0xff] %vm2533, %v3198
    %3245 = vst.msk [vmem:[#allocation4 + $0x48] sm:$0xff] %vm2533, %v3200
    %3246 = vst.msk [vmem:[#allocation4 + $0x68] sm:$0xff] %vm2533, %v3202
    %3247 = vst.msk [vmem:[#allocation4 + $0x88] sm:$0xff] %vm2533, %v3204
    %3248 = vst.msk [vmem:[#allocation4 + $0xa8] sm:$0xff] %vm2533, %v3206
    %3249 = vst.msk [vmem:[#allocation4 + $0xc8] sm:$0xff] %vm2533, %v3208
    %3250 = vst.msk [vmem:[#allocation4 + $0xe8] sm:$0xff] %vm2533, %v3210
    %3251 = vst.msk [vmem:[#allocation4 + $0x108] sm:$0xff] %vm2533, %v3212
    %3252 = vst.msk [vmem:[#allocation4 + $0x128] sm:$0xff] %vm2533, %v3214
    %3253 = vst.msk [vmem:[#allocation4 + $0x148] sm:$0xff] %vm2533, %v3216
    %3254 = vst.msk [vmem:[#allocation4 + $0x168] sm:$0xff] %vm2533, %v3218
    %3255 = vst.msk [vmem:[#allocation4 + $0x188] sm:$0xff] %vm2533, %v3220
    %3256 = vst.msk [vmem:[#allocation4 + $0x1a8] sm:$0xff] %vm2533, %v3222
    %3257 = vst.msk [vmem:[#allocation4 + $0x1c8] sm:$0xff] %vm2533, %v3224
    %3258 = vst.msk [vmem:[#allocation4 + $0x1e8] sm:$0xff] %vm2533, %v3226
    %v3259 = vld [vmem:[%s2970 + $0x3] sm:$0xff]
    %v3260 = vld [vmem:[%s2970 + $0x13] sm:$0xff]
    %v3261 = vld [vmem:[%s2970 + $0x23] sm:$0xff]
    %v3262 = vld [vmem:[%s2970 + $0x33] sm:$0xff]
    %v3263 = vld [vmem:[%s2970 + $0x43] sm:$0xff]
    %v3264 = vld [vmem:[%s2970 + $0x53] sm:$0xff]
    %v3265 = vld [vmem:[%s2970 + $0x63] sm:$0xff]
    %v3266 = vld [vmem:[%s2970 + $0x73] sm:$0xff]
    %v3267 = vld [vmem:[%s2970 + $0xc3] sm:$0xff]
    %v3268 = vld [vmem:[%s2970 + $0xd3] sm:$0xff]
    %v3269 = vld [vmem:[%s2970 + $0xe3] sm:$0xff]
    %v3270 = vld [vmem:[%s2970 + $0xf3] sm:$0xff]
    %v3271 = vld [vmem:[%s2970 + $0x103] sm:$0xff]
    %v3272 = vld [vmem:[%s2970 + $0x113] sm:$0xff]
    %v3273 = vld [vmem:[%s2970 + $0x123] sm:$0xff]
    %v3274 = vld [vmem:[%s2970 + $0x133] sm:$0xff]
    %3291 = vrot.lane.b32.xlu0 %v3259, 80
    %v3292 = vpop.permute.xlu0 %3291
    %3293 = vrot.lane.b32.xlu0 %v3260, 80
    %v3294 = vpop.permute.xlu0 %3293
    %3295 = vrot.lane.b32.xlu0 %v3261, 80
    %v3296 = vpop.permute.xlu0 %3295
    %3297 = vrot.lane.b32.xlu0 %v3262, 80
    %v3298 = vpop.permute.xlu0 %3297
    %3299 = vrot.lane.b32.xlu0 %v3263, 80
    %v3300 = vpop.permute.xlu0 %3299
    %3301 = vrot.lane.b32.xlu0 %v3264, 80
    %v3302 = vpop.permute.xlu0 %3301
    %3303 = vrot.lane.b32.xlu0 %v3265, 80
    %v3304 = vpop.permute.xlu0 %3303
    %3305 = vrot.lane.b32.xlu0 %v3266, 80
    %v3306 = vpop.permute.xlu0 %3305
    %3307 = vrot.lane.b32.xlu0 %v3267, 80
    %v3308 = vpop.permute.xlu0 %3307
    %3309 = vrot.lane.b32.xlu0 %v3268, 80
    %v3310 = vpop.permute.xlu0 %3309
    %3311 = vrot.lane.b32.xlu0 %v3269, 80
    %v3312 = vpop.permute.xlu0 %3311
    %3313 = vrot.lane.b32.xlu0 %v3270, 80
    %v3314 = vpop.permute.xlu0 %3313
    %3315 = vrot.lane.b32.xlu0 %v3271, 80
    %v3316 = vpop.permute.xlu0 %3315
    %3317 = vrot.lane.b32.xlu0 %v3272, 80
    %v3318 = vpop.permute.xlu0 %3317
    %3319 = vrot.lane.b32.xlu0 %v3273, 80
    %v3320 = vpop.permute.xlu0 %3319
    %3321 = vrot.lane.b32.xlu0 %v3274, 80
    %v3322 = vpop.permute.xlu0 %3321
    %3339 = vst.msk [vmem:[#allocation4 + $0x8] sm:$0xff] %vm2631, %v3292
    %3340 = vst.msk [vmem:[#allocation4 + $0x28] sm:$0xff] %vm2631, %v3294
    %3341 = vst.msk [vmem:[#allocation4 + $0x48] sm:$0xff] %vm2631, %v3296
    %3342 = vst.msk [vmem:[#allocation4 + $0x68] sm:$0xff] %vm2631, %v3298
    %3343 = vst.msk [vmem:[#allocation4 + $0x88] sm:$0xff] %vm2631, %v3300
    %3344 = vst.msk [vmem:[#allocation4 + $0xa8] sm:$0xff] %vm2631, %v3302
    %3345 = vst.msk [vmem:[#allocation4 + $0xc8] sm:$0xff] %vm2631, %v3304
    %3346 = vst.msk [vmem:[#allocation4 + $0xe8] sm:$0xff] %vm2631, %v3306
    %3347 = vst.msk [vmem:[#allocation4 + $0x108] sm:$0xff] %vm2631, %v3308
    %3348 = vst.msk [vmem:[#allocation4 + $0x128] sm:$0xff] %vm2631, %v3310
    %3349 = vst.msk [vmem:[#allocation4 + $0x148] sm:$0xff] %vm2631, %v3312
    %3350 = vst.msk [vmem:[#allocation4 + $0x168] sm:$0xff] %vm2631, %v3314
    %3351 = vst.msk [vmem:[#allocation4 + $0x188] sm:$0xff] %vm2631, %v3316
    %3352 = vst.msk [vmem:[#allocation4 + $0x1a8] sm:$0xff] %vm2631, %v3318
    %3353 = vst.msk [vmem:[#allocation4 + $0x1c8] sm:$0xff] %vm2631, %v3320
    %3354 = vst.msk [vmem:[#allocation4 + $0x1e8] sm:$0xff] %vm2631, %v3322
    %v3355 = vld [vmem:[%s2970 + $0x4] sm:$0xff]
    %v3356 = vld [vmem:[%s2970 + $0x14] sm:$0xff]
    %v3357 = vld [vmem:[%s2970 + $0x24] sm:$0xff]
    %v3358 = vld [vmem:[%s2970 + $0x34] sm:$0xff]
    %v3359 = vld [vmem:[%s2970 + $0x44] sm:$0xff]
    %v3360 = vld [vmem:[%s2970 + $0x54] sm:$0xff]
    %v3361 = vld [vmem:[%s2970 + $0x64] sm:$0xff]
    %v3362 = vld [vmem:[%s2970 + $0x74] sm:$0xff]
    %v3363 = vld [vmem:[%s2970 + $0xc4] sm:$0xff]
    %v3364 = vld [vmem:[%s2970 + $0xd4] sm:$0xff]
    %v3365 = vld [vmem:[%s2970 + $0xe4] sm:$0xff]
    %v3366 = vld [vmem:[%s2970 + $0xf4] sm:$0xff]
    %v3367 = vld [vmem:[%s2970 + $0x104] sm:$0xff]
    %v3368 = vld [vmem:[%s2970 + $0x114] sm:$0xff]
    %v3369 = vld [vmem:[%s2970 + $0x124] sm:$0xff]
    %v3370 = vld [vmem:[%s2970 + $0x134] sm:$0xff]
    %3387 = vrot.lane.b32.xlu0 %v3355, 96
    %v3388 = vpop.permute.xlu0 %3387
    %3389 = vrot.lane.b32.xlu0 %v3356, 96
    %v3390 = vpop.permute.xlu0 %3389
    %3391 = vrot.lane.b32.xlu0 %v3357, 96
    %v3392 = vpop.permute.xlu0 %3391
    %3393 = vrot.lane.b32.xlu0 %v3358, 96
    %v3394 = vpop.permute.xlu0 %3393
    %3395 = vrot.lane.b32.xlu0 %v3359, 96
    %v3396 = vpop.permute.xlu0 %3395
    %3397 = vrot.lane.b32.xlu0 %v3360, 96
    %v3398 = vpop.permute.xlu0 %3397
    %3399 = vrot.lane.b32.xlu0 %v3361, 96
    %v3400 = vpop.permute.xlu0 %3399
    %3401 = vrot.lane.b32.xlu0 %v3362, 96
    %v3402 = vpop.permute.xlu0 %3401
    %3403 = vrot.lane.b32.xlu0 %v3363, 96
    %v3404 = vpop.permute.xlu0 %3403
    %3405 = vrot.lane.b32.xlu0 %v3364, 96
    %v3406 = vpop.permute.xlu0 %3405
    %3407 = vrot.lane.b32.xlu0 %v3365, 96
    %v3408 = vpop.permute.xlu0 %3407
    %3409 = vrot.lane.b32.xlu0 %v3366, 96
    %v3410 = vpop.permute.xlu0 %3409
    %3411 = vrot.lane.b32.xlu0 %v3367, 96
    %v3412 = vpop.permute.xlu0 %3411
    %3413 = vrot.lane.b32.xlu0 %v3368, 96
    %v3414 = vpop.permute.xlu0 %3413
    %3415 = vrot.lane.b32.xlu0 %v3369, 96
    %v3416 = vpop.permute.xlu0 %3415
    %3417 = vrot.lane.b32.xlu0 %v3370, 96
    %v3418 = vpop.permute.xlu0 %3417
    %3435 = vst.msk [vmem:[#allocation4 + $0x8] sm:$0xff] %vm2728, %v3388
    %3436 = vst.msk [vmem:[#allocation4 + $0x28] sm:$0xff] %vm2728, %v3390
    %3437 = vst.msk [vmem:[#allocation4 + $0x48] sm:$0xff] %vm2728, %v3392
    %3438 = vst.msk [vmem:[#allocation4 + $0x68] sm:$0xff] %vm2728, %v3394
    %3439 = vst.msk [vmem:[#allocation4 + $0x88] sm:$0xff] %vm2728, %v3396
    %3440 = vst.msk [vmem:[#allocation4 + $0xa8] sm:$0xff] %vm2728, %v3398
    %3441 = vst.msk [vmem:[#allocation4 + $0xc8] sm:$0xff] %vm2728, %v3400
    %3442 = vst.msk [vmem:[#allocation4 + $0xe8] sm:$0xff] %vm2728, %v3402
    %3443 = vst.msk [vmem:[#allocation4 + $0x108] sm:$0xff] %vm2728, %v3404
    %3444 = vst.msk [vmem:[#allocation4 + $0x128] sm:$0xff] %vm2728, %v3406
    %3445 = vst.msk [vmem:[#allocation4 + $0x148] sm:$0xff] %vm2728, %v3408
    %3446 = vst.msk [vmem:[#allocation4 + $0x168] sm:$0xff] %vm2728, %v3410
    %3447 = vst.msk [vmem:[#allocation4 + $0x188] sm:$0xff] %vm2728, %v3412
    %3448 = vst.msk [vmem:[#allocation4 + $0x1a8] sm:$0xff] %vm2728, %v3414
    %3449 = vst.msk [vmem:[#allocation4 + $0x1c8] sm:$0xff] %vm2728, %v3416
    %3450 = vst.msk [vmem:[#allocation4 + $0x1e8] sm:$0xff] %vm2728, %v3418
    %s3451 = scalar_lea.vmem [#allocation3], 48
    %v3452 = vld [vmem:[%s3451] sm:$0xff]
    %v3453 = vld [vmem:[%s3451 + $0x10] sm:$0xff]
    %v3454 = vld [vmem:[%s3451 + $0x20] sm:$0xff]
    %v3455 = vld [vmem:[%s3451 + $0x30] sm:$0xff]
    %v3456 = vld [vmem:[%s3451 + $0x40] sm:$0xff]
    %v3457 = vld [vmem:[%s3451 + $0x50] sm:$0xff]
    %v3458 = vld [vmem:[%s3451 + $0x60] sm:$0xff]
    %v3459 = vld [vmem:[%s3451 + $0x70] sm:$0xff]
    %v3460 = vld [vmem:[%s3451 + $0xc0] sm:$0xff]
    %v3461 = vld [vmem:[%s3451 + $0xd0] sm:$0xff]
    %v3462 = vld [vmem:[%s3451 + $0xe0] sm:$0xff]
    %v3463 = vld [vmem:[%s3451 + $0xf0] sm:$0xff]
    %v3464 = vld [vmem:[%s3451 + $0x100] sm:$0xff]
    %v3465 = vld [vmem:[%s3451 + $0x110] sm:$0xff]
    %v3466 = vld [vmem:[%s3451 + $0x120] sm:$0xff]
    %v3467 = vld [vmem:[%s3451 + $0x130] sm:$0xff]
    %3484 = vrot.lane.b32.xlu0 %v3452, 112
    %v3485 = vpop.permute.xlu0 %3484
    %3486 = vrot.lane.b32.xlu0 %v3453, 112
    %v3487 = vpop.permute.xlu0 %3486
    %3488 = vrot.lane.b32.xlu0 %v3454, 112
    %v3489 = vpop.permute.xlu0 %3488
    %3490 = vrot.lane.b32.xlu0 %v3455, 112
    %v3491 = vpop.permute.xlu0 %3490
    %3492 = vrot.lane.b32.xlu0 %v3456, 112
    %v3493 = vpop.permute.xlu0 %3492
    %3494 = vrot.lane.b32.xlu0 %v3457, 112
    %v3495 = vpop.permute.xlu0 %3494
    %3496 = vrot.lane.b32.xlu0 %v3458, 112
    %v3497 = vpop.permute.xlu0 %3496
    %3498 = vrot.lane.b32.xlu0 %v3459, 112
    %v3499 = vpop.permute.xlu0 %3498
    %3500 = vrot.lane.b32.xlu0 %v3460, 112
    %v3501 = vpop.permute.xlu0 %3500
    %3502 = vrot.lane.b32.xlu0 %v3461, 112
    %v3503 = vpop.permute.xlu0 %3502
    %3504 = vrot.lane.b32.xlu0 %v3462, 112
    %v3505 = vpop.permute.xlu0 %3504
    %3506 = vrot.lane.b32.xlu0 %v3463, 112
    %v3507 = vpop.permute.xlu0 %3506
    %3508 = vrot.lane.b32.xlu0 %v3464, 112
    %v3509 = vpop.permute.xlu0 %3508
    %3510 = vrot.lane.b32.xlu0 %v3465, 112
    %v3511 = vpop.permute.xlu0 %3510
    %3512 = vrot.lane.b32.xlu0 %v3466, 112
    %v3513 = vpop.permute.xlu0 %3512
    %3514 = vrot.lane.b32.xlu0 %v3467, 112
    %v3515 = vpop.permute.xlu0 %3514
    %3532 = vst.msk [vmem:[#allocation4 + $0x8] sm:$0xff] %vm2825, %v3485
    %3533 = vst.msk [vmem:[#allocation4 + $0x28] sm:$0xff] %vm2825, %v3487
    %3534 = vst.msk [vmem:[#allocation4 + $0x48] sm:$0xff] %vm2825, %v3489
    %3535 = vst.msk [vmem:[#allocation4 + $0x68] sm:$0xff] %vm2825, %v3491
    %3536 = vst.msk [vmem:[#allocation4 + $0x88] sm:$0xff] %vm2825, %v3493
    %3537 = vst.msk [vmem:[#allocation4 + $0xa8] sm:$0xff] %vm2825, %v3495
    %3538 = vst.msk [vmem:[#allocation4 + $0xc8] sm:$0xff] %vm2825, %v3497
    %3539 = vst.msk [vmem:[#allocation4 + $0xe8] sm:$0xff] %vm2825, %v3499
    %3540 = vst.msk [vmem:[#allocation4 + $0x108] sm:$0xff] %vm2825, %v3501
    %3541 = vst.msk [vmem:[#allocation4 + $0x128] sm:$0xff] %vm2825, %v3503
    %3542 = vst.msk [vmem:[#allocation4 + $0x148] sm:$0xff] %vm2825, %v3505
    %3543 = vst.msk [vmem:[#allocation4 + $0x168] sm:$0xff] %vm2825, %v3507
    %3544 = vst.msk [vmem:[#allocation4 + $0x188] sm:$0xff] %vm2825, %v3509
    %3545 = vst.msk [vmem:[#allocation4 + $0x1a8] sm:$0xff] %vm2825, %v3511
    %3546 = vst.msk [vmem:[#allocation4 + $0x1c8] sm:$0xff] %vm2825, %v3513
    %3547 = vst.msk [vmem:[#allocation4 + $0x1e8] sm:$0xff] %vm2825, %v3515
    %v3548 = vld [vmem:[%s3451 + $0x1] sm:$0xff]
    %v3549 = vld [vmem:[%s3451 + $0x11] sm:$0xff]
    %v3550 = vld [vmem:[%s3451 + $0x21] sm:$0xff]
    %v3551 = vld [vmem:[%s3451 + $0x31] sm:$0xff]
    %v3552 = vld [vmem:[%s3451 + $0x41] sm:$0xff]
    %v3553 = vld [vmem:[%s3451 + $0x51] sm:$0xff]
    %v3554 = vld [vmem:[%s3451 + $0x61] sm:$0xff]
    %v3555 = vld [vmem:[%s3451 + $0x71] sm:$0xff]
    %v3556 = vld [vmem:[%s3451 + $0xc1] sm:$0xff]
    %v3557 = vld [vmem:[%s3451 + $0xd1] sm:$0xff]
    %v3558 = vld [vmem:[%s3451 + $0xe1] sm:$0xff]
    %v3559 = vld [vmem:[%s3451 + $0xf1] sm:$0xff]
    %v3560 = vld [vmem:[%s3451 + $0x101] sm:$0xff]
    %v3561 = vld [vmem:[%s3451 + $0x111] sm:$0xff]
    %v3562 = vld [vmem:[%s3451 + $0x121] sm:$0xff]
    %v3563 = vld [vmem:[%s3451 + $0x131] sm:$0xff]
    %3564 = vst.msk [vmem:[#allocation4 + $0x10] sm:$0xff] %vm391, %v3548
    %3565 = vst.msk [vmem:[#allocation4 + $0x30] sm:$0xff] %vm391, %v3549
    %3566 = vst.msk [vmem:[#allocation4 + $0x50] sm:$0xff] %vm391, %v3550
    %3567 = vst.msk [vmem:[#allocation4 + $0x70] sm:$0xff] %vm391, %v3551
    %3568 = vst.msk [vmem:[#allocation4 + $0x90] sm:$0xff] %vm391, %v3552
    %3569 = vst.msk [vmem:[#allocation4 + $0xb0] sm:$0xff] %vm391, %v3553
    %3570 = vst.msk [vmem:[#allocation4 + $0xd0] sm:$0xff] %vm391, %v3554
    %3571 = vst.msk [vmem:[#allocation4 + $0xf0] sm:$0xff] %vm391, %v3555
    %3572 = vst.msk [vmem:[#allocation4 + $0x110] sm:$0xff] %vm391, %v3556
    %3573 = vst.msk [vmem:[#allocation4 + $0x130] sm:$0xff] %vm391, %v3557
    %3574 = vst.msk [vmem:[#allocation4 + $0x150] sm:$0xff] %vm391, %v3558
    %3575 = vst.msk [vmem:[#allocation4 + $0x170] sm:$0xff] %vm391, %v3559
    %3576 = vst.msk [vmem:[#allocation4 + $0x190] sm:$0xff] %vm391, %v3560
    %3577 = vst.msk [vmem:[#allocation4 + $0x1b0] sm:$0xff] %vm391, %v3561
    %3578 = vst.msk [vmem:[#allocation4 + $0x1d0] sm:$0xff] %vm391, %v3562
    %3579 = vst.msk [vmem:[#allocation4 + $0x1f0] sm:$0xff] %vm391, %v3563
    %v3580 = vld [vmem:[%s3451 + $0x2] sm:$0xff]
    %v3581 = vld [vmem:[%s3451 + $0x12] sm:$0xff]
    %v3582 = vld [vmem:[%s3451 + $0x22] sm:$0xff]
    %v3583 = vld [vmem:[%s3451 + $0x32] sm:$0xff]
    %v3584 = vld [vmem:[%s3451 + $0x42] sm:$0xff]
    %v3585 = vld [vmem:[%s3451 + $0x52] sm:$0xff]
    %v3586 = vld [vmem:[%s3451 + $0x62] sm:$0xff]
    %v3587 = vld [vmem:[%s3451 + $0x72] sm:$0xff]
    %v3588 = vld [vmem:[%s3451 + $0xc2] sm:$0xff]
    %v3589 = vld [vmem:[%s3451 + $0xd2] sm:$0xff]
    %v3590 = vld [vmem:[%s3451 + $0xe2] sm:$0xff]
    %v3591 = vld [vmem:[%s3451 + $0xf2] sm:$0xff]
    %v3592 = vld [vmem:[%s3451 + $0x102] sm:$0xff]
    %v3593 = vld [vmem:[%s3451 + $0x112] sm:$0xff]
    %v3594 = vld [vmem:[%s3451 + $0x122] sm:$0xff]
    %v3595 = vld [vmem:[%s3451 + $0x132] sm:$0xff]
    %3612 = vrot.lane.b32.xlu0 %v3580, 16
    %v3613 = vpop.permute.xlu0 %3612
    %3614 = vrot.lane.b32.xlu0 %v3581, 16
    %v3615 = vpop.permute.xlu0 %3614
    %3616 = vrot.lane.b32.xlu0 %v3582, 16
    %v3617 = vpop.permute.xlu0 %3616
    %3618 = vrot.lane.b32.xlu0 %v3583, 16
    %v3619 = vpop.permute.xlu0 %3618
    %3620 = vrot.lane.b32.xlu0 %v3584, 16
    %v3621 = vpop.permute.xlu0 %3620
    %3622 = vrot.lane.b32.xlu0 %v3585, 16
    %v3623 = vpop.permute.xlu0 %3622
    %3624 = vrot.lane.b32.xlu0 %v3586, 16
    %v3625 = vpop.permute.xlu0 %3624
    %3626 = vrot.lane.b32.xlu0 %v3587, 16
    %v3627 = vpop.permute.xlu0 %3626
    %3628 = vrot.lane.b32.xlu0 %v3588, 16
    %v3629 = vpop.permute.xlu0 %3628
    %3630 = vrot.lane.b32.xlu0 %v3589, 16
    %v3631 = vpop.permute.xlu0 %3630
    %3632 = vrot.lane.b32.xlu0 %v3590, 16
    %v3633 = vpop.permute.xlu0 %3632
    %3634 = vrot.lane.b32.xlu0 %v3591, 16
    %v3635 = vpop.permute.xlu0 %3634
    %3636 = vrot.lane.b32.xlu0 %v3592, 16
    %v3637 = vpop.permute.xlu0 %3636
    %3638 = vrot.lane.b32.xlu0 %v3593, 16
    %v3639 = vpop.permute.xlu0 %3638
    %3640 = vrot.lane.b32.xlu0 %v3594, 16
    %v3641 = vpop.permute.xlu0 %3640
    %3642 = vrot.lane.b32.xlu0 %v3595, 16
    %v3643 = vpop.permute.xlu0 %3642
    %3660 = vst.msk [vmem:[#allocation4 + $0x10] sm:$0xff] %vm2242, %v3613
    %3661 = vst.msk [vmem:[#allocation4 + $0x30] sm:$0xff] %vm2242, %v3615
    %3662 = vst.msk [vmem:[#allocation4 + $0x50] sm:$0xff] %vm2242, %v3617
    %3663 = vst.msk [vmem:[#allocation4 + $0x70] sm:$0xff] %vm2242, %v3619
    %3664 = vst.msk [vmem:[#allocation4 + $0x90] sm:$0xff] %vm2242, %v3621
    %3665 = vst.msk [vmem:[#allocation4 + $0xb0] sm:$0xff] %vm2242, %v3623
    %3666 = vst.msk [vmem:[#allocation4 + $0xd0] sm:$0xff] %vm2242, %v3625
    %3667 = vst.msk [vmem:[#allocation4 + $0xf0] sm:$0xff] %vm2242, %v3627
    %3668 = vst.msk [vmem:[#allocation4 + $0x110] sm:$0xff] %vm2242, %v3629
    %3669 = vst.msk [vmem:[#allocation4 + $0x130] sm:$0xff] %vm2242, %v3631
    %3670 = vst.msk [vmem:[#allocation4 + $0x150] sm:$0xff] %vm2242, %v3633
    %3671 = vst.msk [vmem:[#allocation4 + $0x170] sm:$0xff] %vm2242, %v3635
    %3672 = vst.msk [vmem:[#allocation4 + $0x190] sm:$0xff] %vm2242, %v3637
    %3673 = vst.msk [vmem:[#allocation4 + $0x1b0] sm:$0xff] %vm2242, %v3639
    %3674 = vst.msk [vmem:[#allocation4 + $0x1d0] sm:$0xff] %vm2242, %v3641
    %3675 = vst.msk [vmem:[#allocation4 + $0x1f0] sm:$0xff] %vm2242, %v3643
    %v3676 = vld [vmem:[%s3451 + $0x3] sm:$0xff]
    %v3677 = vld [vmem:[%s3451 + $0x13] sm:$0xff]
    %v3678 = vld [vmem:[%s3451 + $0x23] sm:$0xff]
    %v3679 = vld [vmem:[%s3451 + $0x33] sm:$0xff]
    %v3680 = vld [vmem:[%s3451 + $0x43] sm:$0xff]
    %v3681 = vld [vmem:[%s3451 + $0x53] sm:$0xff]
    %v3682 = vld [vmem:[%s3451 + $0x63] sm:$0xff]
    %v3683 = vld [vmem:[%s3451 + $0x73] sm:$0xff]
    %v3684 = vld [vmem:[%s3451 + $0xc3] sm:$0xff]
    %v3685 = vld [vmem:[%s3451 + $0xd3] sm:$0xff]
    %v3686 = vld [vmem:[%s3451 + $0xe3] sm:$0xff]
    %v3687 = vld [vmem:[%s3451 + $0xf3] sm:$0xff]
    %v3688 = vld [vmem:[%s3451 + $0x103] sm:$0xff]
    %v3689 = vld [vmem:[%s3451 + $0x113] sm:$0xff]
    %v3690 = vld [vmem:[%s3451 + $0x123] sm:$0xff]
    %v3691 = vld [vmem:[%s3451 + $0x133] sm:$0xff]
    %3708 = vrot.lane.b32.xlu0 %v3676, 32
    %v3709 = vpop.permute.xlu0 %3708
    %3710 = vrot.lane.b32.xlu0 %v3677, 32
    %v3711 = vpop.permute.xlu0 %3710
    %3712 = vrot.lane.b32.xlu0 %v3678, 32
    %v3713 = vpop.permute.xlu0 %3712
    %3714 = vrot.lane.b32.xlu0 %v3679, 32
    %v3715 = vpop.permute.xlu0 %3714
    %3716 = vrot.lane.b32.xlu0 %v3680, 32
    %v3717 = vpop.permute.xlu0 %3716
    %3718 = vrot.lane.b32.xlu0 %v3681, 32
    %v3719 = vpop.permute.xlu0 %3718
    %3720 = vrot.lane.b32.xlu0 %v3682, 32
    %v3721 = vpop.permute.xlu0 %3720
    %3722 = vrot.lane.b32.xlu0 %v3683, 32
    %v3723 = vpop.permute.xlu0 %3722
    %3724 = vrot.lane.b32.xlu0 %v3684, 32
    %v3725 = vpop.permute.xlu0 %3724
    %3726 = vrot.lane.b32.xlu0 %v3685, 32
    %v3727 = vpop.permute.xlu0 %3726
    %3728 = vrot.lane.b32.xlu0 %v3686, 32
    %v3729 = vpop.permute.xlu0 %3728
    %3730 = vrot.lane.b32.xlu0 %v3687, 32
    %v3731 = vpop.permute.xlu0 %3730
    %3732 = vrot.lane.b32.xlu0 %v3688, 32
    %v3733 = vpop.permute.xlu0 %3732
    %3734 = vrot.lane.b32.xlu0 %v3689, 32
    %v3735 = vpop.permute.xlu0 %3734
    %3736 = vrot.lane.b32.xlu0 %v3690, 32
    %v3737 = vpop.permute.xlu0 %3736
    %3738 = vrot.lane.b32.xlu0 %v3691, 32
    %v3739 = vpop.permute.xlu0 %3738
    %3756 = vst.msk [vmem:[#allocation4 + $0x10] sm:$0xff] %vm2339, %v3709
    %3757 = vst.msk [vmem:[#allocation4 + $0x30] sm:$0xff] %vm2339, %v3711
    %3758 = vst.msk [vmem:[#allocation4 + $0x50] sm:$0xff] %vm2339, %v3713
    %3759 = vst.msk [vmem:[#allocation4 + $0x70] sm:$0xff] %vm2339, %v3715
    %3760 = vst.msk [vmem:[#allocation4 + $0x90] sm:$0xff] %vm2339, %v3717
    %3761 = vst.msk [vmem:[#allocation4 + $0xb0] sm:$0xff] %vm2339, %v3719
    %3762 = vst.msk [vmem:[#allocation4 + $0xd0] sm:$0xff] %vm2339, %v3721
    %3763 = vst.msk [vmem:[#allocation4 + $0xf0] sm:$0xff] %vm2339, %v3723
    %3764 = vst.msk [vmem:[#allocation4 + $0x110] sm:$0xff] %vm2339, %v3725
    %3765 = vst.msk [vmem:[#allocation4 + $0x130] sm:$0xff] %vm2339, %v3727
    %3766 = vst.msk [vmem:[#allocation4 + $0x150] sm:$0xff] %vm2339, %v3729
    %3767 = vst.msk [vmem:[#allocation4 + $0x170] sm:$0xff] %vm2339, %v3731
    %3768 = vst.msk [vmem:[#allocation4 + $0x190] sm:$0xff] %vm2339, %v3733
    %3769 = vst.msk [vmem:[#allocation4 + $0x1b0] sm:$0xff] %vm2339, %v3735
    %3770 = vst.msk [vmem:[#allocation4 + $0x1d0] sm:$0xff] %vm2339, %v3737
    %3771 = vst.msk [vmem:[#allocation4 + $0x1f0] sm:$0xff] %vm2339, %v3739
    %v3772 = vld [vmem:[%s3451 + $0x4] sm:$0xff]
    %v3773 = vld [vmem:[%s3451 + $0x14] sm:$0xff]
    %v3774 = vld [vmem:[%s3451 + $0x24] sm:$0xff]
    %v3775 = vld [vmem:[%s3451 + $0x34] sm:$0xff]
    %v3776 = vld [vmem:[%s3451 + $0x44] sm:$0xff]
    %v3777 = vld [vmem:[%s3451 + $0x54] sm:$0xff]
    %v3778 = vld [vmem:[%s3451 + $0x64] sm:$0xff]
    %v3779 = vld [vmem:[%s3451 + $0x74] sm:$0xff]
    %v3780 = vld [vmem:[%s3451 + $0xc4] sm:$0xff]
    %v3781 = vld [vmem:[%s3451 + $0xd4] sm:$0xff]
    %v3782 = vld [vmem:[%s3451 + $0xe4] sm:$0xff]
    %v3783 = vld [vmem:[%s3451 + $0xf4] sm:$0xff]
    %v3784 = vld [vmem:[%s3451 + $0x104] sm:$0xff]
    %v3785 = vld [vmem:[%s3451 + $0x114] sm:$0xff]
    %v3786 = vld [vmem:[%s3451 + $0x124] sm:$0xff]
    %v3787 = vld [vmem:[%s3451 + $0x134] sm:$0xff]
    %3804 = vrot.lane.b32.xlu0 %v3772, 48
    %v3805 = vpop.permute.xlu0 %3804
    %3806 = vrot.lane.b32.xlu0 %v3773, 48
    %v3807 = vpop.permute.xlu0 %3806
    %3808 = vrot.lane.b32.xlu0 %v3774, 48
    %v3809 = vpop.permute.xlu0 %3808
    %3810 = vrot.lane.b32.xlu0 %v3775, 48
    %v3811 = vpop.permute.xlu0 %3810
    %3812 = vrot.lane.b32.xlu0 %v3776, 48
    %v3813 = vpop.permute.xlu0 %3812
    %3814 = vrot.lane.b32.xlu0 %v3777, 48
    %v3815 = vpop.permute.xlu0 %3814
    %3816 = vrot.lane.b32.xlu0 %v3778, 48
    %v3817 = vpop.permute.xlu0 %3816
    %3818 = vrot.lane.b32.xlu0 %v3779, 48
    %v3819 = vpop.permute.xlu0 %3818
    %3820 = vrot.lane.b32.xlu0 %v3780, 48
    %v3821 = vpop.permute.xlu0 %3820
    %3822 = vrot.lane.b32.xlu0 %v3781, 48
    %v3823 = vpop.permute.xlu0 %3822
    %3824 = vrot.lane.b32.xlu0 %v3782, 48
    %v3825 = vpop.permute.xlu0 %3824
    %3826 = vrot.lane.b32.xlu0 %v3783, 48
    %v3827 = vpop.permute.xlu0 %3826
    %3828 = vrot.lane.b32.xlu0 %v3784, 48
    %v3829 = vpop.permute.xlu0 %3828
    %3830 = vrot.lane.b32.xlu0 %v3785, 48
    %v3831 = vpop.permute.xlu0 %3830
    %3832 = vrot.lane.b32.xlu0 %v3786, 48
    %v3833 = vpop.permute.xlu0 %3832
    %3834 = vrot.lane.b32.xlu0 %v3787, 48
    %v3835 = vpop.permute.xlu0 %3834
    %3852 = vst.msk [vmem:[#allocation4 + $0x10] sm:$0xff] %vm2436, %v3805
    %3853 = vst.msk [vmem:[#allocation4 + $0x30] sm:$0xff] %vm2436, %v3807
    %3854 = vst.msk [vmem:[#allocation4 + $0x50] sm:$0xff] %vm2436, %v3809
    %3855 = vst.msk [vmem:[#allocation4 + $0x70] sm:$0xff] %vm2436, %v3811
    %3856 = vst.msk [vmem:[#allocation4 + $0x90] sm:$0xff] %vm2436, %v3813
    %3857 = vst.msk [vmem:[#allocation4 + $0xb0] sm:$0xff] %vm2436, %v3815
    %3858 = vst.msk [vmem:[#allocation4 + $0xd0] sm:$0xff] %vm2436, %v3817
    %3859 = vst.msk [vmem:[#allocation4 + $0xf0] sm:$0xff] %vm2436, %v3819
    %3860 = vst.msk [vmem:[#allocation4 + $0x110] sm:$0xff] %vm2436, %v3821
    %3861 = vst.msk [vmem:[#allocation4 + $0x130] sm:$0xff] %vm2436, %v3823
    %3862 = vst.msk [vmem:[#allocation4 + $0x150] sm:$0xff] %vm2436, %v3825
    %3863 = vst.msk [vmem:[#allocation4 + $0x170] sm:$0xff] %vm2436, %v3827
    %3864 = vst.msk [vmem:[#allocation4 + $0x190] sm:$0xff] %vm2436, %v3829
    %3865 = vst.msk [vmem:[#allocation4 + $0x1b0] sm:$0xff] %vm2436, %v3831
    %3866 = vst.msk [vmem:[#allocation4 + $0x1d0] sm:$0xff] %vm2436, %v3833
    %3867 = vst.msk [vmem:[#allocation4 + $0x1f0] sm:$0xff] %vm2436, %v3835
    %s3868 = scalar_lea.vmem [#allocation3], 64
    %v3869 = vld [vmem:[%s3868] sm:$0xff]
    %v3870 = vld [vmem:[%s3868 + $0x10] sm:$0xff]
    %v3871 = vld [vmem:[%s3868 + $0x20] sm:$0xff]
    %v3872 = vld [vmem:[%s3868 + $0x30] sm:$0xff]
    %v3873 = vld [vmem:[%s3868 + $0x40] sm:$0xff]
    %v3874 = vld [vmem:[%s3868 + $0x50] sm:$0xff]
    %v3875 = vld [vmem:[%s3868 + $0x60] sm:$0xff]
    %v3876 = vld [vmem:[%s3868 + $0x70] sm:$0xff]
    %v3877 = vld [vmem:[%s3868 + $0xc0] sm:$0xff]
    %v3878 = vld [vmem:[%s3868 + $0xd0] sm:$0xff]
    %v3879 = vld [vmem:[%s3868 + $0xe0] sm:$0xff]
    %v3880 = vld [vmem:[%s3868 + $0xf0] sm:$0xff]
    %v3881 = vld [vmem:[%s3868 + $0x100] sm:$0xff]
    %v3882 = vld [vmem:[%s3868 + $0x110] sm:$0xff]
    %v3883 = vld [vmem:[%s3868 + $0x120] sm:$0xff]
    %v3884 = vld [vmem:[%s3868 + $0x130] sm:$0xff]
    %3901 = vrot.lane.b32.xlu0 %v3869, 64
    %v3902 = vpop.permute.xlu0 %3901
    %3903 = vrot.lane.b32.xlu0 %v3870, 64
    %v3904 = vpop.permute.xlu0 %3903
    %3905 = vrot.lane.b32.xlu0 %v3871, 64
    %v3906 = vpop.permute.xlu0 %3905
    %3907 = vrot.lane.b32.xlu0 %v3872, 64
    %v3908 = vpop.permute.xlu0 %3907
    %3909 = vrot.lane.b32.xlu0 %v3873, 64
    %v3910 = vpop.permute.xlu0 %3909
    %3911 = vrot.lane.b32.xlu0 %v3874, 64
    %v3912 = vpop.permute.xlu0 %3911
    %3913 = vrot.lane.b32.xlu0 %v3875, 64
    %v3914 = vpop.permute.xlu0 %3913
    %3915 = vrot.lane.b32.xlu0 %v3876, 64
    %v3916 = vpop.permute.xlu0 %3915
    %3917 = vrot.lane.b32.xlu0 %v3877, 64
    %v3918 = vpop.permute.xlu0 %3917
    %3919 = vrot.lane.b32.xlu0 %v3878, 64
    %v3920 = vpop.permute.xlu0 %3919
    %3921 = vrot.lane.b32.xlu0 %v3879, 64
    %v3922 = vpop.permute.xlu0 %3921
    %3923 = vrot.lane.b32.xlu0 %v3880, 64
    %v3924 = vpop.permute.xlu0 %3923
    %3925 = vrot.lane.b32.xlu0 %v3881, 64
    %v3926 = vpop.permute.xlu0 %3925
    %3927 = vrot.lane.b32.xlu0 %v3882, 64
    %v3928 = vpop.permute.xlu0 %3927
    %3929 = vrot.lane.b32.xlu0 %v3883, 64
    %v3930 = vpop.permute.xlu0 %3929
    %3931 = vrot.lane.b32.xlu0 %v3884, 64
    %v3932 = vpop.permute.xlu0 %3931
    %3949 = vst.msk [vmem:[#allocation4 + $0x10] sm:$0xff] %vm2533, %v3902
    %3950 = vst.msk [vmem:[#allocation4 + $0x30] sm:$0xff] %vm2533, %v3904
    %3951 = vst.msk [vmem:[#allocation4 + $0x50] sm:$0xff] %vm2533, %v3906
    %3952 = vst.msk [vmem:[#allocation4 + $0x70] sm:$0xff] %vm2533, %v3908
    %3953 = vst.msk [vmem:[#allocation4 + $0x90] sm:$0xff] %vm2533, %v3910
    %3954 = vst.msk [vmem:[#allocation4 + $0xb0] sm:$0xff] %vm2533, %v3912
    %3955 = vst.msk [vmem:[#allocation4 + $0xd0] sm:$0xff] %vm2533, %v3914
    %3956 = vst.msk [vmem:[#allocation4 + $0xf0] sm:$0xff] %vm2533, %v3916
    %3957 = vst.msk [vmem:[#allocation4 + $0x110] sm:$0xff] %vm2533, %v3918
    %3958 = vst.msk [vmem:[#allocation4 + $0x130] sm:$0xff] %vm2533, %v3920
    %3959 = vst.msk [vmem:[#allocation4 + $0x150] sm:$0xff] %vm2533, %v3922
    %3960 = vst.msk [vmem:[#allocation4 + $0x170] sm:$0xff] %vm2533, %v3924
    %3961 = vst.msk [vmem:[#allocation4 + $0x190] sm:$0xff] %vm2533, %v3926
    %3962 = vst.msk [vmem:[#allocation4 + $0x1b0] sm:$0xff] %vm2533, %v3928
    %3963 = vst.msk [vmem:[#allocation4 + $0x1d0] sm:$0xff] %vm2533, %v3930
    %3964 = vst.msk [vmem:[#allocation4 + $0x1f0] sm:$0xff] %vm2533, %v3932
    %v3965 = vld [vmem:[%s3868 + $0x1] sm:$0xff]
    %v3966 = vld [vmem:[%s3868 + $0x11] sm:$0xff]
    %v3967 = vld [vmem:[%s3868 + $0x21] sm:$0xff]
    %v3968 = vld [vmem:[%s3868 + $0x31] sm:$0xff]
    %v3969 = vld [vmem:[%s3868 + $0x41] sm:$0xff]
    %v3970 = vld [vmem:[%s3868 + $0x51] sm:$0xff]
    %v3971 = vld [vmem:[%s3868 + $0x61] sm:$0xff]
    %v3972 = vld [vmem:[%s3868 + $0x71] sm:$0xff]
    %v3973 = vld [vmem:[%s3868 + $0xc1] sm:$0xff]
    %v3974 = vld [vmem:[%s3868 + $0xd1] sm:$0xff]
    %v3975 = vld [vmem:[%s3868 + $0xe1] sm:$0xff]
    %v3976 = vld [vmem:[%s3868 + $0xf1] sm:$0xff]
    %v3977 = vld [vmem:[%s3868 + $0x101] sm:$0xff]
    %v3978 = vld [vmem:[%s3868 + $0x111] sm:$0xff]
    %v3979 = vld [vmem:[%s3868 + $0x121] sm:$0xff]
    %v3980 = vld [vmem:[%s3868 + $0x131] sm:$0xff]
    %3997 = vrot.lane.b32.xlu0 %v3965, 80
    %v3998 = vpop.permute.xlu0 %3997
    %3999 = vrot.lane.b32.xlu0 %v3966, 80
    %v4000 = vpop.permute.xlu0 %3999
    %4001 = vrot.lane.b32.xlu0 %v3967, 80
    %v4002 = vpop.permute.xlu0 %4001
    %4003 = vrot.lane.b32.xlu0 %v3968, 80
    %v4004 = vpop.permute.xlu0 %4003
    %4005 = vrot.lane.b32.xlu0 %v3969, 80
    %v4006 = vpop.permute.xlu0 %4005
    %4007 = vrot.lane.b32.xlu0 %v3970, 80
    %v4008 = vpop.permute.xlu0 %4007
    %4009 = vrot.lane.b32.xlu0 %v3971, 80
    %v4010 = vpop.permute.xlu0 %4009
    %4011 = vrot.lane.b32.xlu0 %v3972, 80
    %v4012 = vpop.permute.xlu0 %4011
    %4013 = vrot.lane.b32.xlu0 %v3973, 80
    %v4014 = vpop.permute.xlu0 %4013
    %4015 = vrot.lane.b32.xlu0 %v3974, 80
    %v4016 = vpop.permute.xlu0 %4015
    %4017 = vrot.lane.b32.xlu0 %v3975, 80
    %v4018 = vpop.permute.xlu0 %4017
    %4019 = vrot.lane.b32.xlu0 %v3976, 80
    %v4020 = vpop.permute.xlu0 %4019
    %4021 = vrot.lane.b32.xlu0 %v3977, 80
    %v4022 = vpop.permute.xlu0 %4021
    %4023 = vrot.lane.b32.xlu0 %v3978, 80
    %v4024 = vpop.permute.xlu0 %4023
    %4025 = vrot.lane.b32.xlu0 %v3979, 80
    %v4026 = vpop.permute.xlu0 %4025
    %4027 = vrot.lane.b32.xlu0 %v3980, 80
    %v4028 = vpop.permute.xlu0 %4027
    %4045 = vst.msk [vmem:[#allocation4 + $0x10] sm:$0xff] %vm2631, %v3998
    %4046 = vst.msk [vmem:[#allocation4 + $0x30] sm:$0xff] %vm2631, %v4000
    %4047 = vst.msk [vmem:[#allocation4 + $0x50] sm:$0xff] %vm2631, %v4002
    %4048 = vst.msk [vmem:[#allocation4 + $0x70] sm:$0xff] %vm2631, %v4004
    %4049 = vst.msk [vmem:[#allocation4 + $0x90] sm:$0xff] %vm2631, %v4006
    %4050 = vst.msk [vmem:[#allocation4 + $0xb0] sm:$0xff] %vm2631, %v4008
    %4051 = vst.msk [vmem:[#allocation4 + $0xd0] sm:$0xff] %vm2631, %v4010
    %4052 = vst.msk [vmem:[#allocation4 + $0xf0] sm:$0xff] %vm2631, %v4012
    %4053 = vst.msk [vmem:[#allocation4 + $0x110] sm:$0xff] %vm2631, %v4014
    %4054 = vst.msk [vmem:[#allocation4 + $0x130] sm:$0xff] %vm2631, %v4016
    %4055 = vst.msk [vmem:[#allocation4 + $0x150] sm:$0xff] %vm2631, %v4018
    %4056 = vst.msk [vmem:[#allocation4 + $0x170] sm:$0xff] %vm2631, %v4020
    %4057 = vst.msk [vmem:[#allocation4 + $0x190] sm:$0xff] %vm2631, %v4022
    %4058 = vst.msk [vmem:[#allocation4 + $0x1b0] sm:$0xff] %vm2631, %v4024
    %4059 = vst.msk [vmem:[#allocation4 + $0x1d0] sm:$0xff] %vm2631, %v4026
    %4060 = vst.msk [vmem:[#allocation4 + $0x1f0] sm:$0xff] %vm2631, %v4028
    %v4061 = vld [vmem:[%s3868 + $0x2] sm:$0xff]
    %v4062 = vld [vmem:[%s3868 + $0x12] sm:$0xff]
    %v4063 = vld [vmem:[%s3868 + $0x22] sm:$0xff]
    %v4064 = vld [vmem:[%s3868 + $0x32] sm:$0xff]
    %v4065 = vld [vmem:[%s3868 + $0x42] sm:$0xff]
    %v4066 = vld [vmem:[%s3868 + $0x52] sm:$0xff]
    %v4067 = vld [vmem:[%s3868 + $0x62] sm:$0xff]
    %v4068 = vld [vmem:[%s3868 + $0x72] sm:$0xff]
    %v4069 = vld [vmem:[%s3868 + $0xc2] sm:$0xff]
    %v4070 = vld [vmem:[%s3868 + $0xd2] sm:$0xff]
    %v4071 = vld [vmem:[%s3868 + $0xe2] sm:$0xff]
    %v4072 = vld [vmem:[%s3868 + $0xf2] sm:$0xff]
    %v4073 = vld [vmem:[%s3868 + $0x102] sm:$0xff]
    %v4074 = vld [vmem:[%s3868 + $0x112] sm:$0xff]
    %v4075 = vld [vmem:[%s3868 + $0x122] sm:$0xff]
    %v4076 = vld [vmem:[%s3868 + $0x132] sm:$0xff]
    %4093 = vrot.lane.b32.xlu0 %v4061, 96
    %v4094 = vpop.permute.xlu0 %4093
    %4095 = vrot.lane.b32.xlu0 %v4062, 96
    %v4096 = vpop.permute.xlu0 %4095
    %4097 = vrot.lane.b32.xlu0 %v4063, 96
    %v4098 = vpop.permute.xlu0 %4097
    %4099 = vrot.lane.b32.xlu0 %v4064, 96
    %v4100 = vpop.permute.xlu0 %4099
    %4101 = vrot.lane.b32.xlu0 %v4065, 96
    %v4102 = vpop.permute.xlu0 %4101
    %4103 = vrot.lane.b32.xlu0 %v4066, 96
    %v4104 = vpop.permute.xlu0 %4103
    %4105 = vrot.lane.b32.xlu0 %v4067, 96
    %v4106 = vpop.permute.xlu0 %4105
    %4107 = vrot.lane.b32.xlu0 %v4068, 96
    %v4108 = vpop.permute.xlu0 %4107
    %4109 = vrot.lane.b32.xlu0 %v4069, 96
    %v4110 = vpop.permute.xlu0 %4109
    %4111 = vrot.lane.b32.xlu0 %v4070, 96
    %v4112 = vpop.permute.xlu0 %4111
    %4113 = vrot.lane.b32.xlu0 %v4071, 96
    %v4114 = vpop.permute.xlu0 %4113
    %4115 = vrot.lane.b32.xlu0 %v4072, 96
    %v4116 = vpop.permute.xlu0 %4115
    %4117 = vrot.lane.b32.xlu0 %v4073, 96
    %v4118 = vpop.permute.xlu0 %4117
    %4119 = vrot.lane.b32.xlu0 %v4074, 96
    %v4120 = vpop.permute.xlu0 %4119
    %4121 = vrot.lane.b32.xlu0 %v4075, 96
    %v4122 = vpop.permute.xlu0 %4121
    %4123 = vrot.lane.b32.xlu0 %v4076, 96
    %v4124 = vpop.permute.xlu0 %4123
    %4141 = vst.msk [vmem:[#allocation4 + $0x10] sm:$0xff] %vm2728, %v4094
    %4142 = vst.msk [vmem:[#allocation4 + $0x30] sm:$0xff] %vm2728, %v4096
    %4143 = vst.msk [vmem:[#allocation4 + $0x50] sm:$0xff] %vm2728, %v4098
    %4144 = vst.msk [vmem:[#allocation4 + $0x70] sm:$0xff] %vm2728, %v4100
    %4145 = vst.msk [vmem:[#allocation4 + $0x90] sm:$0xff] %vm2728, %v4102
    %4146 = vst.msk [vmem:[#allocation4 + $0xb0] sm:$0xff] %vm2728, %v4104
    %4147 = vst.msk [vmem:[#allocation4 + $0xd0] sm:$0xff] %vm2728, %v4106
    %4148 = vst.msk [vmem:[#allocation4 + $0xf0] sm:$0xff] %vm2728, %v4108
    %4149 = vst.msk [vmem:[#allocation4 + $0x110] sm:$0xff] %vm2728, %v4110
    %4150 = vst.msk [vmem:[#allocation4 + $0x130] sm:$0xff] %vm2728, %v4112
    %4151 = vst.msk [vmem:[#allocation4 + $0x150] sm:$0xff] %vm2728, %v4114
    %4152 = vst.msk [vmem:[#allocation4 + $0x170] sm:$0xff] %vm2728, %v4116
    %4153 = vst.msk [vmem:[#allocation4 + $0x190] sm:$0xff] %vm2728, %v4118
    %4154 = vst.msk [vmem:[#allocation4 + $0x1b0] sm:$0xff] %vm2728, %v4120
    %4155 = vst.msk [vmem:[#allocation4 + $0x1d0] sm:$0xff] %vm2728, %v4122
    %4156 = vst.msk [vmem:[#allocation4 + $0x1f0] sm:$0xff] %vm2728, %v4124
    %v4157 = vld [vmem:[%s3868 + $0x3] sm:$0xff]
    %v4158 = vld [vmem:[%s3868 + $0x13] sm:$0xff]
    %v4159 = vld [vmem:[%s3868 + $0x23] sm:$0xff]
    %v4160 = vld [vmem:[%s3868 + $0x33] sm:$0xff]
    %v4161 = vld [vmem:[%s3868 + $0x43] sm:$0xff]
    %v4162 = vld [vmem:[%s3868 + $0x53] sm:$0xff]
    %v4163 = vld [vmem:[%s3868 + $0x63] sm:$0xff]
    %v4164 = vld [vmem:[%s3868 + $0x73] sm:$0xff]
    %v4165 = vld [vmem:[%s3868 + $0xc3] sm:$0xff]
    %v4166 = vld [vmem:[%s3868 + $0xd3] sm:$0xff]
    %v4167 = vld [vmem:[%s3868 + $0xe3] sm:$0xff]
    %v4168 = vld [vmem:[%s3868 + $0xf3] sm:$0xff]
    %v4169 = vld [vmem:[%s3868 + $0x103] sm:$0xff]
    %v4170 = vld [vmem:[%s3868 + $0x113] sm:$0xff]
    %v4171 = vld [vmem:[%s3868 + $0x123] sm:$0xff]
    %v4172 = vld [vmem:[%s3868 + $0x133] sm:$0xff]
    %4189 = vrot.lane.b32.xlu0 %v4157, 112
    %v4190 = vpop.permute.xlu0 %4189
    %4191 = vrot.lane.b32.xlu0 %v4158, 112
    %v4192 = vpop.permute.xlu0 %4191
    %4193 = vrot.lane.b32.xlu0 %v4159, 112
    %v4194 = vpop.permute.xlu0 %4193
    %4195 = vrot.lane.b32.xlu0 %v4160, 112
    %v4196 = vpop.permute.xlu0 %4195
    %4197 = vrot.lane.b32.xlu0 %v4161, 112
    %v4198 = vpop.permute.xlu0 %4197
    %4199 = vrot.lane.b32.xlu0 %v4162, 112
    %v4200 = vpop.permute.xlu0 %4199
    %4201 = vrot.lane.b32.xlu0 %v4163, 112
    %v4202 = vpop.permute.xlu0 %4201
    %4203 = vrot.lane.b32.xlu0 %v4164, 112
    %v4204 = vpop.permute.xlu0 %4203
    %4205 = vrot.lane.b32.xlu0 %v4165, 112
    %v4206 = vpop.permute.xlu0 %4205
    %4207 = vrot.lane.b32.xlu0 %v4166, 112
    %v4208 = vpop.permute.xlu0 %4207
    %4209 = vrot.lane.b32.xlu0 %v4167, 112
    %v4210 = vpop.permute.xlu0 %4209
    %4211 = vrot.lane.b32.xlu0 %v4168, 112
    %v4212 = vpop.permute.xlu0 %4211
    %4213 = vrot.lane.b32.xlu0 %v4169, 112
    %v4214 = vpop.permute.xlu0 %4213
    %4215 = vrot.lane.b32.xlu0 %v4170, 112
    %v4216 = vpop.permute.xlu0 %4215
    %4217 = vrot.lane.b32.xlu0 %v4171, 112
    %v4218 = vpop.permute.xlu0 %4217
    %4219 = vrot.lane.b32.xlu0 %v4172, 112
    %v4220 = vpop.permute.xlu0 %4219
    %4237 = vst.msk [vmem:[#allocation4 + $0x10] sm:$0xff] %vm2825, %v4190
    %4238 = vst.msk [vmem:[#allocation4 + $0x30] sm:$0xff] %vm2825, %v4192
    %4239 = vst.msk [vmem:[#allocation4 + $0x50] sm:$0xff] %vm2825, %v4194
    %4240 = vst.msk [vmem:[#allocation4 + $0x70] sm:$0xff] %vm2825, %v4196
    %4241 = vst.msk [vmem:[#allocation4 + $0x90] sm:$0xff] %vm2825, %v4198
    %4242 = vst.msk [vmem:[#allocation4 + $0xb0] sm:$0xff] %vm2825, %v4200
    %4243 = vst.msk [vmem:[#allocation4 + $0xd0] sm:$0xff] %vm2825, %v4202
    %4244 = vst.msk [vmem:[#allocation4 + $0xf0] sm:$0xff] %vm2825, %v4204
    %4245 = vst.msk [vmem:[#allocation4 + $0x110] sm:$0xff] %vm2825, %v4206
    %4246 = vst.msk [vmem:[#allocation4 + $0x130] sm:$0xff] %vm2825, %v4208
    %4247 = vst.msk [vmem:[#allocation4 + $0x150] sm:$0xff] %vm2825, %v4210
    %4248 = vst.msk [vmem:[#allocation4 + $0x170] sm:$0xff] %vm2825, %v4212
    %4249 = vst.msk [vmem:[#allocation4 + $0x190] sm:$0xff] %vm2825, %v4214
    %4250 = vst.msk [vmem:[#allocation4 + $0x1b0] sm:$0xff] %vm2825, %v4216
    %4251 = vst.msk [vmem:[#allocation4 + $0x1d0] sm:$0xff] %vm2825, %v4218
    %4252 = vst.msk [vmem:[#allocation4 + $0x1f0] sm:$0xff] %vm2825, %v4220
    %v4253 = vld [vmem:[%s3868 + $0x4] sm:$0xff]
    %v4254 = vld [vmem:[%s3868 + $0x14] sm:$0xff]
    %v4255 = vld [vmem:[%s3868 + $0x24] sm:$0xff]
    %v4256 = vld [vmem:[%s3868 + $0x34] sm:$0xff]
    %v4257 = vld [vmem:[%s3868 + $0x44] sm:$0xff]
    %v4258 = vld [vmem:[%s3868 + $0x54] sm:$0xff]
    %v4259 = vld [vmem:[%s3868 + $0x64] sm:$0xff]
    %v4260 = vld [vmem:[%s3868 + $0x74] sm:$0xff]
    %v4261 = vld [vmem:[%s3868 + $0xc4] sm:$0xff]
    %v4262 = vld [vmem:[%s3868 + $0xd4] sm:$0xff]
    %v4263 = vld [vmem:[%s3868 + $0xe4] sm:$0xff]
    %v4264 = vld [vmem:[%s3868 + $0xf4] sm:$0xff]
    %v4265 = vld [vmem:[%s3868 + $0x104] sm:$0xff]
    %v4266 = vld [vmem:[%s3868 + $0x114] sm:$0xff]
    %v4267 = vld [vmem:[%s3868 + $0x124] sm:$0xff]
    %v4268 = vld [vmem:[%s3868 + $0x134] sm:$0xff]
    %4269 = vst.msk [vmem:[#allocation4 + $0x18] sm:$0xff] %vm391, %v4253
    %4270 = vst.msk [vmem:[#allocation4 + $0x38] sm:$0xff] %vm391, %v4254
    %4271 = vst.msk [vmem:[#allocation4 + $0x58] sm:$0xff] %vm391, %v4255
    %4272 = vst.msk [vmem:[#allocation4 + $0x78] sm:$0xff] %vm391, %v4256
    %4273 = vst.msk [vmem:[#allocation4 + $0x98] sm:$0xff] %vm391, %v4257
    %4274 = vst.msk [vmem:[#allocation4 + $0xb8] sm:$0xff] %vm391, %v4258
    %4275 = vst.msk [vmem:[#allocation4 + $0xd8] sm:$0xff] %vm391, %v4259
    %4276 = vst.msk [vmem:[#allocation4 + $0xf8] sm:$0xff] %vm391, %v4260
    %4277 = vst.msk [vmem:[#allocation4 + $0x118] sm:$0xff] %vm391, %v4261
    %4278 = vst.msk [vmem:[#allocation4 + $0x138] sm:$0xff] %vm391, %v4262
    %4279 = vst.msk [vmem:[#allocation4 + $0x158] sm:$0xff] %vm391, %v4263
    %4280 = vst.msk [vmem:[#allocation4 + $0x178] sm:$0xff] %vm391, %v4264
    %4281 = vst.msk [vmem:[#allocation4 + $0x198] sm:$0xff] %vm391, %v4265
    %4282 = vst.msk [vmem:[#allocation4 + $0x1b8] sm:$0xff] %vm391, %v4266
    %4283 = vst.msk [vmem:[#allocation4 + $0x1d8] sm:$0xff] %vm391, %v4267
    %4284 = vst.msk [vmem:[#allocation4 + $0x1f8] sm:$0xff] %vm391, %v4268
    %v4285 = vld [vmem:[#allocation4] sm:$0xff]
    %v4286 = vld [vmem:[#allocation4 + $0x8] sm:$0xff]
    %v4287 = vld [vmem:[#allocation4 + $0x10] sm:$0xff]
    %v4288 = vld [vmem:[#allocation4 + $0x18] sm:$0xff]
    %v4289 = vld [vmem:[#allocation4 + $0x20] sm:$0xff]
    %v4290 = vld [vmem:[#allocation4 + $0x28] sm:$0xff]
    %v4291 = vld [vmem:[#allocation4 + $0x30] sm:$0xff]
    %v4292 = vld [vmem:[#allocation4 + $0x38] sm:$0xff]
    %v4293 = vld [vmem:[#allocation4 + $0x40] sm:$0xff]
    %v4294 = vld [vmem:[#allocation4 + $0x48] sm:$0xff]
    %v4295 = vld [vmem:[#allocation4 + $0x50] sm:$0xff]
    %v4296 = vld [vmem:[#allocation4 + $0x58] sm:$0xff]
    %v4297 = vld [vmem:[#allocation4 + $0x60] sm:$0xff]
    %v4298 = vld [vmem:[#allocation4 + $0x68] sm:$0xff]
    %v4299 = vld [vmem:[#allocation4 + $0x70] sm:$0xff]
    %v4300 = vld [vmem:[#allocation4 + $0x78] sm:$0xff]
    %v4301 = vld [vmem:[#allocation4 + $0x80] sm:$0xff]
    %v4302 = vld [vmem:[#allocation4 + $0x88] sm:$0xff]
    %v4303 = vld [vmem:[#allocation4 + $0x90] sm:$0xff]
    %v4304 = vld [vmem:[#allocation4 + $0x98] sm:$0xff]
    %v4305 = vld [vmem:[#allocation4 + $0xa0] sm:$0xff]
    %v4306 = vld [vmem:[#allocation4 + $0xa8] sm:$0xff]
    %v4307 = vld [vmem:[#allocation4 + $0xb0] sm:$0xff]
    %v4308 = vld [vmem:[#allocation4 + $0xb8] sm:$0xff]
    %v4309 = vld [vmem:[#allocation4 + $0xc0] sm:$0xff]
    %v4310 = vld [vmem:[#allocation4 + $0xc8] sm:$0xff]
    %v4311 = vld [vmem:[#allocation4 + $0xd0] sm:$0xff]
    %v4312 = vld [vmem:[#allocation4 + $0xd8] sm:$0xff]
    %v4313 = vld [vmem:[#allocation4 + $0xe0] sm:$0xff]
    %v4314 = vld [vmem:[#allocation4 + $0xe8] sm:$0xff]
    %v4315 = vld [vmem:[#allocation4 + $0xf0] sm:$0xff]
    %v4316 = vld [vmem:[#allocation4 + $0xf8] sm:$0xff]
    %v4317 = vld [vmem:[#allocation4 + $0x100] sm:$0xff]
    %v4318 = vld [vmem:[#allocation4 + $0x108] sm:$0xff]
    %v4319 = vld [vmem:[#allocation4 + $0x110] sm:$0xff]
    %v4320 = vld [vmem:[#allocation4 + $0x118] sm:$0xff]
    %v4321 = vld [vmem:[#allocation4 + $0x120] sm:$0xff]
    %v4322 = vld [vmem:[#allocation4 + $0x128] sm:$0xff]
    %v4323 = vld [vmem:[#allocation4 + $0x130] sm:$0xff]
    %v4324 = vld [vmem:[#allocation4 + $0x138] sm:$0xff]
    %v4325 = vld [vmem:[#allocation4 + $0x140] sm:$0xff]
    %v4326 = vld [vmem:[#allocation4 + $0x148] sm:$0xff]
    %v4327 = vld [vmem:[#allocation4 + $0x150] sm:$0xff]
    %v4328 = vld [vmem:[#allocation4 + $0x158] sm:$0xff]
    %v4329 = vld [vmem:[#allocation4 + $0x160] sm:$0xff]
    %v4330 = vld [vmem:[#allocation4 + $0x168] sm:$0xff]
    %v4331 = vld [vmem:[#allocation4 + $0x170] sm:$0xff]
    %v4332 = vld [vmem:[#allocation4 + $0x178] sm:$0xff]
    %v4333 = vld [vmem:[#allocation4 + $0x180] sm:$0xff]
    %v4334 = vld [vmem:[#allocation4 + $0x188] sm:$0xff]
    %v4335 = vld [vmem:[#allocation4 + $0x190] sm:$0xff]
    %v4336 = vld [vmem:[#allocation4 + $0x198] sm:$0xff]
    %v4337 = vld [vmem:[#allocation4 + $0x1a0] sm:$0xff]
    %v4338 = vld [vmem:[#allocation4 + $0x1a8] sm:$0xff]
    %v4339 = vld [vmem:[#allocation4 + $0x1b0] sm:$0xff]
    %v4340 = vld [vmem:[#allocation4 + $0x1b8] sm:$0xff]
    %v4341 = vld [vmem:[#allocation4 + $0x1c0] sm:$0xff]
    %v4342 = vld [vmem:[#allocation4 + $0x1c8] sm:$0xff]
    %v4343 = vld [vmem:[#allocation4 + $0x1d0] sm:$0xff]
    %v4344 = vld [vmem:[#allocation4 + $0x1d8] sm:$0xff]
    %v4345 = vld [vmem:[#allocation4 + $0x1e0] sm:$0xff]
    %v4346 = vld [vmem:[#allocation4 + $0x1e8] sm:$0xff]
    %v4347 = vld [vmem:[#allocation4 + $0x1f0] sm:$0xff]
    %v4348 = vld [vmem:[#allocation4 + $0x1f8] sm:$0xff]
    %v4349 = vld [vmem:[%s3] sm:$0xff]
    %v4350 = vld [vmem:[%s3 + $0x8] sm:$0xff]
    %v4351 = vld [vmem:[%s3 + $0x10] sm:$0xff]
    %v4352 = vld [vmem:[%s3 + $0x18] sm:$0xff]
    %v4353 = vld [vmem:[%s3 + $0x20] sm:$0xff]
    %v4354 = vld [vmem:[%s3 + $0x28] sm:$0xff]
    %v4355 = vld [vmem:[%s3 + $0x30] sm:$0xff]
    %v4356 = vld [vmem:[%s3 + $0x38] sm:$0xff]
    %v4357 = vld [vmem:[%s3 + $0x40] sm:$0xff]
    %v4358 = vld [vmem:[%s3 + $0x48] sm:$0xff]
    %v4359 = vld [vmem:[%s3 + $0x50] sm:$0xff]
    %v4360 = vld [vmem:[%s3 + $0x58] sm:$0xff]
    %v4361 = vld [vmem:[%s3 + $0x60] sm:$0xff]
    %v4362 = vld [vmem:[%s3 + $0x68] sm:$0xff]
    %v4363 = vld [vmem:[%s3 + $0x70] sm:$0xff]
    %v4364 = vld [vmem:[%s3 + $0x78] sm:$0xff]
    %v4365 = vld [vmem:[%s3 + $0x80] sm:$0xff]
    %v4366 = vld [vmem:[%s3 + $0x88] sm:$0xff]
    %v4367 = vld [vmem:[%s3 + $0x90] sm:$0xff]
    %v4368 = vld [vmem:[%s3 + $0x98] sm:$0xff]
    %v4369 = vld [vmem:[%s3 + $0xa0] sm:$0xff]
    %v4370 = vld [vmem:[%s3 + $0xa8] sm:$0xff]
    %v4371 = vld [vmem:[%s3 + $0xb0] sm:$0xff]
    %v4372 = vld [vmem:[%s3 + $0xb8] sm:$0xff]
    %v4373 = vld [vmem:[%s3 + $0xc0] sm:$0xff]
    %v4374 = vld [vmem:[%s3 + $0xc8] sm:$0xff]
    %v4375 = vld [vmem:[%s3 + $0xd0] sm:$0xff]
    %v4376 = vld [vmem:[%s3 + $0xd8] sm:$0xff]
    %v4377 = vld [vmem:[%s3 + $0xe0] sm:$0xff]
    %v4378 = vld [vmem:[%s3 + $0xe8] sm:$0xff]
    %v4379 = vld [vmem:[%s3 + $0xf0] sm:$0xff]
    %v4380 = vld [vmem:[%s3 + $0xf8] sm:$0xff]
    %v4381 = vld [vmem:[%s3 + $0x100] sm:$0xff]
    %v4382 = vld [vmem:[%s3 + $0x108] sm:$0xff]
    %v4383 = vld [vmem:[%s3 + $0x110] sm:$0xff]
    %v4384 = vld [vmem:[%s3 + $0x118] sm:$0xff]
    %v4385 = vld [vmem:[%s3 + $0x120] sm:$0xff]
    %v4386 = vld [vmem:[%s3 + $0x128] sm:$0xff]
    %v4387 = vld [vmem:[%s3 + $0x130] sm:$0xff]
    %v4388 = vld [vmem:[%s3 + $0x138] sm:$0xff]
    %v4389 = vld [vmem:[%s3 + $0x140] sm:$0xff]
    %v4390 = vld [vmem:[%s3 + $0x148] sm:$0xff]
    %v4391 = vld [vmem:[%s3 + $0x150] sm:$0xff]
    %v4392 = vld [vmem:[%s3 + $0x158] sm:$0xff]
    %v4393 = vld [vmem:[%s3 + $0x160] sm:$0xff]
    %v4394 = vld [vmem:[%s3 + $0x168] sm:$0xff]
    %v4395 = vld [vmem:[%s3 + $0x170] sm:$0xff]
    %v4396 = vld [vmem:[%s3 + $0x178] sm:$0xff]
    %v4397 = vld [vmem:[%s3 + $0x180] sm:$0xff]
    %v4398 = vld [vmem:[%s3 + $0x188] sm:$0xff]
    %v4399 = vld [vmem:[%s4] sm:$0x1]
    %v4401 = vperm.slane %v4399, 0
    %v4404 = vsel %vm391, %v4288, 0
    %v4407 = vsel %vm391, %v4292, 0
    %v4410 = vsel %vm391, %v4296, 0
    %v4413 = vsel %vm391, %v4300, 0
    %v4416 = vsel %vm391, %v4304, 0
    %v4419 = vsel %vm391, %v4308, 0
    %v4422 = vsel %vm391, %v4312, 0
    %v4425 = vsel %vm391, %v4316, 0
    %v4428 = vsel %vm391, %v4320, 0
    %v4431 = vsel %vm391, %v4324, 0
    %v4434 = vsel %vm391, %v4328, 0
    %v4437 = vsel %vm391, %v4332, 0
    %v4440 = vsel %vm391, %v4336, 0
    %v4443 = vsel %vm391, %v4340, 0
    %v4446 = vsel %vm391, %v4344, 0
    %v4449 = vsel %vm391, %v4348, 0
    %4451 = vmatpush.msra.mxu0 %v4364
    %4452 = vmatpush.msra.mxu0 %v4363
    %4453 = vmatpush.msra.mxu0 %v4362
    %4454 = vmatpush.msra.mxu0 %v4361
    %4455 = vmatpush.msra.mxu0 %v4360
    %4456 = vmatpush.msra.mxu0 %v4359
    %4457 = vmatpush.msra.mxu0 %v4358
    %4458 = vmatpush.msra.mxu0 %v4357
    %4459 = vmatpush.msra.mxu0 %v4356
    %4460 = vmatpush.msra.mxu0 %v4355
    %4461 = vmatpush.msra.mxu0 %v4354
    %4462 = vmatpush.msra.mxu0 %v4353
    %4463 = vmatpush.msra.mxu0 %v4352
    %4464 = vmatpush.msra.mxu0 %v4351
    %4465 = vmatpush.msra.mxu0 %v4350
    %4466 = vmatpush.msra.mxu0 %v4349
    %4467 = vmatmul.f32.gmra.mxu0 %v4285
    %v4468 = vpop.f32.mrf.mxu0
    %v4469 = vadd.f32 %v4401, %v4468
    %4470 = vmatmul.f32.gmra.mxu0 %v4289
    %v4471 = vpop.f32.mrf.mxu0
    %v4472 = vadd.f32 %v4401, %v4471
    %4473 = vmatmul.f32.gmra.mxu0 %v4293
    %v4474 = vpop.f32.mrf.mxu0
    %v4475 = vadd.f32 %v4401, %v4474
    %4476 = vmatmul.f32.gmra.mxu0 %v4297
    %v4477 = vpop.f32.mrf.mxu0
    %v4478 = vadd.f32 %v4401, %v4477
    %4479 = vmatmul.f32.gmra.mxu0 %v4301
    %v4480 = vpop.f32.mrf.mxu0
    %v4481 = vadd.f32 %v4401, %v4480
    %4482 = vmatmul.f32.gmra.mxu0 %v4305
    %v4483 = vpop.f32.mrf.mxu0
    %v4484 = vadd.f32 %v4401, %v4483
    %4485 = vmatmul.f32.gmra.mxu0 %v4309
    %v4486 = vpop.f32.mrf.mxu0
    %v4487 = vadd.f32 %v4401, %v4486
    %4488 = vmatmul.f32.gmra.mxu0 %v4313
    %v4489 = vpop.f32.mrf.mxu0
    %v4490 = vadd.f32 %v4401, %v4489
    %4491 = vmatmul.f32.gmra.mxu0 %v4317
    %v4492 = vpop.f32.mrf.mxu0
    %v4493 = vadd.f32 %v4401, %v4492
    %4494 = vmatmul.f32.gmra.mxu0 %v4321
    %v4495 = vpop.f32.mrf.mxu0
    %v4496 = vadd.f32 %v4401, %v4495
    %4497 = vmatmul.f32.gmra.mxu0 %v4325
    %v4498 = vpop.f32.mrf.mxu0
    %v4499 = vadd.f32 %v4401, %v4498
    %4500 = vmatmul.f32.gmra.mxu0 %v4329
    %v4501 = vpop.f32.mrf.mxu0
    %v4502 = vadd.f32 %v4401, %v4501
    %4503 = vmatmul.f32.gmra.mxu0 %v4333
    %v4504 = vpop.f32.mrf.mxu0
    %v4505 = vadd.f32 %v4401, %v4504
    %4506 = vmatmul.f32.gmra.mxu0 %v4337
    %v4507 = vpop.f32.mrf.mxu0
    %v4508 = vadd.f32 %v4401, %v4507
    %4509 = vmatmul.f32.gmra.mxu0 %v4341
    %v4510 = vpop.f32.mrf.mxu0
    %v4511 = vadd.f32 %v4401, %v4510
    %4512 = vmatmul.f32.gmra.mxu0 %v4345
    %v4513 = vpop.f32.mrf.mxu0
    %v4514 = vadd.f32 %v4401, %v4513
    %4515 = vdwg.mxu0
    %4516 = vmatpush.msra.mxu0 %v4380
    %4517 = vmatpush.msra.mxu0 %v4379
    %4518 = vmatpush.msra.mxu0 %v4378
    %4519 = vmatpush.msra.mxu0 %v4377
    %4520 = vmatpush.msra.mxu0 %v4376
    %4521 = vmatpush.msra.mxu0 %v4375
    %4522 = vmatpush.msra.mxu0 %v4374
    %4523 = vmatpush.msra.mxu0 %v4373
    %4524 = vmatpush.msra.mxu0 %v4372
    %4525 = vmatpush.msra.mxu0 %v4371
    %4526 = vmatpush.msra.mxu0 %v4370
    %4527 = vmatpush.msra.mxu0 %v4369
    %4528 = vmatpush.msra.mxu0 %v4368
    %4529 = vmatpush.msra.mxu0 %v4367
    %4530 = vmatpush.msra.mxu0 %v4366
    %4531 = vmatpush.msra.mxu0 %v4365
    %4532 = vmatmul.f32.gmra.mxu0 %v4286
    %v4533 = vpop.f32.mrf.mxu0
    %v4534 = vadd.f32 %v4469, %v4533
    %4535 = vmatmul.f32.gmra.mxu0 %v4290
    %v4536 = vpop.f32.mrf.mxu0
    %v4537 = vadd.f32 %v4472, %v4536
    %4538 = vmatmul.f32.gmra.mxu0 %v4294
    %v4539 = vpop.f32.mrf.mxu0
    %v4540 = vadd.f32 %v4475, %v4539
    %4541 = vmatmul.f32.gmra.mxu0 %v4298
    %v4542 = vpop.f32.mrf.mxu0
    %v4543 = vadd.f32 %v4478, %v4542
    %4544 = vmatmul.f32.gmra.mxu0 %v4302
    %v4545 = vpop.f32.mrf.mxu0
    %v4546 = vadd.f32 %v4481, %v4545
    %4547 = vmatmul.f32.gmra.mxu0 %v4306
    %v4548 = vpop.f32.mrf.mxu0
    %v4549 = vadd.f32 %v4484, %v4548
    %4550 = vmatmul.f32.gmra.mxu0 %v4310
    %v4551 = vpop.f32.mrf.mxu0
    %v4552 = vadd.f32 %v4487, %v4551
    %4553 = vmatmul.f32.gmra.mxu0 %v4314
    %v4554 = vpop.f32.mrf.mxu0
    %v4555 = vadd.f32 %v4490, %v4554
    %4556 = vmatmul.f32.gmra.mxu0 %v4318
    %v4557 = vpop.f32.mrf.mxu0
    %v4558 = vadd.f32 %v4493, %v4557
    %4559 = vmatmul.f32.gmra.mxu0 %v4322
    %v4560 = vpop.f32.mrf.mxu0
    %v4561 = vadd.f32 %v4496, %v4560
    %4562 = vmatmul.f32.gmra.mxu0 %v4326
    %v4563 = vpop.f32.mrf.mxu0
    %v4564 = vadd.f32 %v4499, %v4563
    %4565 = vmatmul.f32.gmra.mxu0 %v4330
    %v4566 = vpop.f32.mrf.mxu0
    %v4567 = vadd.f32 %v4502, %v4566
    %4568 = vmatmul.f32.gmra.mxu0 %v4334
    %v4569 = vpop.f32.mrf.mxu0
    %v4570 = vadd.f32 %v4505, %v4569
    %4571 = vmatmul.f32.gmra.mxu0 %v4338
    %v4572 = vpop.f32.mrf.mxu0
    %v4573 = vadd.f32 %v4508, %v4572
    %4574 = vmatmul.f32.gmra.mxu0 %v4342
    %v4575 = vpop.f32.mrf.mxu0
    %v4576 = vadd.f32 %v4511, %v4575
    %4577 = vmatmul.f32.gmra.mxu0 %v4346
    %v4578 = vpop.f32.mrf.mxu0
    %v4579 = vadd.f32 %v4514, %v4578
    %4580 = vdwg.mxu0
    %4581 = vmatpush.msra.mxu0 %v4396
    %4582 = vmatpush.msra.mxu0 %v4395
    %4583 = vmatpush.msra.mxu0 %v4394
    %4584 = vmatpush.msra.mxu0 %v4393
    %4585 = vmatpush.msra.mxu0 %v4392
    %4586 = vmatpush.msra.mxu0 %v4391
    %4587 = vmatpush.msra.mxu0 %v4390
    %4588 = vmatpush.msra.mxu0 %v4389
    %4589 = vmatpush.msra.mxu0 %v4388
    %4590 = vmatpush.msra.mxu0 %v4387
    %4591 = vmatpush.msra.mxu0 %v4386
    %4592 = vmatpush.msra.mxu0 %v4385
    %4593 = vmatpush.msra.mxu0 %v4384
    %4594 = vmatpush.msra.mxu0 %v4383
    %4595 = vmatpush.msra.mxu0 %v4382
    %4596 = vmatpush.msra.mxu0 %v4381
    %4597 = vmatmul.f32.gmra.mxu0 %v4287
    %v4598 = vpop.f32.mrf.mxu0
    %v4599 = vadd.f32 %v4534, %v4598
    %4600 = vmatmul.f32.gmra.mxu0 %v4291
    %v4601 = vpop.f32.mrf.mxu0
    %v4602 = vadd.f32 %v4537, %v4601
    %4603 = vmatmul.f32.gmra.mxu0 %v4295
    %v4604 = vpop.f32.mrf.mxu0
    %v4605 = vadd.f32 %v4540, %v4604
    %4606 = vmatmul.f32.gmra.mxu0 %v4299
    %v4607 = vpop.f32.mrf.mxu0
    %v4608 = vadd.f32 %v4543, %v4607
    %4609 = vmatmul.f32.gmra.mxu0 %v4303
    %v4610 = vpop.f32.mrf.mxu0
    %v4611 = vadd.f32 %v4546, %v4610
    %4612 = vmatmul.f32.gmra.mxu0 %v4307
    %v4613 = vpop.f32.mrf.mxu0
    %v4614 = vadd.f32 %v4549, %v4613
    %4615 = vmatmul.f32.gmra.mxu0 %v4311
    %v4616 = vpop.f32.mrf.mxu0
    %v4617 = vadd.f32 %v4552, %v4616
    %4618 = vmatmul.f32.gmra.mxu0 %v4315
    %v4619 = vpop.f32.mrf.mxu0
    %v4620 = vadd.f32 %v4555, %v4619
    %4621 = vmatmul.f32.gmra.mxu0 %v4319
    %v4622 = vpop.f32.mrf.mxu0
    %v4623 = vadd.f32 %v4558, %v4622
    %4624 = vmatmul.f32.gmra.mxu0 %v4323
    %v4625 = vpop.f32.mrf.mxu0
    %v4626 = vadd.f32 %v4561, %v4625
    %4627 = vmatmul.f32.gmra.mxu0 %v4327
    %v4628 = vpop.f32.mrf.mxu0
    %v4629 = vadd.f32 %v4564, %v4628
    %4630 = vmatmul.f32.gmra.mxu0 %v4331
    %v4631 = vpop.f32.mrf.mxu0
    %v4632 = vadd.f32 %v4567, %v4631
    %4633 = vmatmul.f32.gmra.mxu0 %v4335
    %v4634 = vpop.f32.mrf.mxu0
    %v4635 = vadd.f32 %v4570, %v4634
    %4636 = vmatmul.f32.gmra.mxu0 %v4339
    %v4637 = vpop.f32.mrf.mxu0
    %v4638 = vadd.f32 %v4573, %v4637
    %4639 = vmatmul.f32.gmra.mxu0 %v4343
    %v4640 = vpop.f32.mrf.mxu0
    %v4641 = vadd.f32 %v4576, %v4640
    %4642 = vmatmul.f32.gmra.mxu0 %v4347
    %v4643 = vpop.f32.mrf.mxu0
    %v4644 = vadd.f32 %v4579, %v4643
    %4645 = vdwg.mxu0
    %4646 = vmatpush.msra.mxu0 0.0
    %4647 = vmatpush.msra.mxu0 0.0
    %4648 = vmatpush.msra.mxu0 0.0
    %4649 = vmatpush.msra.mxu0 0.0
    %4650 = vmatpush.msra.mxu0 0.0
    %4651 = vmatpush.msra.mxu0 0.0
    %4652 = vmatpush.msra.mxu0 0.0
    %4653 = vmatpush.msra.mxu0 0.0
    %4654 = vmatpush.msra.mxu0 0.0
    %4655 = vmatpush.msra.mxu0 0.0
    %4656 = vmatpush.msra.mxu0 0.0
    %4657 = vmatpush.msra.mxu0 0.0
    %4658 = vmatpush.msra.mxu0 0.0
    %4659 = vmatpush.msra.mxu0 0.0
    %4660 = vmatpush.msra.mxu0 %v4398
    %4661 = vmatpush.msra.mxu0 %v4397
    %4662 = vmatmul.f32.gmra.mxu0 %v4404
    %v4663 = vpop.f32.mrf.mxu0
    %v4664 = vadd.f32 %v4599, %v4663
    %4665 = vmatmul.f32.gmra.mxu0 %v4407
    %v4666 = vpop.f32.mrf.mxu0
    %v4667 = vadd.f32 %v4602, %v4666
    %4668 = vmatmul.f32.gmra.mxu0 %v4410
    %v4669 = vpop.f32.mrf.mxu0
    %v4670 = vadd.f32 %v4605, %v4669
    %4671 = vmatmul.f32.gmra.mxu0 %v4413
    %v4672 = vpop.f32.mrf.mxu0
    %v4673 = vadd.f32 %v4608, %v4672
    %4674 = vmatmul.f32.gmra.mxu0 %v4416
    %v4675 = vpop.f32.mrf.mxu0
    %v4676 = vadd.f32 %v4611, %v4675
    %4677 = vmatmul.f32.gmra.mxu0 %v4419
    %v4678 = vpop.f32.mrf.mxu0
    %v4679 = vadd.f32 %v4614, %v4678
    %4680 = vmatmul.f32.gmra.mxu0 %v4422
    %v4681 = vpop.f32.mrf.mxu0
    %v4682 = vadd.f32 %v4617, %v4681
    %4683 = vmatmul.f32.gmra.mxu0 %v4425
    %v4684 = vpop.f32.mrf.mxu0
    %v4685 = vadd.f32 %v4620, %v4684
    %4686 = vmatmul.f32.gmra.mxu0 %v4428
    %v4687 = vpop.f32.mrf.mxu0
    %v4688 = vadd.f32 %v4623, %v4687
    %4689 = vmatmul.f32.gmra.mxu0 %v4431
    %v4690 = vpop.f32.mrf.mxu0
    %v4691 = vadd.f32 %v4626, %v4690
    %4692 = vmatmul.f32.gmra.mxu0 %v4434
    %v4693 = vpop.f32.mrf.mxu0
    %v4694 = vadd.f32 %v4629, %v4693
    %4695 = vmatmul.f32.gmra.mxu0 %v4437
    %v4696 = vpop.f32.mrf.mxu0
    %v4697 = vadd.f32 %v4632, %v4696
    %4698 = vmatmul.f32.gmra.mxu0 %v4440
    %v4699 = vpop.f32.mrf.mxu0
    %v4700 = vadd.f32 %v4635, %v4699
    %4701 = vmatmul.f32.gmra.mxu0 %v4443
    %v4702 = vpop.f32.mrf.mxu0
    %v4703 = vadd.f32 %v4638, %v4702
    %4704 = vmatmul.f32.gmra.mxu0 %v4446
    %v4705 = vpop.f32.mrf.mxu0
    %v4706 = vadd.f32 %v4641, %v4705
    %4707 = vmatmul.f32.gmra.mxu0 %v4449
    %v4708 = vpop.f32.mrf.mxu0
    %v4709 = vadd.f32 %v4644, %v4708
    %4710 = vdwg.mxu0
    %v4711 = vmax.f32 %v4664, 0.0
    %v4712 = vmax.f32 %v4667, 0.0
    %v4713 = vmax.f32 %v4670, 0.0
    %v4714 = vmax.f32 %v4673, 0.0
    %v4715 = vmax.f32 %v4676, 0.0
    %v4716 = vmax.f32 %v4679, 0.0
    %v4717 = vmax.f32 %v4682, 0.0
    %v4718 = vmax.f32 %v4685, 0.0
    %v4719 = vmax.f32 %v4688, 0.0
    %v4720 = vmax.f32 %v4691, 0.0
    %v4721 = vmax.f32 %v4694, 0.0
    %v4722 = vmax.f32 %v4697, 0.0
    %v4723 = vmax.f32 %v4700, 0.0
    %v4724 = vmax.f32 %v4703, 0.0
    %v4725 = vmax.f32 %v4706, 0.0
    %v4726 = vmax.f32 %v4709, 0.0
    %v4729 = vrot.slane %v4711, 1
    %v4730 = vrot.slane %v4719, 1
    %v4733 = vmax.f32 %v4711, %v4729
    %v4734 = vmax.f32 %v4719, %v4730
    %v4737 = vrot.slane %v4712, 1
    %v4738 = vrot.slane %v4720, 1
    %v4741 = vmax.f32 %v4712, %v4737
    %v4742 = vmax.f32 %v4720, %v4738
    %v4743 = vmax.f32 %v4733, %v4741
    %v4744 = vmax.f32 %v4734, %v4742
    %vm4747 = vcmask 1044484
    %v4748 = vsel %vm4747, %v4743, %v4743
    %vm4749 = vcmask 1046534
    %v4750 = vsel %vm4749, %v4743, %v4748
    %v4751 = vrot.slane %v4744, 7
    %vm4752 = vcmask 1041409
    %v4753 = vsel %vm4752, %v4751, %v4750
    %vm4754 = vcmask 1043459
    %v4755 = vsel %vm4754, %v4751, %v4753
    %vm4756 = vcmask 1045509
    %v4757 = vsel %vm4756, %v4751, %v4755
    %vm4758 = vcmask 1047559
    %v4759 = vsel %vm4758, %v4751, %v4757
    %vm4761 = vcmask 254976
    %4762 = vst.msk [vmem:[#allocation5] sm:$0x3] %vm4761, %v4759
    %4763 = vst.sshfl [vmem:[#allocation1] sm:$0xff pattern:$0x73625140] %v4743
    %s4764 = scalar_lea.vmem [#allocation1], 1
    %v4765 = vld [vmem:[%s4764] ss:$4 sm:$0xff]
    %4766 = vst.sshfl [vmem:[#allocation1 + $0x20] sm:$0xff pattern:$0x73625140] %v4744
    %s4767 = scalar_lea.vmem [#allocation1], 33
    %v4768 = vld [vmem:[%s4767] ss:$4 sm:$0xff]
    %v4769 = vsel %vm4747, %v4765, %v4765
    %v4770 = vsel %vm4749, %v4765, %v4769
    %v4771 = vrot.slane %v4768, 7
    %v4772 = vsel %vm4752, %v4771, %v4770
    %v4773 = vsel %vm4754, %v4771, %v4772
    %v4774 = vsel %vm4756, %v4771, %v4773
    %v4775 = vsel %vm4758, %v4771, %v4774
    %4776 = vrot.lane.b32.xlu0 %v4775, 32
    %v4777 = vpop.permute.xlu0 %4776
    %vm4779 = vcmask 517376
    %4780 = vst.msk [vmem:[#allocation5] sm:$0x3] %vm4779, %v4777
    %4781 = vst.sshfl [vmem:[#allocation1] sm:$0xff pattern:$0x73625140] %v4743
    %s4782 = scalar_lea.vmem [#allocation1], 2
    %v4783 = vld [vmem:[%s4782] ss:$4 sm:$0xff]
    %4784 = vst.sshfl [vmem:[#allocation1 + $0x20] sm:$0xff pattern:$0x73625140] %v4744
    %s4785 = scalar_lea.vmem [#allocation1], 34
    %v4786 = vld [vmem:[%s4785] ss:$4 sm:$0xff]
    %v4787 = vsel %vm4747, %v4783, %v4783
    %v4788 = vsel %vm4749, %v4783, %v4787
    %v4789 = vrot.slane %v4786, 7
    %v4790 = vsel %vm4752, %v4789, %v4788
    %v4791 = vsel %vm4754, %v4789, %v4790
    %v4792 = vsel %vm4756, %v4789, %v4791
    %v4793 = vsel %vm4758, %v4789, %v4792
    %4794 = vrot.lane.b32.xlu0 %v4793, 64
    %v4795 = vpop.permute.xlu0 %4794
    %vm4797 = vcmask 779776
    %4798 = vst.msk [vmem:[#allocation5] sm:$0x3] %vm4797, %v4795
    %4799 = vst.sshfl [vmem:[#allocation1] sm:$0xff pattern:$0x73625140] %v4743
    %s4800 = scalar_lea.vmem [#allocation1], 3
    %v4801 = vld [vmem:[%s4800] ss:$4 sm:$0xff]
    %4802 = vst.sshfl [vmem:[#allocation1 + $0x20] sm:$0xff pattern:$0x73625140] %v4744
    %s4803 = scalar_lea.vmem [#allocation1], 35
    %v4804 = vld [vmem:[%s4803] ss:$4 sm:$0xff]
    %v4805 = vsel %vm4747, %v4801, %v4801
    %v4806 = vsel %vm4749, %v4801, %v4805
    %v4807 = vrot.slane %v4804, 7
    %v4808 = vsel %vm4752, %v4807, %v4806
    %v4809 = vsel %vm4754, %v4807, %v4808
    %v4810 = vsel %vm4756, %v4807, %v4809
    %v4811 = vsel %vm4758, %v4807, %v4810
    %4812 = vrot.lane.b32.xlu0 %v4811, 96
    %v4813 = vpop.permute.xlu0 %4812
    %vm4815 = vcmask 1042176
    %4816 = vst.msk [vmem:[#allocation5] sm:$0x3] %vm4815, %v4813
    %v4819 = vrot.slane %v4713, 1
    %v4820 = vrot.slane %v4721, 1
    %v4823 = vmax.f32 %v4713, %v4819
    %v4824 = vmax.f32 %v4721, %v4820
    %v4827 = vrot.slane %v4714, 1
    %v4828 = vrot.slane %v4722, 1
    %v4831 = vmax.f32 %v4714, %v4827
    %v4832 = vmax.f32 %v4722, %v4828
    %v4833 = vmax.f32 %v4823, %v4831
    %v4834 = vmax.f32 %v4824, %v4832
    %v4837 = vsel %vm4747, %v4833, %v4833
    %v4838 = vsel %vm4749, %v4833, %v4837
    %v4839 = vrot.slane %v4834, 7
    %v4840 = vsel %vm4752, %v4839, %v4838
    %v4841 = vsel %vm4754, %v4839, %v4840
    %v4842 = vsel %vm4756, %v4839, %v4841
    %v4843 = vsel %vm4758, %v4839, %v4842
    %4845 = vst.msk [vmem:[#allocation5 + $0x2] sm:$0x3] %vm4761, %v4843
    %4846 = vst.sshfl [vmem:[#allocation1] sm:$0xff pattern:$0x73625140] %v4833
    %s4847 = scalar_lea.vmem [#allocation1], 1
    %v4848 = vld [vmem:[%s4847] ss:$4 sm:$0xff]
    %4849 = vst.sshfl [vmem:[#allocation1 + $0x20] sm:$0xff pattern:$0x73625140] %v4834
    %s4850 = scalar_lea.vmem [#allocation1], 33
    %v4851 = vld [vmem:[%s4850] ss:$4 sm:$0xff]
    %v4852 = vsel %vm4747, %v4848, %v4848
    %v4853 = vsel %vm4749, %v4848, %v4852
    %v4854 = vrot.slane %v4851, 7
    %v4855 = vsel %vm4752, %v4854, %v4853
    %v4856 = vsel %vm4754, %v4854, %v4855
    %v4857 = vsel %vm4756, %v4854, %v4856
    %v4858 = vsel %vm4758, %v4854, %v4857
    %4859 = vrot.lane.b32.xlu0 %v4858, 32
    %v4860 = vpop.permute.xlu0 %4859
    %4862 = vst.msk [vmem:[#allocation5 + $0x2] sm:$0x3] %vm4779, %v4860
    %4863 = vst.sshfl [vmem:[#allocation1] sm:$0xff pattern:$0x73625140] %v4833
    %s4864 = scalar_lea.vmem [#allocation1], 2
    %v4865 = vld [vmem:[%s4864] ss:$4 sm:$0xff]
    %4866 = vst.sshfl [vmem:[#allocation1 + $0x20] sm:$0xff pattern:$0x73625140] %v4834
    %s4867 = scalar_lea.vmem [#allocation1], 34
    %v4868 = vld [vmem:[%s4867] ss:$4 sm:$0xff]
    %v4869 = vsel %vm4747, %v4865, %v4865
    %v4870 = vsel %vm4749, %v4865, %v4869
    %v4871 = vrot.slane %v4868, 7
    %v4872 = vsel %vm4752, %v4871, %v4870
    %v4873 = vsel %vm4754, %v4871, %v4872
    %v4874 = vsel %vm4756, %v4871, %v4873
    %v4875 = vsel %vm4758, %v4871, %v4874
    %4876 = vrot.lane.b32.xlu0 %v4875, 64
    %v4877 = vpop.permute.xlu0 %4876
    %4879 = vst.msk [vmem:[#allocation5 + $0x2] sm:$0x3] %vm4797, %v4877
    %4880 = vst.sshfl [vmem:[#allocation1] sm:$0xff pattern:$0x73625140] %v4833
    %s4881 = scalar_lea.vmem [#allocation1], 3
    %v4882 = vld [vmem:[%s4881] ss:$4 sm:$0xff]
    %4883 = vst.sshfl [vmem:[#allocation1 + $0x20] sm:$0xff pattern:$0x73625140] %v4834
    %s4884 = scalar_lea.vmem [#allocation1], 35
    %v4885 = vld [vmem:[%s4884] ss:$4 sm:$0xff]
    %v4886 = vsel %vm4747, %v4882, %v4882
    %v4887 = vsel %vm4749, %v4882, %v4886
    %v4888 = vrot.slane %v4885, 7
    %v4889 = vsel %vm4752, %v4888, %v4887
    %v4890 = vsel %vm4754, %v4888, %v4889
    %v4891 = vsel %vm4756, %v4888, %v4890
    %v4892 = vsel %vm4758, %v4888, %v4891
    %4893 = vrot.lane.b32.xlu0 %v4892, 96
    %v4894 = vpop.permute.xlu0 %4893
    %4896 = vst.msk [vmem:[#allocation5 + $0x2] sm:$0x3] %vm4815, %v4894
    %v4899 = vrot.slane %v4715, 1
    %v4900 = vrot.slane %v4723, 1
    %v4903 = vmax.f32 %v4715, %v4899
    %v4904 = vmax.f32 %v4723, %v4900
    %v4907 = vrot.slane %v4716, 1
    %v4908 = vrot.slane %v4724, 1
    %v4911 = vmax.f32 %v4716, %v4907
    %v4912 = vmax.f32 %v4724, %v4908
    %v4913 = vmax.f32 %v4903, %v4911
    %v4914 = vmax.f32 %v4904, %v4912
    %v4917 = vsel %vm4747, %v4913, %v4913
    %v4918 = vsel %vm4749, %v4913, %v4917
    %v4919 = vrot.slane %v4914, 7
    %v4920 = vsel %vm4752, %v4919, %v4918
    %v4921 = vsel %vm4754, %v4919, %v4920
    %v4922 = vsel %vm4756, %v4919, %v4921
    %v4923 = vsel %vm4758, %v4919, %v4922
    %4925 = vst.msk [vmem:[#allocation5 + $0x4] sm:$0x3] %vm4761, %v4923
    %4926 = vst.sshfl [vmem:[#allocation1] sm:$0xff pattern:$0x73625140] %v4913
    %s4927 = scalar_lea.vmem [#allocation1], 1
    %v4928 = vld [vmem:[%s4927] ss:$4 sm:$0xff]
    %4929 = vst.sshfl [vmem:[#allocation1 + $0x20] sm:$0xff pattern:$0x73625140] %v4914
    %s4930 = scalar_lea.vmem [#allocation1], 33
    %v4931 = vld [vmem:[%s4930] ss:$4 sm:$0xff]
    %v4932 = vsel %vm4747, %v4928, %v4928
    %v4933 = vsel %vm4749, %v4928, %v4932
    %v4934 = vrot.slane %v4931, 7
    %v4935 = vsel %vm4752, %v4934, %v4933
    %v4936 = vsel %vm4754, %v4934, %v4935
    %v4937 = vsel %vm4756, %v4934, %v4936
    %v4938 = vsel %vm4758, %v4934, %v4937
    %4939 = vrot.lane.b32.xlu0 %v4938, 32
    %v4940 = vpop.permute.xlu0 %4939
    %4942 = vst.msk [vmem:[#allocation5 + $0x4] sm:$0x3] %vm4779, %v4940
    %4943 = vst.sshfl [vmem:[#allocation1] sm:$0xff pattern:$0x73625140] %v4913
    %s4944 = scalar_lea.vmem [#allocation1], 2
    %v4945 = vld [vmem:[%s4944] ss:$4 sm:$0xff]
    %4946 = vst.sshfl [vmem:[#allocation1 + $0x20] sm:$0xff pattern:$0x73625140] %v4914
    %s4947 = scalar_lea.vmem [#allocation1], 34
    %v4948 = vld [vmem:[%s4947] ss:$4 sm:$0xff]
    %v4949 = vsel %vm4747, %v4945, %v4945
    %v4950 = vsel %vm4749, %v4945, %v4949
    %v4951 = vrot.slane %v4948, 7
    %v4952 = vsel %vm4752, %v4951, %v4950
    %v4953 = vsel %vm4754, %v4951, %v4952
    %v4954 = vsel %vm4756, %v4951, %v4953
    %v4955 = vsel %vm4758, %v4951, %v4954
    %4956 = vrot.lane.b32.xlu0 %v4955, 64
    %v4957 = vpop.permute.xlu0 %4956
    %4959 = vst.msk [vmem:[#allocation5 + $0x4] sm:$0x3] %vm4797, %v4957
    %4960 = vst.sshfl [vmem:[#allocation1] sm:$0xff pattern:$0x73625140] %v4913
    %s4961 = scalar_lea.vmem [#allocation1], 3
    %v4962 = vld [vmem:[%s4961] ss:$4 sm:$0xff]
    %4963 = vst.sshfl [vmem:[#allocation1 + $0x20] sm:$0xff pattern:$0x73625140] %v4914
    %s4964 = scalar_lea.vmem [#allocation1], 35
    %v4965 = vld [vmem:[%s4964] ss:$4 sm:$0xff]
    %v4966 = vsel %vm4747, %v4962, %v4962
    %v4967 = vsel %vm4749, %v4962, %v4966
    %v4968 = vrot.slane %v4965, 7
    %v4969 = vsel %vm4752, %v4968, %v4967
    %v4970 = vsel %vm4754, %v4968, %v4969
    %v4971 = vsel %vm4756, %v4968, %v4970
    %v4972 = vsel %vm4758, %v4968, %v4971
    %4973 = vrot.lane.b32.xlu0 %v4972, 96
    %v4974 = vpop.permute.xlu0 %4973
    %4976 = vst.msk [vmem:[#allocation5 + $0x4] sm:$0x3] %vm4815, %v4974
    %v4979 = vrot.slane %v4717, 1
    %v4980 = vrot.slane %v4725, 1
    %v4983 = vmax.f32 %v4717, %v4979
    %v4984 = vmax.f32 %v4725, %v4980
    %v4987 = vrot.slane %v4718, 1
    %v4988 = vrot.slane %v4726, 1
    %v4991 = vmax.f32 %v4718, %v4987
    %v4992 = vmax.f32 %v4726, %v4988
    %v4993 = vmax.f32 %v4983, %v4991
    %v4994 = vmax.f32 %v4984, %v4992
    %v4997 = vsel %vm4747, %v4993, %v4993
    %v4998 = vsel %vm4749, %v4993, %v4997
    %v4999 = vrot.slane %v4994, 7
    %v5000 = vsel %vm4752, %v4999, %v4998
    %v5001 = vsel %vm4754, %v4999, %v5000
    %v5002 = vsel %vm4756, %v4999, %v5001
    %v5003 = vsel %vm4758, %v4999, %v5002
    %5005 = vst.msk [vmem:[#allocation5 + $0x6] sm:$0x3] %vm4761, %v5003
    %5006 = vst.sshfl [vmem:[#allocation1] sm:$0xff pattern:$0x73625140] %v4993
    %s5007 = scalar_lea.vmem [#allocation1], 1
    %v5008 = vld [vmem:[%s5007] ss:$4 sm:$0xff]
    %5009 = vst.sshfl [vmem:[#allocation1 + $0x20] sm:$0xff pattern:$0x73625140] %v4994
    %s5010 = scalar_lea.vmem [#allocation1], 33
    %v5011 = vld [vmem:[%s5010] ss:$4 sm:$0xff]
    %v5012 = vsel %vm4747, %v5008, %v5008
    %v5013 = vsel %vm4749, %v5008, %v5012
    %v5014 = vrot.slane %v5011, 7
    %v5015 = vsel %vm4752, %v5014, %v5013
    %v5016 = vsel %vm4754, %v5014, %v5015
    %v5017 = vsel %vm4756, %v5014, %v5016
    %v5018 = vsel %vm4758, %v5014, %v5017
    %5019 = vrot.lane.b32.xlu0 %v5018, 32
    %v5020 = vpop.permute.xlu0 %5019
    %5022 = vst.msk [vmem:[#allocation5 + $0x6] sm:$0x3] %vm4779, %v5020
    %5023 = vst.sshfl [vmem:[#allocation1] sm:$0xff pattern:$0x73625140] %v4993
    %s5024 = scalar_lea.vmem [#allocation1], 2
    %v5025 = vld [vmem:[%s5024] ss:$4 sm:$0xff]
    %5026 = vst.sshfl [vmem:[#allocation1 + $0x20] sm:$0xff pattern:$0x73625140] %v4994
    %s5027 = scalar_lea.vmem [#allocation1], 34
    %v5028 = vld [vmem:[%s5027] ss:$4 sm:$0xff]
    %v5029 = vsel %vm4747, %v5025, %v5025
    %v5030 = vsel %vm4749, %v5025, %v5029
    %v5031 = vrot.slane %v5028, 7
    %v5032 = vsel %vm4752, %v5031, %v5030
    %v5033 = vsel %vm4754, %v5031, %v5032
    %v5034 = vsel %vm4756, %v5031, %v5033
    %v5035 = vsel %vm4758, %v5031, %v5034
    %5036 = vrot.lane.b32.xlu0 %v5035, 64
    %v5037 = vpop.permute.xlu0 %5036
    %5039 = vst.msk [vmem:[#allocation5 + $0x6] sm:$0x3] %vm4797, %v5037
    %5040 = vst.sshfl [vmem:[#allocation1] sm:$0xff pattern:$0x73625140] %v4993
    %s5041 = scalar_lea.vmem [#allocation1], 3
    %v5042 = vld [vmem:[%s5041] ss:$4 sm:$0xff]
    %5043 = vst.sshfl [vmem:[#allocation1 + $0x20] sm:$0xff pattern:$0x73625140] %v4994
    %s5044 = scalar_lea.vmem [#allocation1], 35
    %v5045 = vld [vmem:[%s5044] ss:$4 sm:$0xff]
    %v5046 = vsel %vm4747, %v5042, %v5042
    %v5047 = vsel %vm4749, %v5042, %v5046
    %v5048 = vrot.slane %v5045, 7
    %v5049 = vsel %vm4752, %v5048, %v5047
    %v5050 = vsel %vm4754, %v5048, %v5049
    %v5051 = vsel %vm4756, %v5048, %v5050
    %v5052 = vsel %vm4758, %v5048, %v5051
    %5053 = vrot.lane.b32.xlu0 %v5052, 96
    %v5054 = vpop.permute.xlu0 %5053
    %5056 = vst.msk [vmem:[#allocation5 + $0x6] sm:$0x3] %vm4815, %v5054
    %v5057 = vld [vmem:[#allocation5] sm:$0xff]
    %v5058 = vld [vmem:[%s5] sm:$0xff]
    %v5059 = vld [vmem:[%s5 + $0x8] sm:$0xff]
    %v5060 = vld [vmem:[%s5 + $0x10] sm:$0xff]
    %v5061 = vld [vmem:[%s5 + $0x18] sm:$0xff]
    %v5062 = vld [vmem:[%s5 + $0x20] sm:$0xff]
    %v5063 = vld [vmem:[%s5 + $0x28] sm:$0xff]
    %v5064 = vld [vmem:[%s5 + $0x30] sm:$0xff]
    %v5065 = vld [vmem:[%s5 + $0x38] sm:$0xff]
    %v5066 = vld [vmem:[%s5 + $0x40] sm:$0xff]
    %v5067 = vld [vmem:[%s5 + $0x48] sm:$0xff]
    %v5068 = vld [vmem:[%s5 + $0x50] sm:$0xff]
    %v5069 = vld [vmem:[%s5 + $0x58] sm:$0xff]
    %v5070 = vld [vmem:[%s5 + $0x60] sm:$0xff]
    %v5071 = vld [vmem:[%s5 + $0x68] sm:$0xff]
    %v5072 = vld [vmem:[%s5 + $0x70] sm:$0xff]
    %v5073 = vld [vmem:[%s5 + $0x78] sm:$0xff]
    %v5074 = vld [vmem:[%s5 + $0x80] sm:$0xff]
    %v5075 = vld [vmem:[%s5 + $0x88] sm:$0xff]
    %v5076 = vld [vmem:[%s5 + $0x90] sm:$0xff]
    %v5077 = vld [vmem:[%s5 + $0x98] sm:$0xff]
    %v5078 = vld [vmem:[%s5 + $0xa0] sm:$0xff]
    %v5079 = vld [vmem:[%s5 + $0xa8] sm:$0xff]
    %v5080 = vld [vmem:[%s5 + $0xb0] sm:$0xff]
    %v5081 = vld [vmem:[%s5 + $0xb8] sm:$0xff]
    %v5082 = vld [vmem:[%s5 + $0xc0] sm:$0xff]
    %v5083 = vld [vmem:[%s5 + $0xc8] sm:$0xff]
    %v5084 = vld [vmem:[%s5 + $0xd0] sm:$0xff]
    %v5085 = vld [vmem:[%s5 + $0xd8] sm:$0xff]
    %v5086 = vld [vmem:[%s5 + $0xe0] sm:$0xff]
    %v5087 = vld [vmem:[%s5 + $0xe8] sm:$0xff]
    %v5088 = vld [vmem:[%s5 + $0xf0] sm:$0xff]
    %v5089 = vld [vmem:[%s5 + $0xf8] sm:$0xff]
    %v5090 = vld [vmem:[%s5 + $0x100] sm:$0xff]
    %v5091 = vld [vmem:[%s5 + $0x108] sm:$0xff]
    %v5092 = vld [vmem:[%s5 + $0x110] sm:$0xff]
    %v5093 = vld [vmem:[%s5 + $0x118] sm:$0xff]
    %v5094 = vld [vmem:[%s5 + $0x120] sm:$0xff]
    %v5095 = vld [vmem:[%s5 + $0x128] sm:$0xff]
    %v5096 = vld [vmem:[%s5 + $0x130] sm:$0xff]
    %v5097 = vld [vmem:[%s5 + $0x138] sm:$0xff]
    %v5098 = vld [vmem:[%s5 + $0x140] sm:$0xff]
    %v5099 = vld [vmem:[%s5 + $0x148] sm:$0xff]
    %v5100 = vld [vmem:[%s5 + $0x150] sm:$0xff]
    %v5101 = vld [vmem:[%s5 + $0x158] sm:$0xff]
    %v5102 = vld [vmem:[%s5 + $0x160] sm:$0xff]
    %v5103 = vld [vmem:[%s5 + $0x168] sm:$0xff]
    %v5104 = vld [vmem:[%s5 + $0x170] sm:$0xff]
    %v5105 = vld [vmem:[%s5 + $0x178] sm:$0xff]
    %v5106 = vld [vmem:[%s5 + $0x180] sm:$0xff]
    %v5107 = vld [vmem:[%s5 + $0x188] sm:$0xff]
    %v5108 = vld [vmem:[%s5 + $0x190] sm:$0xff]
    %v5109 = vld [vmem:[%s5 + $0x198] sm:$0xff]
    %v5110 = vld [vmem:[%s5 + $0x1a0] sm:$0xff]
    %v5111 = vld [vmem:[%s5 + $0x1a8] sm:$0xff]
    %v5112 = vld [vmem:[%s5 + $0x1b0] sm:$0xff]
    %v5113 = vld [vmem:[%s5 + $0x1b8] sm:$0xff]
    %v5114 = vld [vmem:[%s5 + $0x1c0] sm:$0xff]
    %v5115 = vld [vmem:[%s5 + $0x1c8] sm:$0xff]
    %v5116 = vld [vmem:[%s5 + $0x1d0] sm:$0xff]
    %v5117 = vld [vmem:[%s5 + $0x1d8] sm:$0xff]
    %v5118 = vld [vmem:[%s5 + $0x1e0] sm:$0xff]
    %v5119 = vld [vmem:[%s5 + $0x1e8] sm:$0xff]
    %v5120 = vld [vmem:[%s5 + $0x1f0] sm:$0xff]
    %v5121 = vld [vmem:[%s5 + $0x1f8] sm:$0xff]
    %v5122 = vld [vmem:[%s6] sm:$0x1]
    %v5124 = vperm.slane %v5122, 0
    %5127 = vst [vmem:[#allocation1] ss:$4 sm:$0xff] %v5057
    %v5128 = vld.sshfl [vmem:[#allocation1] sm:$0xff pattern:$0x73625140]
    %v5129 = vld.sshfl [vmem:[#allocation1 + $0x8] sm:$0xff pattern:$0x73625140]
    %v5130 = vld.sshfl [vmem:[#allocation1 + $0x10] sm:$0xff pattern:$0x73625140]
    %v5131 = vld.sshfl [vmem:[#allocation1 + $0x18] sm:$0xff pattern:$0x73625140]
    %5136 = vmatpush.msra.mxu0 %v5073
    %5137 = vmatpush.msra.mxu0 %v5072
    %5138 = vmatpush.msra.mxu0 %v5071
    %5139 = vmatpush.msra.mxu0 %v5070
    %5140 = vmatpush.msra.mxu0 %v5069
    %5141 = vmatpush.msra.mxu0 %v5068
    %5142 = vmatpush.msra.mxu0 %v5067
    %5143 = vmatpush.msra.mxu0 %v5066
    %5144 = vmatpush.msra.mxu0 %v5065
    %5145 = vmatpush.msra.mxu0 %v5064
    %5146 = vmatpush.msra.mxu0 %v5063
    %5147 = vmatpush.msra.mxu0 %v5062
    %5148 = vmatpush.msra.mxu0 %v5061
    %5149 = vmatpush.msra.mxu0 %v5060
    %5150 = vmatpush.msra.mxu0 %v5059
    %5151 = vmatpush.msra.mxu0 %v5058
    %5152 = vmatmul.f32.gmra.mxu0 %v5128
    %v5153 = vpop.f32.mrf.mxu0
    %v5154 = vadd.f32 %v5124, %v5153
    %5155 = vdwg.mxu0
    %5156 = vmatpush.msra.mxu0 %v5089
    %5157 = vmatpush.msra.mxu0 %v5088
    %5158 = vmatpush.msra.mxu0 %v5087
    %5159 = vmatpush.msra.mxu0 %v5086
    %5160 = vmatpush.msra.mxu0 %v5085
    %5161 = vmatpush.msra.mxu0 %v5084
    %5162 = vmatpush.msra.mxu0 %v5083
    %5163 = vmatpush.msra.mxu0 %v5082
    %5164 = vmatpush.msra.mxu0 %v5081
    %5165 = vmatpush.msra.mxu0 %v5080
    %5166 = vmatpush.msra.mxu0 %v5079
    %5167 = vmatpush.msra.mxu0 %v5078
    %5168 = vmatpush.msra.mxu0 %v5077
    %5169 = vmatpush.msra.mxu0 %v5076
    %5170 = vmatpush.msra.mxu0 %v5075
    %5171 = vmatpush.msra.mxu0 %v5074
    %5172 = vmatmul.f32.gmra.mxu0 %v5129
    %v5173 = vpop.f32.mrf.mxu0
    %v5174 = vadd.f32 %v5154, %v5173
    %5175 = vdwg.mxu0
    %5176 = vmatpush.msra.mxu0 %v5105
    %5177 = vmatpush.msra.mxu0 %v5104
    %5178 = vmatpush.msra.mxu0 %v5103
    %5179 = vmatpush.msra.mxu0 %v5102
    %5180 = vmatpush.msra.mxu0 %v5101
    %5181 = vmatpush.msra.mxu0 %v5100
    %5182 = vmatpush.msra.mxu0 %v5099
    %5183 = vmatpush.msra.mxu0 %v5098
    %5184 = vmatpush.msra.mxu0 %v5097
    %5185 = vmatpush.msra.mxu0 %v5096
    %5186 = vmatpush.msra.mxu0 %v5095
    %5187 = vmatpush.msra.mxu0 %v5094
    %5188 = vmatpush.msra.mxu0 %v5093
    %5189 = vmatpush.msra.mxu0 %v5092
    %5190 = vmatpush.msra.mxu0 %v5091
    %5191 = vmatpush.msra.mxu0 %v5090
    %5192 = vmatmul.f32.gmra.mxu0 %v5130
    %v5193 = vpop.f32.mrf.mxu0
    %v5194 = vadd.f32 %v5174, %v5193
    %5195 = vdwg.mxu0
    %5196 = vmatpush.msra.mxu0 %v5121
    %5197 = vmatpush.msra.mxu0 %v5120
    %5198 = vmatpush.msra.mxu0 %v5119
    %5199 = vmatpush.msra.mxu0 %v5118
    %5200 = vmatpush.msra.mxu0 %v5117
    %5201 = vmatpush.msra.mxu0 %v5116
    %5202 = vmatpush.msra.mxu0 %v5115
    %5203 = vmatpush.msra.mxu0 %v5114
    %5204 = vmatpush.msra.mxu0 %v5113
    %5205 = vmatpush.msra.mxu0 %v5112
    %5206 = vmatpush.msra.mxu0 %v5111
    %5207 = vmatpush.msra.mxu0 %v5110
    %5208 = vmatpush.msra.mxu0 %v5109
    %5209 = vmatpush.msra.mxu0 %v5108
    %5210 = vmatpush.msra.mxu0 %v5107
    %5211 = vmatpush.msra.mxu0 %v5106
    %5212 = vmatmul.f32.gmra.mxu0 %v5131
    %v5213 = vpop.f32.mrf.mxu0
    %v5214 = vadd.f32 %v5194, %v5213
    %5215 = vdwg.mxu0
    %v5216 = vmax.f32 %v5214, 0.0
    %v5217 = vld [vmem:[%s7] sm:$0xff]
    %v5218 = vld [vmem:[%s7 + $0x8] sm:$0xff]
    %v5219 = vld [vmem:[%s7 + $0x10] sm:$0xff]
    %v5220 = vld [vmem:[%s7 + $0x18] sm:$0xff]
    %v5221 = vld [vmem:[%s7 + $0x20] sm:$0xff]
    %v5222 = vld [vmem:[%s7 + $0x28] sm:$0xff]
    %v5223 = vld [vmem:[%s7 + $0x30] sm:$0xff]
    %v5224 = vld [vmem:[%s7 + $0x38] sm:$0xff]
    %v5225 = vld [vmem:[%s7 + $0x40] sm:$0xff]
    %v5226 = vld [vmem:[%s7 + $0x48] sm:$0xff]
    %v5227 = vld [vmem:[%s7 + $0x50] sm:$0xff]
    %v5228 = vld [vmem:[%s7 + $0x58] sm:$0xff]
    %v5229 = vld [vmem:[%s7 + $0x60] sm:$0xff]
    %v5230 = vld [vmem:[%s7 + $0x68] sm:$0xff]
    %v5231 = vld [vmem:[%s7 + $0x70] sm:$0xff]
    %v5232 = vld [vmem:[%s7 + $0x78] sm:$0xff]
    %v5233 = vld [vmem:[%s8] sm:$0x1]
    %v5235 = vperm.slane %v5233, 0
    %5237 = vmatpush.msra.mxu0 %v5232
    %5238 = vmatpush.msra.mxu0 %v5231
    %5239 = vmatpush.msra.mxu0 %v5230
    %5240 = vmatpush.msra.mxu0 %v5229
    %5241 = vmatpush.msra.mxu0 %v5228
    %5242 = vmatpush.msra.mxu0 %v5227
    %5243 = vmatpush.msra.mxu0 %v5226
    %5244 = vmatpush.msra.mxu0 %v5225
    %5245 = vmatpush.msra.mxu0 %v5224
    %5246 = vmatpush.msra.mxu0 %v5223
    %5247 = vmatpush.msra.mxu0 %v5222
    %5248 = vmatpush.msra.mxu0 %v5221
    %5249 = vmatpush.msra.mxu0 %v5220
    %5250 = vmatpush.msra.mxu0 %v5219
    %5251 = vmatpush.msra.mxu0 %v5218
    %5252 = vmatpush.msra.mxu0 %v5217
    %5253 = vmatmul.f32.gmra.mxu0 %v5216
    %v5254 = vpop.f32.mrf.mxu0
    %v5255 = vadd.f32 %v5235, %v5254
    %5256 = vdwg.mxu0
    %5257 = vst [vmem:[#allocation6] sm:$0x3] %v5255
    // Predicated region
    $region38: #{simple_cnn_forward.1} parent=1 // pred_check
      _
    $region39: #{simple_cnn_forward.1} parent=1 // pred_check_branch
      %5259 = sbr.rel (0) target = $region41
    $region40: #{simple_cnn_forward.1} parent=1 // pred_region
      %5261 = vsyncadd [#allocation7], 0
      %s5263 = sshll.u32 [#allocation6], 4
      %s5264 = int_to_ptr.vmem [resolvable:$true] %s5263
      %s5265 = sshll.u32 %s9, 4
      %s5266 = int_to_ptr.hbm [resolvable:$true] %s5265
      %5268 = dma.vmem_to_hbm [thread:$0]  %s5264, 32, %s5266, [#allocation7]
    $region41: #{simple_cnn_forward.1} parent=1 // pred_fallthru
      _
    // Predicated region
    $region42: #{simple_cnn_forward.1} parent=1 // pred_check
      _
    $region43: #{simple_cnn_forward.1} parent=1 // pred_check_branch
      %5270 = sbr.rel (0) target = $region45
    $region44: #{simple_cnn_forward.1} parent=1 // pred_region
      %5272 = dma.done [#allocation7], 32
    $region45: #{simple_cnn_forward.1} parent=1 // pred_fallthru
      _
    %5273 = vsyncpa [#allocation7], 1

</llo_original>
